<compile_context>
chip_gen: v5e
topology: v5e:2x2
jax: 0.10.0
libtpu: 0.0.40
codegen_flags: <defaults>
</compile_context>

<pallas_src>
import functools

import jax
import jax.numpy as jnp
from jax.experimental import pallas as pl
from jax.experimental.pallas import tpu as pltpu

BN_EPS = 1e-5
LANE = 128
MAX_TK = 2048          # collapse the contraction grid axis when it is <= this

# (stride, padding, fused-epilogue) for the 5 ConvTranspose2d stages.
LAYER_CFG = [(1, 0, "bn_relu"), (2, 1, "bn_relu"), (2, 1, "bn_relu"),
             (2, 1, "bn_relu"), (2, 1, "tanh")]

# stride=2 / pad=1 / K=4 sub-pixel decomposition: output rows of parity p only
# see kernel taps kh in _TAPS[p]; dh is the slice offset into the 1-padded input.
_TAPS = {0: ((0, 0), (2, 1)), 1: ((1, 1), (3, 2))}


@functools.lru_cache(maxsize=None)
def _vmem_limit_bytes():
    try:
        cap = int(pltpu.get_tpu_info().vmem_capacity_bytes)
    except Exception:
        cap = 64 << 20          # conservative: v7x physical VMEM per TensorCore
    return min((cap * 3) // 4, 96 << 20)


def _pick_tile(total, prefs):
    for p in prefs:
        if p <= total and total % p == 0:
            return p
    return total


def _pad_to(x, axis, mult, value=0.0):
    size = x.shape[axis]
    target = -(-size // mult) * mult
    if target == size:
        return x
    pads = [(0, 0)] * x.ndim
    pads[axis] = (0, target - size)
    return jnp.pad(x, pads, constant_values=value)


# ---------------------------------------------------------------------------
# Pallas kernels
# ---------------------------------------------------------------------------

def _make_gemm_kernel(mode, multi_k):
    """GEMM over the im2col contraction, fused with tanh or per-tile BN stats."""
    n_out = 1 if mode == "tanh" else 3

    def epilogue(y, y_ref, sum_ref=None, sq_ref=None):
        if mode == "tanh":
            y_ref[...] = jnp.tanh(y).astype(y_ref.dtype)
        else:
            y_ref[...] = y.astype(y_ref.dtype)
            sum_ref[...] = jnp.sum(y, axis=0, keepdims=True).reshape(sum_ref.shape)
            sq_ref[...] = jnp.sum(y * y, axis=0, keepdims=True).reshape(sq_ref.shape)

    if multi_k:
        def kernel(cols_ref, w_ref, *refs):
            out_refs, acc_ref = refs[:n_out], refs[n_out]
            k = pl.program_id(1)

            @pl.when(k == 0)
            def _():
                acc_ref[...] = jnp.zeros_like(acc_ref)

            acc_ref[...] += jnp.dot(cols_ref[...], w_ref[...],
                                    preferred_element_type=jnp.float32)

            @pl.when(k == pl.num_programs(1) - 1)
            def _():
                epilogue(acc_ref[...], *out_refs)
    else:
        def kernel(cols_ref, w_ref, *out_refs):
            y = jnp.dot(cols_ref[...], w_ref[...],
                        preferred_element_type=jnp.float32)
            epilogue(y, *out_refs)

    return kernel


def _bn_relu_kernel(y_ref, scale_ref, shift_ref, o_ref):
    o_ref[...] = jnp.maximum(
        y_ref[...] * scale_ref[...] + shift_ref[...], 0.0).astype(o_ref.dtype)


# ---------------------------------------------------------------------------
# pallas_call wrappers
# ---------------------------------------------------------------------------

def _gemm(cols, w2, mode):
    """out = cols @ w2 (bf16 MXU operands, f32 accumulation).

    cols: (R, Kc) f32, w2: (Kc, CP) f32 with Kc % 128 == 0 and CP % 128 == 0.
    mode == "tanh":     returns tanh(out)                              (R, CP) f32
    mode == "bn_stats": returns (out, per-tile row-sum, per-tile row-sumsq)
                        with shapes (R, CP), (nr, 1, CP), (nr, 1, CP)  f32
    """
    R, Kc = cols.shape
    _, CP = w2.shape

    cols = cols.astype(jnp.bfloat16)   # MXU-friendly operands; acc stays f32
    w2 = w2.astype(jnp.bfloat16)

    TR = _pick_tile(R, (512, 256, 128, 64, 32, 16, 8))
    nr = R // TR
    multi_k = Kc > MAX_TK

    if multi_k:
        TK = _pick_tile(Kc, (2048, 1024, 512, 256, 128))
        grid = (nr, Kc // TK)
        sem = ("parallel", "arbitrary")
        cols_spec = pl.BlockSpec((TR, TK), lambda r, k: (r, k))
        w_spec = pl.BlockSpec((TK, CP), lambda r, k: (k, 0))
        y_spec = pl.BlockSpec((TR, CP), lambda r, k: (r, 0))
        st_spec = pl.BlockSpec((1, 1, CP), lambda r, k: (r, 0, 0))
        scratch = [pltpu.VMEM((TR, CP), jnp.float32)]
    else:
        grid = (nr,)
        sem = ("parallel",)
        cols_spec = pl.BlockSpec((TR, Kc), lambda r: (r, 0))
        w_spec = pl.BlockSpec((Kc, CP), lambda r: (0, 0))
        y_spec = pl.BlockSpec((TR, CP), lambda r: (r, 0))
        st_spec = pl.BlockSpec((1, 1, CP), lambda r: (r, 0, 0))
        scratch = []

    if mode == "tanh":
        out_shape = jax.ShapeDtypeStruct((R, CP), jnp.float32)
        out_specs = y_spec
    else:
        out_shape = (jax.ShapeDtypeStruct((R, CP), jnp.float32),
                     jax.ShapeDtypeStruct((nr, 1, CP), jnp.float32),
                     jax.ShapeDtypeStruct((nr, 1, CP), jnp.float32))
        out_specs = (y_spec, st_spec, st_spec)

    return pl.pallas_call(
        _make_gemm_kernel(mode, multi_k),
        out_shape=out_shape,
        grid_spec=pltpu.PrefetchScalarGridSpec(
            num_scalar_prefetch=0,
            grid=grid,
            in_specs=[cols_spec, w_spec],
            out_specs=out_specs,
            scratch_shapes=scratch),
        compiler_params=pltpu.CompilerParams(
            dimension_semantics=sem,
            vmem_limit_bytes=_vmem_limit_bytes()),
    )(cols, w2)


def _bn_relu_apply(y, scale, shift):
    """relu(y * scale + shift), lane-dense (CP % 128 == 0), R-tiled & parallel."""
    R, CP = y.shape
    TR = _pick_tile(R, (1024, 512, 256, 128, 64, 32, 16, 8))
    return pl.pallas_call(
        _bn_relu_kernel,
        out_shape=jax.ShapeDtypeStruct((R, CP), jnp.float32),
        grid_spec=pltpu.PrefetchScalarGridSpec(
            num_scalar_prefetch=0,
            grid=(R // TR,),
            in_specs=[pl.BlockSpec((TR, CP), lambda r: (r, 0)),
                      pl.BlockSpec((1, CP), lambda r: (0, 0)),
                      pl.BlockSpec((1, CP), lambda r: (0, 0))],
            out_specs=pl.BlockSpec((TR, CP), lambda r: (r, 0))),
        compiler_params=pltpu.CompilerParams(
            dimension_semantics=("parallel",),
            vmem_limit_bytes=_vmem_limit_bytes()),
    )(y, scale, shift)


# ---------------------------------------------------------------------------
# JAX glue: im2col / sub-pixel slabs
# ---------------------------------------------------------------------------

def _dense_slab(x, w_conv, stride, pad, K):
    """Generic zero-insert + pad + im2col path (used for the stride-1 first layer)."""
    N, H, W, Cin = x.shape
    OH = (H - 1) * stride - 2 * pad + K
    OW = (W - 1) * stride - 2 * pad + K
    if stride > 1:
        Hz, Wz = (H - 1) * stride + 1, (W - 1) * stride + 1
        xz = jnp.zeros((N, Hz, Wz, Cin), x.dtype).at[:, ::stride, ::stride, :].set(x)
    else:
        xz = x
    q = K - 1 - pad
    xp = jnp.pad(xz, ((0, 0), (q, q), (q, q), (0, 0)))
    R = N * OH * OW
    cols = jnp.concatenate(
        [xp[:, kh:kh + OH, kw:kw + OW, :].reshape(R, Cin)
         for kh in range(K) for kw in range(K)], axis=1)           # (R, K*K*Cin)
    w2 = w_conv.reshape(K * K * Cin, -1)                           # (K*K*Cin, Cout)
    return cols, w2


def _phase_slabs(x, w_conv):
    """Sub-pixel (polyphase) decomposition of a stride-2 / pad-1 / K=4
    ConvTranspose: four (N*H*W, 4*Cin) GEMMs instead of one (N*2H*2W, 16*Cin)
    GEMM, skipping the im2col columns that only ever read inserted zeros."""
    N, H, W, Cin = x.shape
    xp = jnp.pad(x, ((0, 0), (1, 1), (1, 1), (0, 0)))
    R = N * H * W
    slabs = []
    for ph in (0, 1):
        for pw in (0, 1):
            taps = [(kh, dh, kw, dw)
                    for (kh, dh) in _TAPS[ph] for (kw, dw) in _TAPS[pw]]
            cols = jnp.concatenate(
                [xp[:, dh:dh + H, dw:dw + W, :].reshape(R, Cin)
                 for (_, dh, _, dw) in taps], axis=1)              # (R, 4*Cin)
            w2 = jnp.concatenate(
                [w_conv[kh, kw] for (kh, _, kw, _) in taps], axis=0)  # (4*Cin, Cout)
            slabs.append(((ph, pw), cols, w2))
    return slabs


# ---------------------------------------------------------------------------
# Generator stages
# ---------------------------------------------------------------------------

def conv_transpose_bn_act(x, w_t, gamma, beta, *, stride, pad, mode):
    """One generator stage: ConvTranspose2d(k=4, bias=False) + (BN+ReLU | Tanh).

    x: (N, H, W, Cin) f32 NHWC;  w_t: (Cin, Cout, K, K) PyTorch layout.
    """
    N, H, W, Cin = x.shape
    Cin_w, Cout, K, _ = w_t.shape
    assert Cin == Cin_w
    OH = (H - 1) * stride - 2 * pad + K
    OW = (W - 1) * stride - 2 * pad + K
    CP = -(-Cout // LANE) * LANE                                   # lane-dense Cout

    # ConvTranspose weight -> equivalent forward-conv weight (flip + io swap).
    w_conv = jnp.transpose(w_t[:, :, ::-1, ::-1], (2, 3, 0, 1))    # (K, K, Cin, Cout)

    if stride == 2 and pad == 1 and K == 4:
        slabs = _phase_slabs(x, w_conv)
    else:
        cols, w2 = _dense_slab(x, w_conv, stride, pad, K)
        slabs = [(None, cols, w2)]

    kmode = "tanh" if mode == "tanh" else "bn_stats"
    phases, ys, sums, sqs = [], [], [], []
    for phase, cols, w2 in slabs:
        cols = _pad_to(cols, 1, LANE)                  # lane-aligned contraction
        w2 = _pad_to(_pad_to(w2, 0, LANE), 1, LANE)    # (KcP, CP), lane-dense out
        out = _gemm(cols, w2, kmode)
        phases.append(phase)
        if kmode == "tanh":
            ys.append(out)
        else:
            ys.append(out[0])
            sums.append(out[1])
            sqs.append(out[2])

    if kmode == "bn_stats":
        # BatchNorm2d, training mode (module default): batch statistics over
        # (N, H, W), biased variance; finalize the cross-tile/-phase reduction.
        R_total = float(N * OH * OW)
        tot_sum = sum(jnp.sum(s, axis=(0, 1)) for s in sums)       # (CP,)
        tot_sq = sum(jnp.sum(s, axis=(0, 1)) for s in sqs)         # (CP,)
        mean = tot_sum / R_total
        var = jnp.maximum(tot_sq / R_total - mean * mean, 0.0)
        gamma_p = _pad_to(gamma.astype(jnp.float32), 0, LANE, value=1.0)
        beta_p = _pad_to(beta.astype(jnp.float32), 0, LANE, value=0.0)
        scale = gamma_p * jax.lax.rsqrt(var + BN_EPS)
        shift = beta_p - mean * scale
        scale = scale.reshape(1, CP)
        shift = shift.reshape(1, CP)
        ys = [_bn_relu_apply(y, scale, shift) for y in ys]

    if phases[0] is None:                                          # dense path
        return ys[0].reshape(N, OH, OW, CP)[..., :Cout]

    out = jnp.zeros((N, OH, OW, Cout), jnp.float32)                # interleave phases
    for (ph, pw), y in zip(phases, ys):
        out = out.at[:, ph::2, pw::2, :].set(y.reshape(N, H, W, CP)[..., :Cout])
    return out


def generator_forward(z_nchw, params):
    # layout: NCHW in / NCHW out (PyTorch convention), NHWC + GEMM slabs internally.
    x = jnp.transpose(z_nchw, (0, 2, 3, 1)).astype(jnp.float32)    # (N, 1, 1, nz)
    for (stride, pad, mode), p in zip(LAYER_CFG, params):
        x = conv_transpose_bn_act(x, p["w"], p["gamma"], p["beta"],
                                  stride=stride, pad=pad, mode=mode)
    return jnp.transpose(x, (0, 3, 1, 2))                          # (N, nc, 64, 64)


def init_generator_params(key, nz, ngf, nc):
    """Deterministic synthetic init (DCGAN-style N(0, 0.02) conv weights)."""
    chans = [nz, ngf * 8, ngf * 4, ngf * 2, ngf, nc]
    params = []
    for i in range(5):
        key, kw, kg, kb = jax.random.split(key, 4)
        cin, cout = chans[i], chans[i + 1]
        w = 0.02 * jax.random.normal(kw, (cin, cout, 4, 4), jnp.float32)
        gamma = 1.0 + 0.02 * jax.random.normal(kg, (cout,), jnp.float32)
        beta = 0.02 * jax.random.normal(kb, (cout,), jnp.float32)
        params.append({"w": w, "gamma": gamma, "beta": beta})
    return params


def ref_generator_forward(z_nchw, params):
    """Pure-JAX reference (lax.conv_general_dilated) for correctness checking."""
    x = jnp.transpose(z_nchw, (0, 2, 3, 1)).astype(jnp.float32)
    for (stride, pad, mode), p in zip(LAYER_CFG, params):
        w_t = p["w"]
        K = w_t.shape[2]
        q = K - 1 - pad
        w_conv = jnp.transpose(w_t[:, :, ::-1, ::-1], (2, 3, 0, 1))  # HWIO
        x = jax.lax.conv_general_dilated(
            x, w_conv, window_strides=(1, 1), padding=((q, q), (q, q)),
            lhs_dilation=(stride, stride),
            dimension_numbers=("NHWC", "HWIO", "NHWC"),
            precision=jax.lax.Precision.HIGHEST)
        if mode == "bn_relu":
            mean = jnp.mean(x, axis=(0, 1, 2), keepdims=True)
            var = jnp.mean(jnp.square(x - mean), axis=(0, 1, 2), keepdims=True)
            x = (x - mean) * jax.lax.rsqrt(var + BN_EPS)
            x = x * p["gamma"] + p["beta"]
            x = jnp.maximum(x, 0.0)
        else:
            x = jnp.tanh(x)
    return jnp.transpose(x, (0, 3, 1, 2))


if __name__ == "__main__":
    nz, ngf, nc, batch = 16, 16, 3, 2

    key = jax.random.PRNGKey(0)
    kp, kz = jax.random.split(key)
    params = init_generator_params(kp, nz, ngf, nc)
    z = jax.random.normal(kz, (batch, nz, 1, 1), jnp.float32)

    out = jax.jit(generator_forward)(z, params)
    out = jax.block_until_ready(out)
    assert out.shape == (batch, nc, 64, 64), out.shape

    ref = ref_generator_forward(z, params)
    max_err = float(jnp.max(jnp.abs(out - ref)))
    assert max_err < 3e-2, f"mismatch vs reference: {max_err}"

    print("KERNEL_OK")
</pallas_src>

<mosaic_0001>
module attributes {stable_mosaic.version = 11 : i64} {
  func.func @kernel(%arg0: i32, %arg1: memref<32x256xbf16, #tpu.memory_space<vmem>>, %arg2: memref<256x128xbf16, #tpu.memory_space<vmem>>, %arg3: memref<32x128xf32, #tpu.memory_space<vmem>>, %arg4: memref<1x1x128xf32, #tpu.memory_space<vmem>>, %arg5: memref<1x1x128xf32, #tpu.memory_space<vmem>>) attributes {dimension_semantics = [#tpu.dimension_semantics<parallel>], iteration_bounds = array<i64: 1>, scalar_prefetch = 0 : i64, scratch_operands = 0 : i64, tpu.core_type = #tpu.core_type<tc>, window_params = [{transform_indices = @transform_0, window_bounds = array<i64: 32, 256>}, {pipeline_mode = #tpu.pipeline_mode<synchronous>, transform_indices = @transform_1, window_bounds = array<i64: 256, 128>}, {transform_indices = @transform_2, window_bounds = array<i64: 32, 128>}, {transform_indices = @transform_3, window_bounds = array<i64: 1, 1, 128>}, {transform_indices = @transform_4, window_bounds = array<i64: 1, 1, 128>}]} {
    %c0 = arith.constant 0 : index
    %c0_0 = arith.constant 0 : index
    %0 = vector.load %arg1[%c0, %c0_0] : memref<32x256xbf16, #tpu.memory_space<vmem>>, vector<32x256xbf16>
    %c0_1 = arith.constant 0 : index
    %c0_2 = arith.constant 0 : index
    %1 = vector.load %arg2[%c0_1, %c0_2] : memref<256x128xbf16, #tpu.memory_space<vmem>>, vector<256x128xbf16>
    %cst = arith.constant dense<0.000000e+00> : vector<32x128xf32>
    %2 = tpu.matmul %0, %1, %cst {dimension_numbers = #tpu.dot_dimension_numbers<[1], [0], [0], [1], [0, 0, 1, 1], [], []>} : vector<32x256xbf16>, vector<256x128xbf16>, vector<32x128xf32> -> vector<32x128xf32>
    %c0_3 = arith.constant 0 : index
    %c0_4 = arith.constant 0 : index
    %3 = vector.load %arg3[%c0_3, %c0_4] : memref<32x128xf32, #tpu.memory_space<vmem>>, vector<32x128xf32>
    tpu.vector_store %arg3[%c0_3, %c0_4], %2 {strides = array<i32>} : memref<32x128xf32, #tpu.memory_space<vmem>>, vector<32x128xf32>,
    %cst_5 = arith.constant dense<0.000000e+00> : vector<128xf32>
    %4 = vector.multi_reduction <add>, %2, %cst_5 [0] : vector<32x128xf32> to vector<128xf32>
    %5 = vector.shape_cast %4 : vector<128xf32> to vector<1x128xf32>
    %6 = vector.shape_cast %5 : vector<1x128xf32> to vector<1x1x128xf32>
    %c0_6 = arith.constant 0 : index
    %c0_7 = arith.constant 0 : index
    %c0_8 = arith.constant 0 : index
    %7 = vector.load %arg4[%c0_6, %c0_7, %c0_8] : memref<1x1x128xf32, #tpu.memory_space<vmem>>, vector<1x1x128xf32>
    tpu.vector_store %arg4[%c0_6, %c0_7, %c0_8], %6 {strides = array<i32>} : memref<1x1x128xf32, #tpu.memory_space<vmem>>, vector<1x1x128xf32>,
    %8 = arith.mulf %2, %2 : vector<32x128xf32>
    %cst_9 = arith.constant dense<0.000000e+00> : vector<128xf32>
    %9 = vector.multi_reduction <add>, %8, %cst_9 [0] : vector<32x128xf32> to vector<128xf32>
    %10 = vector.shape_cast %9 : vector<128xf32> to vector<1x128xf32>
    %11 = vector.shape_cast %10 : vector<1x128xf32> to vector<1x1x128xf32>
    %c0_10 = arith.constant 0 : index
    %c0_11 = arith.constant 0 : index
    %c0_12 = arith.constant 0 : index
    %12 = vector.load %arg5[%c0_10, %c0_11, %c0_12] : memref<1x1x128xf32, #tpu.memory_space<vmem>>, vector<1x1x128xf32>
    tpu.vector_store %arg5[%c0_10, %c0_11, %c0_12], %11 {strides = array<i32>} : memref<1x1x128xf32, #tpu.memory_space<vmem>>, vector<1x1x128xf32>,
    return
  }
  func.func @transform_0(%arg0: i32) -> (i32, i32) {
    %c0_i32 = arith.constant 0 : i32
    %c0_i32_0 = arith.constant 0 : i32
    return %arg0, %c0_i32 : i32, i32
  }
  func.func @transform_1(%arg0: i32) -> (i32, i32) {
    %c0_i32 = arith.constant 0 : i32
    %c0_i32_0 = arith.constant 0 : i32
    %c0_i32_1 = arith.constant 0 : i32
    return %c0_i32, %c0_i32_0 : i32, i32
  }
  func.func @transform_2(%arg0: i32) -> (i32, i32) {
    %c0_i32 = arith.constant 0 : i32
    %c0_i32_0 = arith.constant 0 : i32
    return %arg0, %c0_i32 : i32, i32
  }
  func.func @transform_3(%arg0: i32) -> (i32, i32, i32) {
    %c0_i32 = arith.constant 0 : i32
    %c0_i32_0 = arith.constant 0 : i32
    %c0_i32_1 = arith.constant 0 : i32
    return %arg0, %c0_i32, %c0_i32_0 : i32, i32, i32
  }
  func.func @transform_4(%arg0: i32) -> (i32, i32, i32) {
    %c0_i32 = arith.constant 0 : i32
    %c0_i32_0 = arith.constant 0 : i32
    %c0_i32_1 = arith.constant 0 : i32
    return %arg0, %c0_i32, %c0_i32_0 : i32, i32, i32
  }
}

module attributes {stable_mosaic.version = 11 : i64} {
  func.func @_bn_relu_kernel(%arg0: i32, %arg1: memref<32x128xf32, #tpu.memory_space<vmem>>, %arg2: memref<1x128xf32, #tpu.memory_space<vmem>>, %arg3: memref<1x128xf32, #tpu.memory_space<vmem>>, %arg4: memref<32x128xf32, #tpu.memory_space<vmem>>) attributes {dimension_semantics = [#tpu.dimension_semantics<parallel>], iteration_bounds = array<i64: 1>, scalar_prefetch = 0 : i64, scratch_operands = 0 : i64, tpu.core_type = #tpu.core_type<tc>, window_params = [{transform_indices = @transform_0, window_bounds = array<i64: 32, 128>}, {pipeline_mode = #tpu.pipeline_mode<synchronous>, transform_indices = @transform_1, window_bounds = array<i64: 1, 128>}, {pipeline_mode = #tpu.pipeline_mode<synchronous>, transform_indices = @transform_2, window_bounds = array<i64: 1, 128>}, {transform_indices = @transform_3, window_bounds = array<i64: 32, 128>}]} {
    %c0 = arith.constant 0 : index
    %c0_0 = arith.constant 0 : index
    %0 = vector.load %arg1[%c0, %c0_0] : memref<32x128xf32, #tpu.memory_space<vmem>>, vector<32x128xf32>
    %c0_1 = arith.constant 0 : index
    %c0_2 = arith.constant 0 : index
    %1 = vector.load %arg2[%c0_1, %c0_2] : memref<1x128xf32, #tpu.memory_space<vmem>>, vector<1x128xf32>
    %2 = vector.broadcast %1 : vector<1x128xf32> to vector<32x128xf32>
    %3 = arith.mulf %0, %2 : vector<32x128xf32>
    %c0_3 = arith.constant 0 : index
    %c0_4 = arith.constant 0 : index
    %4 = vector.load %arg3[%c0_3, %c0_4] : memref<1x128xf32, #tpu.memory_space<vmem>>, vector<1x128xf32>
    %5 = vector.broadcast %4 : vector<1x128xf32> to vector<32x128xf32>
    %6 = arith.addf %3, %5 : vector<32x128xf32>
    %cst = arith.constant 0.000000e+00 : f32
    %7 = vector.broadcast %cst : f32 to vector<32x128xf32>
    %8 = arith.maximumf %6, %7 : vector<32x128xf32>
    %c0_5 = arith.constant 0 : index
    %c0_6 = arith.constant 0 : index
    %9 = vector.load %arg4[%c0_5, %c0_6] : memref<32x128xf32, #tpu.memory_space<vmem>>, vector<32x128xf32>
    tpu.vector_store %arg4[%c0_5, %c0_6], %8 {strides = array<i32>} : memref<32x128xf32, #tpu.memory_space<vmem>>, vector<32x128xf32>,
    return
  }
  func.func @transform_0(%arg0: i32) -> (i32, i32) {
    %c0_i32 = arith.constant 0 : i32
    %c0_i32_0 = arith.constant 0 : i32
    return %arg0, %c0_i32 : i32, i32
  }
  func.func @transform_1(%arg0: i32) -> (i32, i32) {
    %c0_i32 = arith.constant 0 : i32
    %c0_i32_0 = arith.constant 0 : i32
    %c0_i32_1 = arith.constant 0 : i32
    return %c0_i32, %c0_i32_0 : i32, i32
  }
  func.func @transform_2(%arg0: i32) -> (i32, i32) {
    %c0_i32 = arith.constant 0 : i32
    %c0_i32_0 = arith.constant 0 : i32
    %c0_i32_1 = arith.constant 0 : i32
    return %c0_i32, %c0_i32_0 : i32, i32
  }
  func.func @transform_3(%arg0: i32) -> (i32, i32) {
    %c0_i32 = arith.constant 0 : i32
    %c0_i32_0 = arith.constant 0 : i32
    return %arg0, %c0_i32 : i32, i32
  }
}

module attributes {stable_mosaic.version = 11 : i64} {
  func.func @kernel(%arg0: i32, %arg1: memref<32x512xbf16, #tpu.memory_space<vmem>>, %arg2: memref<512x128xbf16, #tpu.memory_space<vmem>>, %arg3: memref<32x128xf32, #tpu.memory_space<vmem>>, %arg4: memref<1x1x128xf32, #tpu.memory_space<vmem>>, %arg5: memref<1x1x128xf32, #tpu.memory_space<vmem>>) attributes {dimension_semantics = [#tpu.dimension_semantics<parallel>], iteration_bounds = array<i64: 1>, scalar_prefetch = 0 : i64, scratch_operands = 0 : i64, tpu.core_type = #tpu.core_type<tc>, window_params = [{transform_indices = @transform_0, window_bounds = array<i64: 32, 512>}, {pipeline_mode = #tpu.pipeline_mode<synchronous>, transform_indices = @transform_1, window_bounds = array<i64: 512, 128>}, {transform_indices = @transform_2, window_bounds = array<i64: 32, 128>}, {transform_indices = @transform_3, window_bounds = array<i64: 1, 1, 128>}, {transform_indices = @transform_4, window_bounds = array<i64: 1, 1, 128>}]} {
    %c0 = arith.constant 0 : index
    %c0_0 = arith.constant 0 : index
    %0 = vector.load %arg1[%c0, %c0_0] : memref<32x512xbf16, #tpu.memory_space<vmem>>, vector<32x512xbf16>
    %c0_1 = arith.constant 0 : index
    %c0_2 = arith.constant 0 : index
    %1 = vector.load %arg2[%c0_1, %c0_2] : memref<512x128xbf16, #tpu.memory_space<vmem>>, vector<512x128xbf16>
    %cst = arith.constant dense<0.000000e+00> : vector<32x128xf32>
    %2 = tpu.matmul %0, %1, %cst {dimension_numbers = #tpu.dot_dimension_numbers<[1], [0], [0], [1], [0, 0, 1, 1], [], []>} : vector<32x512xbf16>, vector<512x128xbf16>, vector<32x128xf32> -> vector<32x128xf32>
    %c0_3 = arith.constant 0 : index
    %c0_4 = arith.constant 0 : index
    %3 = vector.load %arg3[%c0_3, %c0_4] : memref<32x128xf32, #tpu.memory_space<vmem>>, vector<32x128xf32>
    tpu.vector_store %arg3[%c0_3, %c0_4], %2 {strides = array<i32>} : memref<32x128xf32, #tpu.memory_space<vmem>>, vector<32x128xf32>,
    %cst_5 = arith.constant dense<0.000000e+00> : vector<128xf32>
    %4 = vector.multi_reduction <add>, %2, %cst_5 [0] : vector<32x128xf32> to vector<128xf32>
    %5 = vector.shape_cast %4 : vector<128xf32> to vector<1x128xf32>
    %6 = vector.shape_cast %5 : vector<1x128xf32> to vector<1x1x128xf32>
    %c0_6 = arith.constant 0 : index
    %c0_7 = arith.constant 0 : index
    %c0_8 = arith.constant 0 : index
    %7 = vector.load %arg4[%c0_6, %c0_7, %c0_8] : memref<1x1x128xf32, #tpu.memory_space<vmem>>, vector<1x1x128xf32>
    tpu.vector_store %arg4[%c0_6, %c0_7, %c0_8], %6 {strides = array<i32>} : memref<1x1x128xf32, #tpu.memory_space<vmem>>, vector<1x1x128xf32>,
    %8 = arith.mulf %2, %2 : vector<32x128xf32>
    %cst_9 = arith.constant dense<0.000000e+00> : vector<128xf32>
    %9 = vector.multi_reduction <add>, %8, %cst_9 [0] : vector<32x128xf32> to vector<128xf32>
    %10 = vector.shape_cast %9 : vector<128xf32> to vector<1x128xf32>
    %11 = vector.shape_cast %10 : vector<1x128xf32> to vector<1x1x128xf32>
    %c0_10 = arith.constant 0 : index
    %c0_11 = arith.constant 0 : index
    %c0_12 = arith.constant 0 : index
    %12 = vector.load %arg5[%c0_10, %c0_11, %c0_12] : memref<1x1x128xf32, #tpu.memory_space<vmem>>, vector<1x1x128xf32>
    tpu.vector_store %arg5[%c0_10, %c0_11, %c0_12], %11 {strides = array<i32>} : memref<1x1x128xf32, #tpu.memory_space<vmem>>, vector<1x1x128xf32>,
    return
  }
  func.func @transform_0(%arg0: i32) -> (i32, i32) {
    %c0_i32 = arith.constant 0 : i32
    %c0_i32_0 = arith.constant 0 : i32
    return %arg0, %c0_i32 : i32, i32
  }
  func.func @transform_1(%arg0: i32) -> (i32, i32) {
    %c0_i32 = arith.constant 0 : i32
    %c0_i32_0 = arith.constant 0 : i32
    %c0_i32_1 = arith.constant 0 : i32
    return %c0_i32, %c0_i32_0 : i32, i32
  }
  func.func @transform_2(%arg0: i32) -> (i32, i32) {
    %c0_i32 = arith.constant 0 : i32
    %c0_i32_0 = arith.constant 0 : i32
    return %arg0, %c0_i32 : i32, i32
  }
  func.func @transform_3(%arg0: i32) -> (i32, i32, i32) {
    %c0_i32 = arith.constant 0 : i32
    %c0_i32_0 = arith.constant 0 : i32
    %c0_i32_1 = arith.constant 0 : i32
    return %arg0, %c0_i32, %c0_i32_0 : i32, i32, i32
  }
  func.func @transform_4(%arg0: i32) -> (i32, i32, i32) {
    %c0_i32 = arith.constant 0 : i32
    %c0_i32_0 = arith.constant 0 : i32
    %c0_i32_1 = arith.constant 0 : i32
    return %arg0, %c0_i32, %c0_i32_0 : i32, i32, i32
  }
}

module attributes {stable_mosaic.version = 11 : i64} {
  func.func @kernel(%arg0: i32, %arg1: memref<128x256xbf16, #tpu.memory_space<vmem>>, %arg2: memref<256x128xbf16, #tpu.memory_space<vmem>>, %arg3: memref<128x128xf32, #tpu.memory_space<vmem>>, %arg4: memref<1x1x128xf32, #tpu.memory_space<vmem>>, %arg5: memref<1x1x128xf32, #tpu.memory_space<vmem>>) attributes {dimension_semantics = [#tpu.dimension_semantics<parallel>], iteration_bounds = array<i64: 1>, scalar_prefetch = 0 : i64, scratch_operands = 0 : i64, tpu.core_type = #tpu.core_type<tc>, window_params = [{transform_indices = @transform_0, window_bounds = array<i64: 128, 256>}, {pipeline_mode = #tpu.pipeline_mode<synchronous>, transform_indices = @transform_1, window_bounds = array<i64: 256, 128>}, {transform_indices = @transform_2, window_bounds = array<i64: 128, 128>}, {transform_indices = @transform_3, window_bounds = array<i64: 1, 1, 128>}, {transform_indices = @transform_4, window_bounds = array<i64: 1, 1, 128>}]} {
    %c0 = arith.constant 0 : index
    %c0_0 = arith.constant 0 : index
    %0 = vector.load %arg1[%c0, %c0_0] : memref<128x256xbf16, #tpu.memory_space<vmem>>, vector<128x256xbf16>
    %c0_1 = arith.constant 0 : index
    %c0_2 = arith.constant 0 : index
    %1 = vector.load %arg2[%c0_1, %c0_2] : memref<256x128xbf16, #tpu.memory_space<vmem>>, vector<256x128xbf16>
    %cst = arith.constant dense<0.000000e+00> : vector<128x128xf32>
    %2 = tpu.matmul %0, %1, %cst {dimension_numbers = #tpu.dot_dimension_numbers<[1], [0], [0], [1], [0, 0, 1, 1], [], []>} : vector<128x256xbf16>, vector<256x128xbf16>, vector<128x128xf32> -> vector<128x128xf32>
    %c0_3 = arith.constant 0 : index
    %c0_4 = arith.constant 0 : index
    %3 = vector.load %arg3[%c0_3, %c0_4] : memref<128x128xf32, #tpu.memory_space<vmem>>, vector<128x128xf32>
    tpu.vector_store %arg3[%c0_3, %c0_4], %2 {strides = array<i32>} : memref<128x128xf32, #tpu.memory_space<vmem>>, vector<128x128xf32>,
    %cst_5 = arith.constant dense<0.000000e+00> : vector<128xf32>
    %4 = vector.multi_reduction <add>, %2, %cst_5 [0] : vector<128x128xf32> to vector<128xf32>
    %5 = vector.shape_cast %4 : vector<128xf32> to vector<1x128xf32>
    %6 = vector.shape_cast %5 : vector<1x128xf32> to vector<1x1x128xf32>
    %c0_6 = arith.constant 0 : index
    %c0_7 = arith.constant 0 : index
    %c0_8 = arith.constant 0 : index
    %7 = vector.load %arg4[%c0_6, %c0_7, %c0_8] : memref<1x1x128xf32, #tpu.memory_space<vmem>>, vector<1x1x128xf32>
    tpu.vector_store %arg4[%c0_6, %c0_7, %c0_8], %6 {strides = array<i32>} : memref<1x1x128xf32, #tpu.memory_space<vmem>>, vector<1x1x128xf32>,
    %8 = arith.mulf %2, %2 : vector<128x128xf32>
    %cst_9 = arith.constant dense<0.000000e+00> : vector<128xf32>
    %9 = vector.multi_reduction <add>, %8, %cst_9 [0] : vector<128x128xf32> to vector<128xf32>
    %10 = vector.shape_cast %9 : vector<128xf32> to vector<1x128xf32>
    %11 = vector.shape_cast %10 : vector<1x128xf32> to vector<1x1x128xf32>
    %c0_10 = arith.constant 0 : index
    %c0_11 = arith.constant 0 : index
    %c0_12 = arith.constant 0 : index
    %12 = vector.load %arg5[%c0_10, %c0_11, %c0_12] : memref<1x1x128xf32, #tpu.memory_space<vmem>>, vector<1x1x128xf32>
    tpu.vector_store %arg5[%c0_10, %c0_11, %c0_12], %11 {strides = array<i32>} : memref<1x1x128xf32, #tpu.memory_space<vmem>>, vector<1x1x128xf32>,
    return
  }
  func.func @transform_0(%arg0: i32) -> (i32, i32) {
    %c0_i32 = arith.constant 0 : i32
    %c0_i32_0 = arith.constant 0 : i32
    return %arg0, %c0_i32 : i32, i32
  }
  func.func @transform_1(%arg0: i32) -> (i32, i32) {
    %c0_i32 = arith.constant 0 : i32
    %c0_i32_0 = arith.constant 0 : i32
    %c0_i32_1 = arith.constant 0 : i32
    return %c0_i32, %c0_i32_0 : i32, i32
  }
  func.func @transform_2(%arg0: i32) -> (i32, i32) {
    %c0_i32 = arith.constant 0 : i32
    %c0_i32_0 = arith.constant 0 : i32
    return %arg0, %c0_i32 : i32, i32
  }
  func.func @transform_3(%arg0: i32) -> (i32, i32, i32) {
    %c0_i32 = arith.constant 0 : i32
    %c0_i32_0 = arith.constant 0 : i32
    %c0_i32_1 = arith.constant 0 : i32
    return %arg0, %c0_i32, %c0_i32_0 : i32, i32, i32
  }
  func.func @transform_4(%arg0: i32) -> (i32, i32, i32) {
    %c0_i32 = arith.constant 0 : i32
    %c0_i32_0 = arith.constant 0 : i32
    %c0_i32_1 = arith.constant 0 : i32
    return %arg0, %c0_i32, %c0_i32_0 : i32, i32, i32
  }
}

module attributes {stable_mosaic.version = 11 : i64} {
  func.func @_bn_relu_kernel(%arg0: i32, %arg1: memref<128x128xf32, #tpu.memory_space<vmem>>, %arg2: memref<1x128xf32, #tpu.memory_space<vmem>>, %arg3: memref<1x128xf32, #tpu.memory_space<vmem>>, %arg4: memref<128x128xf32, #tpu.memory_space<vmem>>) attributes {dimension_semantics = [#tpu.dimension_semantics<parallel>], iteration_bounds = array<i64: 1>, scalar_prefetch = 0 : i64, scratch_operands = 0 : i64, tpu.core_type = #tpu.core_type<tc>, window_params = [{transform_indices = @transform_0, window_bounds = array<i64: 128, 128>}, {pipeline_mode = #tpu.pipeline_mode<synchronous>, transform_indices = @transform_1, window_bounds = array<i64: 1, 128>}, {pipeline_mode = #tpu.pipeline_mode<synchronous>, transform_indices = @transform_2, window_bounds = array<i64: 1, 128>}, {transform_indices = @transform_3, window_bounds = array<i64: 128, 128>}]} {
    %c0 = arith.constant 0 : index
    %c0_0 = arith.constant 0 : index
    %0 = vector.load %arg1[%c0, %c0_0] : memref<128x128xf32, #tpu.memory_space<vmem>>, vector<128x128xf32>
    %c0_1 = arith.constant 0 : index
    %c0_2 = arith.constant 0 : index
    %1 = vector.load %arg2[%c0_1, %c0_2] : memref<1x128xf32, #tpu.memory_space<vmem>>, vector<1x128xf32>
    %2 = vector.broadcast %1 : vector<1x128xf32> to vector<128x128xf32>
    %3 = arith.mulf %0, %2 : vector<128x128xf32>
    %c0_3 = arith.constant 0 : index
    %c0_4 = arith.constant 0 : index
    %4 = vector.load %arg3[%c0_3, %c0_4] : memref<1x128xf32, #tpu.memory_space<vmem>>, vector<1x128xf32>
    %5 = vector.broadcast %4 : vector<1x128xf32> to vector<128x128xf32>
    %6 = arith.addf %3, %5 : vector<128x128xf32>
    %cst = arith.constant 0.000000e+00 : f32
    %7 = vector.broadcast %cst : f32 to vector<128x128xf32>
    %8 = arith.maximumf %6, %7 : vector<128x128xf32>
    %c0_5 = arith.constant 0 : index
    %c0_6 = arith.constant 0 : index
    %9 = vector.load %arg4[%c0_5, %c0_6] : memref<128x128xf32, #tpu.memory_space<vmem>>, vector<128x128xf32>
    tpu.vector_store %arg4[%c0_5, %c0_6], %8 {strides = array<i32>} : memref<128x128xf32, #tpu.memory_space<vmem>>, vector<128x128xf32>,
    return
  }
  func.func @transform_0(%arg0: i32) -> (i32, i32) {
    %c0_i32 = arith.constant 0 : i32
    %c0_i32_0 = arith.constant 0 : i32
    return %arg0, %c0_i32 : i32, i32
  }
  func.func @transform_1(%arg0: i32) -> (i32, i32) {
    %c0_i32 = arith.constant 0 : i32
    %c0_i32_0 = arith.constant 0 : i32
    %c0_i32_1 = arith.constant 0 : i32
    return %c0_i32, %c0_i32_0 : i32, i32
  }
  func.func @transform_2(%arg0: i32) -> (i32, i32) {
    %c0_i32 = arith.constant 0 : i32
    %c0_i32_0 = arith.constant 0 : i32
    %c0_i32_1 = arith.constant 0 : i32
    return %c0_i32, %c0_i32_0 : i32, i32
  }
  func.func @transform_3(%arg0: i32) -> (i32, i32) {
    %c0_i32 = arith.constant 0 : i32
    %c0_i32_0 = arith.constant 0 : i32
    return %arg0, %c0_i32 : i32, i32
  }
}

module attributes {stable_mosaic.version = 11 : i64} {
  func.func @kernel(%arg0: i32, %arg1: memref<512x128xbf16, #tpu.memory_space<vmem>>, %arg2: memref<128x128xbf16, #tpu.memory_space<vmem>>, %arg3: memref<512x128xf32, #tpu.memory_space<vmem>>, %arg4: memref<1x1x128xf32, #tpu.memory_space<vmem>>, %arg5: memref<1x1x128xf32, #tpu.memory_space<vmem>>) attributes {dimension_semantics = [#tpu.dimension_semantics<parallel>], iteration_bounds = array<i64: 1>, scalar_prefetch = 0 : i64, scratch_operands = 0 : i64, tpu.core_type = #tpu.core_type<tc>, window_params = [{transform_indices = @transform_0, window_bounds = array<i64: 512, 128>}, {pipeline_mode = #tpu.pipeline_mode<synchronous>, transform_indices = @transform_1, window_bounds = array<i64: 128, 128>}, {transform_indices = @transform_2, window_bounds = array<i64: 512, 128>}, {transform_indices = @transform_3, window_bounds = array<i64: 1, 1, 128>}, {transform_indices = @transform_4, window_bounds = array<i64: 1, 1, 128>}]} {
    %c0 = arith.constant 0 : index
    %c0_0 = arith.constant 0 : index
    %0 = vector.load %arg1[%c0, %c0_0] : memref<512x128xbf16, #tpu.memory_space<vmem>>, vector<512x128xbf16>
    %c0_1 = arith.constant 0 : index
    %c0_2 = arith.constant 0 : index
    %1 = vector.load %arg2[%c0_1, %c0_2] : memref<128x128xbf16, #tpu.memory_space<vmem>>, vector<128x128xbf16>
    %cst = arith.constant dense<0.000000e+00> : vector<512x128xf32>
    %2 = tpu.matmul %0, %1, %cst {dimension_numbers = #tpu.dot_dimension_numbers<[1], [0], [0], [1], [0, 0, 1, 1], [], []>} : vector<512x128xbf16>, vector<128x128xbf16>, vector<512x128xf32> -> vector<512x128xf32>
    %c0_3 = arith.constant 0 : index
    %c0_4 = arith.constant 0 : index
    %3 = vector.load %arg3[%c0_3, %c0_4] : memref<512x128xf32, #tpu.memory_space<vmem>>, vector<512x128xf32>
    tpu.vector_store %arg3[%c0_3, %c0_4], %2 {strides = array<i32>} : memref<512x128xf32, #tpu.memory_space<vmem>>, vector<512x128xf32>,
    %cst_5 = arith.constant dense<0.000000e+00> : vector<128xf32>
    %4 = vector.multi_reduction <add>, %2, %cst_5 [0] : vector<512x128xf32> to vector<128xf32>
    %5 = vector.shape_cast %4 : vector<128xf32> to vector<1x128xf32>
    %6 = vector.shape_cast %5 : vector<1x128xf32> to vector<1x1x128xf32>
    %c0_6 = arith.constant 0 : index
    %c0_7 = arith.constant 0 : index
    %c0_8 = arith.constant 0 : index
    %7 = vector.load %arg4[%c0_6, %c0_7, %c0_8] : memref<1x1x128xf32, #tpu.memory_space<vmem>>, vector<1x1x128xf32>
    tpu.vector_store %arg4[%c0_6, %c0_7, %c0_8], %6 {strides = array<i32>} : memref<1x1x128xf32, #tpu.memory_space<vmem>>, vector<1x1x128xf32>,
    %8 = arith.mulf %2, %2 : vector<512x128xf32>
    %cst_9 = arith.constant dense<0.000000e+00> : vector<128xf32>
    %9 = vector.multi_reduction <add>, %8, %cst_9 [0] : vector<512x128xf32> to vector<128xf32>
    %10 = vector.shape_cast %9 : vector<128xf32> to vector<1x128xf32>
    %11 = vector.shape_cast %10 : vector<1x128xf32> to vector<1x1x128xf32>
    %c0_10 = arith.constant 0 : index
    %c0_11 = arith.constant 0 : index
    %c0_12 = arith.constant 0 : index
    %12 = vector.load %arg5[%c0_10, %c0_11, %c0_12] : memref<1x1x128xf32, #tpu.memory_space<vmem>>, vector<1x1x128xf32>
    tpu.vector_store %arg5[%c0_10, %c0_11, %c0_12], %11 {strides = array<i32>} : memref<1x1x128xf32, #tpu.memory_space<vmem>>, vector<1x1x128xf32>,
    return
  }
  func.func @transform_0(%arg0: i32) -> (i32, i32) {
    %c0_i32 = arith.constant 0 : i32
    %c0_i32_0 = arith.constant 0 : i32
    return %arg0, %c0_i32 : i32, i32
  }
  func.func @transform_1(%arg0: i32) -> (i32, i32) {
    %c0_i32 = arith.constant 0 : i32
    %c0_i32_0 = arith.constant 0 : i32
    %c0_i32_1 = arith.constant 0 : i32
    return %c0_i32, %c0_i32_0 : i32, i32
  }
  func.func @transform_2(%arg0: i32) -> (i32, i32) {
    %c0_i32 = arith.constant 0 : i32
    %c0_i32_0 = arith.constant 0 : i32
    return %arg0, %c0_i32 : i32, i32
  }
  func.func @transform_3(%arg0: i32) -> (i32, i32, i32) {
    %c0_i32 = arith.constant 0 : i32
    %c0_i32_0 = arith.constant 0 : i32
    %c0_i32_1 = arith.constant 0 : i32
    return %arg0, %c0_i32, %c0_i32_0 : i32, i32, i32
  }
  func.func @transform_4(%arg0: i32) -> (i32, i32, i32) {
    %c0_i32 = arith.constant 0 : i32
    %c0_i32_0 = arith.constant 0 : i32
    %c0_i32_1 = arith.constant 0 : i32
    return %arg0, %c0_i32, %c0_i32_0 : i32, i32, i32
  }
}

module attributes {stable_mosaic.version = 11 : i64} {
  func.func @_bn_relu_kernel(%arg0: i32, %arg1: memref<512x128xf32, #tpu.memory_space<vmem>>, %arg2: memref<1x128xf32, #tpu.memory_space<vmem>>, %arg3: memref<1x128xf32, #tpu.memory_space<vmem>>, %arg4: memref<512x128xf32, #tpu.memory_space<vmem>>) attributes {dimension_semantics = [#tpu.dimension_semantics<parallel>], iteration_bounds = array<i64: 1>, scalar_prefetch = 0 : i64, scratch_operands = 0 : i64, tpu.core_type = #tpu.core_type<tc>, window_params = [{transform_indices = @transform_0, window_bounds = array<i64: 512, 128>}, {pipeline_mode = #tpu.pipeline_mode<synchronous>, transform_indices = @transform_1, window_bounds = array<i64: 1, 128>}, {pipeline_mode = #tpu.pipeline_mode<synchronous>, transform_indices = @transform_2, window_bounds = array<i64: 1, 128>}, {transform_indices = @transform_3, window_bounds = array<i64: 512, 128>}]} {
    %c0 = arith.constant 0 : index
    %c0_0 = arith.constant 0 : index
    %0 = vector.load %arg1[%c0, %c0_0] : memref<512x128xf32, #tpu.memory_space<vmem>>, vector<512x128xf32>
    %c0_1 = arith.constant 0 : index
    %c0_2 = arith.constant 0 : index
    %1 = vector.load %arg2[%c0_1, %c0_2] : memref<1x128xf32, #tpu.memory_space<vmem>>, vector<1x128xf32>
    %2 = vector.broadcast %1 : vector<1x128xf32> to vector<512x128xf32>
    %3 = arith.mulf %0, %2 : vector<512x128xf32>
    %c0_3 = arith.constant 0 : index
    %c0_4 = arith.constant 0 : index
    %4 = vector.load %arg3[%c0_3, %c0_4] : memref<1x128xf32, #tpu.memory_space<vmem>>, vector<1x128xf32>
    %5 = vector.broadcast %4 : vector<1x128xf32> to vector<512x128xf32>
    %6 = arith.addf %3, %5 : vector<512x128xf32>
    %cst = arith.constant 0.000000e+00 : f32
    %7 = vector.broadcast %cst : f32 to vector<512x128xf32>
    %8 = arith.maximumf %6, %7 : vector<512x128xf32>
    %c0_5 = arith.constant 0 : index
    %c0_6 = arith.constant 0 : index
    %9 = vector.load %arg4[%c0_5, %c0_6] : memref<512x128xf32, #tpu.memory_space<vmem>>, vector<512x128xf32>
    tpu.vector_store %arg4[%c0_5, %c0_6], %8 {strides = array<i32>} : memref<512x128xf32, #tpu.memory_space<vmem>>, vector<512x128xf32>,
    return
  }
  func.func @transform_0(%arg0: i32) -> (i32, i32) {
    %c0_i32 = arith.constant 0 : i32
    %c0_i32_0 = arith.constant 0 : i32
    return %arg0, %c0_i32 : i32, i32
  }
  func.func @transform_1(%arg0: i32) -> (i32, i32) {
    %c0_i32 = arith.constant 0 : i32
    %c0_i32_0 = arith.constant 0 : i32
    %c0_i32_1 = arith.constant 0 : i32
    return %c0_i32, %c0_i32_0 : i32, i32
  }
  func.func @transform_2(%arg0: i32) -> (i32, i32) {
    %c0_i32 = arith.constant 0 : i32
    %c0_i32_0 = arith.constant 0 : i32
    %c0_i32_1 = arith.constant 0 : i32
    return %c0_i32, %c0_i32_0 : i32, i32
  }
  func.func @transform_3(%arg0: i32) -> (i32, i32) {
    %c0_i32 = arith.constant 0 : i32
    %c0_i32_0 = arith.constant 0 : i32
    return %arg0, %c0_i32 : i32, i32
  }
}

module attributes {stable_mosaic.version = 11 : i64} {
  func.func @kernel(%arg0: i32, %arg1: memref<512x128xbf16, #tpu.memory_space<vmem>>, %arg2: memref<128x128xbf16, #tpu.memory_space<vmem>>, %arg3: memref<512x128xf32, #tpu.memory_space<vmem>>) attributes {dimension_semantics = [#tpu.dimension_semantics<parallel>], iteration_bounds = array<i64: 4>, scalar_prefetch = 0 : i64, scratch_operands = 0 : i64, tpu.core_type = #tpu.core_type<tc>, window_params = [{transform_indices = @transform_0, window_bounds = array<i64: 512, 128>}, {pipeline_mode = #tpu.pipeline_mode<synchronous>, transform_indices = @transform_1, window_bounds = array<i64: 128, 128>}, {transform_indices = @transform_2, window_bounds = array<i64: 512, 128>}]} {
    %c0 = arith.constant 0 : index
    %c0_0 = arith.constant 0 : index
    %0 = vector.load %arg1[%c0, %c0_0] : memref<512x128xbf16, #tpu.memory_space<vmem>>, vector<512x128xbf16>
    %c0_1 = arith.constant 0 : index
    %c0_2 = arith.constant 0 : index
    %1 = vector.load %arg2[%c0_1, %c0_2] : memref<128x128xbf16, #tpu.memory_space<vmem>>, vector<128x128xbf16>
    %cst = arith.constant dense<0.000000e+00> : vector<512x128xf32>
    %2 = tpu.matmul %0, %1, %cst {dimension_numbers = #tpu.dot_dimension_numbers<[1], [0], [0], [1], [0, 0, 1, 1], [], []>} : vector<512x128xbf16>, vector<128x128xbf16>, vector<512x128xf32> -> vector<512x128xf32>
    %3 = math.tanh %2 : vector<512x128xf32>
    %c0_3 = arith.constant 0 : index
    %c0_4 = arith.constant 0 : index
    %4 = vector.load %arg3[%c0_3, %c0_4] : memref<512x128xf32, #tpu.memory_space<vmem>>, vector<512x128xf32>
    tpu.vector_store %arg3[%c0_3, %c0_4], %3 {strides = array<i32>} : memref<512x128xf32, #tpu.memory_space<vmem>>, vector<512x128xf32>,
    return
  }
  func.func @transform_0(%arg0: i32) -> (i32, i32) {
    %c0_i32 = arith.constant 0 : i32
    %c0_i32_0 = arith.constant 0 : i32
    return %arg0, %c0_i32 : i32, i32
  }
  func.func @transform_1(%arg0: i32) -> (i32, i32) {
    %c0_i32 = arith.constant 0 : i32
    %c0_i32_0 = arith.constant 0 : i32
    %c0_i32_1 = arith.constant 0 : i32
    return %c0_i32, %c0_i32_0 : i32, i32
  }
  func.func @transform_2(%arg0: i32) -> (i32, i32) {
    %c0_i32 = arith.constant 0 : i32
    %c0_i32_0 = arith.constant 0 : i32
    return %arg0, %c0_i32 : i32, i32
  }
}

</mosaic_0001>

<llo_original>
// kernel: generator_forward.31
$region0: #{generator_forward.31}
  #allocation0 [shape = 'u32[]', space=smem, size = 0x4, offset = 0x4, fixed_abs, tag = 'smem constant byte address 0x4 - core index']
  #allocation1 [shape = 'u32[72,128]{1,0:T(1,128)}', space=vmem, size = 0x9000, scoped, tag = 'internal scratch']
  %s0 = inlined_call_operand.vmem [shape: f32[32,128], index: 0, kind: input, shape index: {}]
  %s1 = inlined_call_operand.vmem [shape: f32[1,128], index: 1, kind: input, shape index: {}]
  %s2 = inlined_call_operand.vmem [shape: f32[1,128], index: 2, kind: input, shape index: {}]
  %s3 = inlined_call_operand.vmem [shape: f32[32,128], index: 3, kind: output, shape index: {}]
  %s4 = sld [smem:[#allocation0]]
  $region22: #{generator_forward.31} parent=0
    _
  %s6 = ssub.s32 1, %s4
  %s7 = scalar_select 0, %s6, %s4
  // Predicated region
  $region2: #{generator_forward.31} parent=0 // pred_check
    _
  $region3: #{generator_forward.31} parent=0 // pred_check_branch
    %9 = sbr.rel (0) target = $region5
  $region4: #{generator_forward.31} parent=0 // pred_region
    _
  $region5: #{generator_forward.31} parent=0 // pred_fallthru
    _
  // Predicated region
  $region6: #{generator_forward.31} parent=0 // pred_check
    _
  $region7: #{generator_forward.31} parent=0 // pred_check_branch
    %11 = sbr.rel (0) target = $region9
  $region8: #{generator_forward.31} parent=0 // pred_region
    _
  $region9: #{generator_forward.31} parent=0 // pred_fallthru
    _
  // Predicated region
  $region10: #{generator_forward.31} parent=0 // pred_check
    _
  $region11: #{generator_forward.31} parent=0 // pred_check_branch
    %13 = sbr.rel (0) target = $region13
  $region12: #{generator_forward.31} parent=0 // pred_region
    _
  $region13: #{generator_forward.31} parent=0 // pred_fallthru
    _
  %v14 = vld [vmem:[%s0] sm:$0xff]
  %v15 = vld [vmem:[%s0 + $0x8] sm:$0xff]
  %v16 = vld [vmem:[%s0 + $0x10] sm:$0xff]
  %v17 = vld [vmem:[%s0 + $0x18] sm:$0xff]
  %v18 = vld [vmem:[%s1] sm:$0x1]
  %v20 = vperm.slane %v18, 0
  %v22 = vmul.f32 %v14, %v20
  %v23 = vmul.f32 %v15, %v20
  %v24 = vmul.f32 %v16, %v20
  %v25 = vmul.f32 %v17, %v20
  %v26 = vld [vmem:[%s2] sm:$0x1]
  %v28 = vperm.slane %v26, 0
  %v30 = vadd.f32 %v22, %v28
  %v31 = vadd.f32 %v23, %v28
  %v32 = vadd.f32 %v24, %v28
  %v33 = vadd.f32 %v25, %v28
  %v34 = vmax.f32 %v30, 0.0
  %v35 = vmax.f32 %v31, 0.0
  %v36 = vmax.f32 %v32, 0.0
  %v37 = vmax.f32 %v33, 0.0
  %38 = vst [vmem:[%s3] sm:$0xff] %v34
  %39 = vst [vmem:[%s3 + $0x8] sm:$0xff] %v35
  %40 = vst [vmem:[%s3 + $0x10] sm:$0xff] %v36
  %41 = vst [vmem:[%s3 + $0x18] sm:$0xff] %v37
  // Predicated region
  $region14: #{generator_forward.31} parent=0 // pred_check
    _
  $region15: #{generator_forward.31} parent=0 // pred_check_branch
    %43 = sbr.rel (0) target = $region17
  $region16: #{generator_forward.31} parent=0 // pred_region
    _
  $region17: #{generator_forward.31} parent=0 // pred_fallthru
    _
  // Predicated region
  $region18: #{generator_forward.31} parent=0 // pred_check
    _
  $region19: #{generator_forward.31} parent=0 // pred_check_branch
    %45 = sbr.rel (0) target = $region21
  $region20: #{generator_forward.31} parent=0 // pred_region
    _
  $region21: #{generator_forward.31} parent=0 // pred_fallthru
    _

// kernel: generator_forward.30
$region0: #{generator_forward.30}
  #allocation0 [shape = 'u32[]', space=smem, size = 0x4, offset = 0x4, fixed_abs, tag = 'smem constant byte address 0x4 - core index']
  #allocation1 [shape = 'u32[72,128]{1,0:T(1,128)}', space=vmem, size = 0x9000, scoped, tag = 'internal scratch']
  %s0 = inlined_call_operand.vmem [shape: bf16[32,256], index: 0, kind: input, shape index: {}]
  %s1 = inlined_call_operand.vmem [shape: bf16[256,128], index: 1, kind: input, shape index: {}]
  %s2 = inlined_call_operand.vmem [shape: f32[32,128], index: 2, kind: output, shape index: {0}]
  %s3 = inlined_call_operand.vmem [shape: f32[1,1,128], index: 3, kind: output, shape index: {1}]
  %s4 = inlined_call_operand.vmem [shape: f32[1,1,128], index: 4, kind: output, shape index: {2}]
  %5 = xla_tuple %s2, %s3, %s4
  %s6 = sld [smem:[#allocation0]]
  $region34: #{generator_forward.30} parent=0
    _
  %s8 = ssub.s32 1, %s6
  %s9 = scalar_select 0, %s8, %s6
  // Predicated region
  $region2: #{generator_forward.30} parent=0 // pred_check
    _
  $region3: #{generator_forward.30} parent=0 // pred_check_branch
    %11 = sbr.rel (0) target = $region5
  $region4: #{generator_forward.30} parent=0 // pred_region
    _
  $region5: #{generator_forward.30} parent=0 // pred_fallthru
    _
  // Predicated region
  $region6: #{generator_forward.30} parent=0 // pred_check
    _
  $region7: #{generator_forward.30} parent=0 // pred_check_branch
    %13 = sbr.rel (0) target = $region9
  $region8: #{generator_forward.30} parent=0 // pred_region
    _
  $region9: #{generator_forward.30} parent=0 // pred_fallthru
    _
  %v14 = vld [vmem:[%s0] sm:$0xff]
  %v15 = vld [vmem:[%s0 + $0x8] sm:$0xff]
  %v16 = vld [vmem:[%s0 + $0x10] sm:$0xff]
  %v17 = vld [vmem:[%s0 + $0x18] sm:$0xff]
  %v18 = vld [vmem:[%s1] sm:$0xf]
  %v19 = vld [vmem:[%s1 + $0x4] sm:$0xf]
  %v20 = vld [vmem:[%s1 + $0x8] sm:$0xf]
  %v21 = vld [vmem:[%s1 + $0xc] sm:$0xf]
  %v22 = vld [vmem:[%s1 + $0x10] sm:$0xf]
  %v23 = vld [vmem:[%s1 + $0x14] sm:$0xf]
  %v24 = vld [vmem:[%s1 + $0x18] sm:$0xf]
  %v25 = vld [vmem:[%s1 + $0x1c] sm:$0xf]
  %v26 = vld [vmem:[%s1 + $0x20] sm:$0xf]
  %v27 = vld [vmem:[%s1 + $0x24] sm:$0xf]
  %v28 = vld [vmem:[%s1 + $0x28] sm:$0xf]
  %v29 = vld [vmem:[%s1 + $0x2c] sm:$0xf]
  %v30 = vld [vmem:[%s1 + $0x30] sm:$0xf]
  %v31 = vld [vmem:[%s1 + $0x34] sm:$0xf]
  %v32 = vld [vmem:[%s1 + $0x38] sm:$0xf]
  %v33 = vld [vmem:[%s1 + $0x3c] sm:$0xf]
  %v34 = vld [vmem:[%s1 + $0x40] sm:$0xf]
  %v35 = vld [vmem:[%s1 + $0x44] sm:$0xf]
  %v36 = vld [vmem:[%s1 + $0x48] sm:$0xf]
  %v37 = vld [vmem:[%s1 + $0x4c] sm:$0xf]
  %v38 = vld [vmem:[%s1 + $0x50] sm:$0xf]
  %v39 = vld [vmem:[%s1 + $0x54] sm:$0xf]
  %v40 = vld [vmem:[%s1 + $0x58] sm:$0xf]
  %v41 = vld [vmem:[%s1 + $0x5c] sm:$0xf]
  %v42 = vld [vmem:[%s1 + $0x60] sm:$0xf]
  %v43 = vld [vmem:[%s1 + $0x64] sm:$0xf]
  %v44 = vld [vmem:[%s1 + $0x68] sm:$0xf]
  %v45 = vld [vmem:[%s1 + $0x6c] sm:$0xf]
  %v46 = vld [vmem:[%s1 + $0x70] sm:$0xf]
  %v47 = vld [vmem:[%s1 + $0x74] sm:$0xf]
  %v48 = vld [vmem:[%s1 + $0x78] sm:$0xf]
  %v49 = vld [vmem:[%s1 + $0x7c] sm:$0xf]
  %v54 = vunpack.c.l.b16 %v14
  %v55 = vunpack.c.h.b16 %v14
  %v56 = vunpack.c.l.b16 %v15
  %v57 = vunpack.c.h.b16 %v15
  %v58 = vunpack.c.l.b16 %v16
  %v59 = vunpack.c.h.b16 %v16
  %v60 = vunpack.c.l.b16 %v17
  %v61 = vunpack.c.h.b16 %v17
  %v62 = vpack.c.b16 %v56, %v54
  %v63 = vpack.c.b16 %v57, %v55
  %v64 = vpack.c.b16 %v60, %v58
  %v65 = vpack.c.b16 %v61, %v59
  %v102 = vunpack.c.l.b16 %v18
  %v103 = vunpack.c.l.b16 %v19
  %v104 = vunpack.c.l.b16 %v20
  %v105 = vunpack.c.l.b16 %v21
  %v106 = vunpack.c.l.b16 %v22
  %v107 = vunpack.c.l.b16 %v23
  %v108 = vunpack.c.l.b16 %v24
  %v109 = vunpack.c.l.b16 %v25
  %v110 = vunpack.c.l.b16 %v26
  %v111 = vunpack.c.l.b16 %v27
  %v112 = vunpack.c.l.b16 %v28
  %v113 = vunpack.c.l.b16 %v29
  %v114 = vunpack.c.l.b16 %v30
  %v115 = vunpack.c.l.b16 %v31
  %v116 = vunpack.c.l.b16 %v32
  %v117 = vunpack.c.l.b16 %v33
  %v118 = vunpack.c.l.b16 %v34
  %v119 = vunpack.c.l.b16 %v35
  %v120 = vunpack.c.l.b16 %v36
  %v121 = vunpack.c.l.b16 %v37
  %v122 = vunpack.c.l.b16 %v38
  %v123 = vunpack.c.l.b16 %v39
  %v124 = vunpack.c.l.b16 %v40
  %v125 = vunpack.c.l.b16 %v41
  %v126 = vunpack.c.l.b16 %v42
  %v127 = vunpack.c.l.b16 %v43
  %v128 = vunpack.c.l.b16 %v44
  %v129 = vunpack.c.l.b16 %v45
  %v130 = vunpack.c.l.b16 %v46
  %v131 = vunpack.c.l.b16 %v47
  %v132 = vunpack.c.l.b16 %v48
  %v133 = vunpack.c.l.b16 %v49
  %v134 = vpack.c.b16 %v103, %v102
  %v135 = vpack.c.b16 %v105, %v104
  %v136 = vpack.c.b16 %v107, %v106
  %v137 = vpack.c.b16 %v109, %v108
  %v138 = vpack.c.b16 %v111, %v110
  %v139 = vpack.c.b16 %v113, %v112
  %v140 = vpack.c.b16 %v115, %v114
  %v141 = vpack.c.b16 %v117, %v116
  %v142 = vpack.c.b16 %v119, %v118
  %v143 = vpack.c.b16 %v121, %v120
  %v144 = vpack.c.b16 %v123, %v122
  %v145 = vpack.c.b16 %v125, %v124
  %v146 = vpack.c.b16 %v127, %v126
  %v147 = vpack.c.b16 %v129, %v128
  %v148 = vpack.c.b16 %v131, %v130
  %v149 = vpack.c.b16 %v133, %v132
  %166 = vmatpush.bf16.msra.mxu0 %v141
  %167 = vmatpush.bf16.msra.mxu0 %v140
  %168 = vmatpush.bf16.msra.mxu0 %v139
  %169 = vmatpush.bf16.msra.mxu0 %v138
  %170 = vmatpush.bf16.msra.mxu0 %v137
  %171 = vmatpush.bf16.msra.mxu0 %v136
  %172 = vmatpush.bf16.msra.mxu0 %v135
  %173 = vmatpush.bf16.msra.mxu0 %v134
  %174 = vmatmul.bf16.gmra.mxu0 %v62
  %v175 = vpop.f32.mrf.mxu0
  %v176 = vadd.f32 0.0, %v175
  %v177 = vpop.f32.mrf.mxu0
  %v178 = vadd.f32 0.0, %v177
  %179 = vmatmul.bf16.gmra.mxu0 %v64
  %v180 = vpop.f32.mrf.mxu0
  %v181 = vadd.f32 0.0, %v180
  %v182 = vpop.f32.mrf.mxu0
  %v183 = vadd.f32 0.0, %v182
  %184 = vdwg.mxu0
  %185 = vmatpush.bf16.msra.mxu0 %v149
  %186 = vmatpush.bf16.msra.mxu0 %v148
  %187 = vmatpush.bf16.msra.mxu0 %v147
  %188 = vmatpush.bf16.msra.mxu0 %v146
  %189 = vmatpush.bf16.msra.mxu0 %v145
  %190 = vmatpush.bf16.msra.mxu0 %v144
  %191 = vmatpush.bf16.msra.mxu0 %v143
  %192 = vmatpush.bf16.msra.mxu0 %v142
  %193 = vmatmul.bf16.gmra.mxu0 %v63
  %v194 = vpop.f32.mrf.mxu0
  %v195 = vadd.f32 %v176, %v194
  %v196 = vpop.f32.mrf.mxu0
  %v197 = vadd.f32 %v178, %v196
  %198 = vmatmul.bf16.gmra.mxu0 %v65
  %v199 = vpop.f32.mrf.mxu0
  %v200 = vadd.f32 %v181, %v199
  %v201 = vpop.f32.mrf.mxu0
  %v202 = vadd.f32 %v183, %v201
  %203 = vdwg.mxu0
  %204 = vst [vmem:[%s2] sm:$0xff] %v195
  %205 = vst [vmem:[%s2 + $0x8] sm:$0xff] %v197
  %206 = vst [vmem:[%s2 + $0x10] sm:$0xff] %v200
  %207 = vst [vmem:[%s2 + $0x18] sm:$0xff] %v202
  %v208 = vadd.f32 %v195, %v197
  %v209 = vadd.f32 %v208, %v200
  %v210 = vadd.f32 %v209, %v202
  %v211 = vrot.slane %v210, 4
  %v212 = vadd.f32 %v210, %v211
  %v213 = vrot.slane %v212, 2
  %v214 = vadd.f32 %v212, %v213
  %v215 = vrot.slane %v214, 1
  %v216 = vadd.f32 %v214, %v215
  %217 = vst [vmem:[%s3] sm:$0x1] %v216
  %v218 = vmul.f32 %v195, %v195
  %v219 = vmul.f32 %v197, %v197
  %v220 = vmul.f32 %v200, %v200
  %v221 = vmul.f32 %v202, %v202
  %v222 = vadd.f32 %v218, %v219
  %v223 = vadd.f32 %v222, %v220
  %v224 = vadd.f32 %v223, %v221
  %v225 = vrot.slane %v224, 4
  %v226 = vadd.f32 %v224, %v225
  %v227 = vrot.slane %v226, 2
  %v228 = vadd.f32 %v226, %v227
  %v229 = vrot.slane %v228, 1
  %v230 = vadd.f32 %v228, %v229
  %231 = vst [vmem:[%s4] sm:$0x1] %v230
  // Predicated region
  $region10: #{generator_forward.30} parent=0 // pred_check
    _
  $region11: #{generator_forward.30} parent=0 // pred_check_branch
    %233 = sbr.rel (0) target = $region13
  $region12: #{generator_forward.30} parent=0 // pred_region
    _
  $region13: #{generator_forward.30} parent=0 // pred_fallthru
    _
  // Predicated region
  $region14: #{generator_forward.30} parent=0 // pred_check
    _
  $region15: #{generator_forward.30} parent=0 // pred_check_branch
    %235 = sbr.rel (0) target = $region17
  $region16: #{generator_forward.30} parent=0 // pred_region
    _
  $region17: #{generator_forward.30} parent=0 // pred_fallthru
    _
  // Predicated region
  $region18: #{generator_forward.30} parent=0 // pred_check
    _
  $region19: #{generator_forward.30} parent=0 // pred_check_branch
    %237 = sbr.rel (0) target = $region21
  $region20: #{generator_forward.30} parent=0 // pred_region
    _
  $region21: #{generator_forward.30} parent=0 // pred_fallthru
    _
  // Predicated region
  $region22: #{generator_forward.30} parent=0 // pred_check
    _
  $region23: #{generator_forward.30} parent=0 // pred_check_branch
    %239 = sbr.rel (0) target = $region25
  $region24: #{generator_forward.30} parent=0 // pred_region
    _
  $region25: #{generator_forward.30} parent=0 // pred_fallthru
    _
  // Predicated region
  $region26: #{generator_forward.30} parent=0 // pred_check
    _
  $region27: #{generator_forward.30} parent=0 // pred_check_branch
    %241 = sbr.rel (0) target = $region29
  $region28: #{generator_forward.30} parent=0 // pred_region
    _
  $region29: #{generator_forward.30} parent=0 // pred_fallthru
    _
  // Predicated region
  $region30: #{generator_forward.30} parent=0 // pred_check
    _
  $region31: #{generator_forward.30} parent=0 // pred_check_branch
    %243 = sbr.rel (0) target = $region33
  $region32: #{generator_forward.30} parent=0 // pred_region
    _
  $region33: #{generator_forward.30} parent=0 // pred_fallthru
    _

// kernel: generator_forward.33
$region0: #{generator_forward.33}
  #allocation0 [shape = 'u32[]', space=smem, size = 0x4, offset = 0x4, fixed_abs, tag = 'smem constant byte address 0x4 - core index']
  #allocation1 [shape = 'u32[72,128]{1,0:T(1,128)}', space=vmem, size = 0x9000, scoped, tag = 'internal scratch']
  %s0 = inlined_call_operand.vmem [shape: bf16[32,512], index: 0, kind: input, shape index: {}]
  %s1 = inlined_call_operand.vmem [shape: bf16[512,128], index: 1, kind: input, shape index: {}]
  %s2 = inlined_call_operand.vmem [shape: f32[32,128], index: 2, kind: output, shape index: {0}]
  %s3 = inlined_call_operand.vmem [shape: f32[1,1,128], index: 3, kind: output, shape index: {1}]
  %s4 = inlined_call_operand.vmem [shape: f32[1,1,128], index: 4, kind: output, shape index: {2}]
  %5 = xla_tuple %s2, %s3, %s4
  %s6 = sld [smem:[#allocation0]]
  $region34: #{generator_forward.33} parent=0
    _
  %s8 = ssub.s32 1, %s6
  %s9 = scalar_select 0, %s8, %s6
  // Predicated region
  $region2: #{generator_forward.33} parent=0 // pred_check
    _
  $region3: #{generator_forward.33} parent=0 // pred_check_branch
    %11 = sbr.rel (0) target = $region5
  $region4: #{generator_forward.33} parent=0 // pred_region
    _
  $region5: #{generator_forward.33} parent=0 // pred_fallthru
    _
  // Predicated region
  $region6: #{generator_forward.33} parent=0 // pred_check
    _
  $region7: #{generator_forward.33} parent=0 // pred_check_branch
    %13 = sbr.rel (0) target = $region9
  $region8: #{generator_forward.33} parent=0 // pred_region
    _
  $region9: #{generator_forward.33} parent=0 // pred_fallthru
    _
  %v14 = vld [vmem:[%s0] sm:$0xff]
  %v15 = vld [vmem:[%s0 + $0x8] sm:$0xff]
  %v16 = vld [vmem:[%s0 + $0x10] sm:$0xff]
  %v17 = vld [vmem:[%s0 + $0x18] sm:$0xff]
  %v18 = vld [vmem:[%s0 + $0x20] sm:$0xff]
  %v19 = vld [vmem:[%s0 + $0x28] sm:$0xff]
  %v20 = vld [vmem:[%s0 + $0x30] sm:$0xff]
  %v21 = vld [vmem:[%s0 + $0x38] sm:$0xff]
  %v22 = vld [vmem:[%s1] sm:$0xf]
  %v23 = vld [vmem:[%s1 + $0x4] sm:$0xf]
  %v24 = vld [vmem:[%s1 + $0x8] sm:$0xf]
  %v25 = vld [vmem:[%s1 + $0xc] sm:$0xf]
  %v26 = vld [vmem:[%s1 + $0x10] sm:$0xf]
  %v27 = vld [vmem:[%s1 + $0x14] sm:$0xf]
  %v28 = vld [vmem:[%s1 + $0x18] sm:$0xf]
  %v29 = vld [vmem:[%s1 + $0x1c] sm:$0xf]
  %v30 = vld [vmem:[%s1 + $0x20] sm:$0xf]
  %v31 = vld [vmem:[%s1 + $0x24] sm:$0xf]
  %v32 = vld [vmem:[%s1 + $0x28] sm:$0xf]
  %v33 = vld [vmem:[%s1 + $0x2c] sm:$0xf]
  %v34 = vld [vmem:[%s1 + $0x30] sm:$0xf]
  %v35 = vld [vmem:[%s1 + $0x34] sm:$0xf]
  %v36 = vld [vmem:[%s1 + $0x38] sm:$0xf]
  %v37 = vld [vmem:[%s1 + $0x3c] sm:$0xf]
  %v38 = vld [vmem:[%s1 + $0x40] sm:$0xf]
  %v39 = vld [vmem:[%s1 + $0x44] sm:$0xf]
  %v40 = vld [vmem:[%s1 + $0x48] sm:$0xf]
  %v41 = vld [vmem:[%s1 + $0x4c] sm:$0xf]
  %v42 = vld [vmem:[%s1 + $0x50] sm:$0xf]
  %v43 = vld [vmem:[%s1 + $0x54] sm:$0xf]
  %v44 = vld [vmem:[%s1 + $0x58] sm:$0xf]
  %v45 = vld [vmem:[%s1 + $0x5c] sm:$0xf]
  %v46 = vld [vmem:[%s1 + $0x60] sm:$0xf]
  %v47 = vld [vmem:[%s1 + $0x64] sm:$0xf]
  %v48 = vld [vmem:[%s1 + $0x68] sm:$0xf]
  %v49 = vld [vmem:[%s1 + $0x6c] sm:$0xf]
  %v50 = vld [vmem:[%s1 + $0x70] sm:$0xf]
  %v51 = vld [vmem:[%s1 + $0x74] sm:$0xf]
  %v52 = vld [vmem:[%s1 + $0x78] sm:$0xf]
  %v53 = vld [vmem:[%s1 + $0x7c] sm:$0xf]
  %v54 = vld [vmem:[%s1 + $0x80] sm:$0xf]
  %v55 = vld [vmem:[%s1 + $0x84] sm:$0xf]
  %v56 = vld [vmem:[%s1 + $0x88] sm:$0xf]
  %v57 = vld [vmem:[%s1 + $0x8c] sm:$0xf]
  %v58 = vld [vmem:[%s1 + $0x90] sm:$0xf]
  %v59 = vld [vmem:[%s1 + $0x94] sm:$0xf]
  %v60 = vld [vmem:[%s1 + $0x98] sm:$0xf]
  %v61 = vld [vmem:[%s1 + $0x9c] sm:$0xf]
  %v62 = vld [vmem:[%s1 + $0xa0] sm:$0xf]
  %v63 = vld [vmem:[%s1 + $0xa4] sm:$0xf]
  %v64 = vld [vmem:[%s1 + $0xa8] sm:$0xf]
  %v65 = vld [vmem:[%s1 + $0xac] sm:$0xf]
  %v66 = vld [vmem:[%s1 + $0xb0] sm:$0xf]
  %v67 = vld [vmem:[%s1 + $0xb4] sm:$0xf]
  %v68 = vld [vmem:[%s1 + $0xb8] sm:$0xf]
  %v69 = vld [vmem:[%s1 + $0xbc] sm:$0xf]
  %v70 = vld [vmem:[%s1 + $0xc0] sm:$0xf]
  %v71 = vld [vmem:[%s1 + $0xc4] sm:$0xf]
  %v72 = vld [vmem:[%s1 + $0xc8] sm:$0xf]
  %v73 = vld [vmem:[%s1 + $0xcc] sm:$0xf]
  %v74 = vld [vmem:[%s1 + $0xd0] sm:$0xf]
  %v75 = vld [vmem:[%s1 + $0xd4] sm:$0xf]
  %v76 = vld [vmem:[%s1 + $0xd8] sm:$0xf]
  %v77 = vld [vmem:[%s1 + $0xdc] sm:$0xf]
  %v78 = vld [vmem:[%s1 + $0xe0] sm:$0xf]
  %v79 = vld [vmem:[%s1 + $0xe4] sm:$0xf]
  %v80 = vld [vmem:[%s1 + $0xe8] sm:$0xf]
  %v81 = vld [vmem:[%s1 + $0xec] sm:$0xf]
  %v82 = vld [vmem:[%s1 + $0xf0] sm:$0xf]
  %v83 = vld [vmem:[%s1 + $0xf4] sm:$0xf]
  %v84 = vld [vmem:[%s1 + $0xf8] sm:$0xf]
  %v85 = vld [vmem:[%s1 + $0xfc] sm:$0xf]
  %v94 = vunpack.c.l.b16 %v14
  %v95 = vunpack.c.h.b16 %v14
  %v96 = vunpack.c.l.b16 %v15
  %v97 = vunpack.c.h.b16 %v15
  %v98 = vunpack.c.l.b16 %v16
  %v99 = vunpack.c.h.b16 %v16
  %v100 = vunpack.c.l.b16 %v17
  %v101 = vunpack.c.h.b16 %v17
  %v102 = vunpack.c.l.b16 %v18
  %v103 = vunpack.c.h.b16 %v18
  %v104 = vunpack.c.l.b16 %v19
  %v105 = vunpack.c.h.b16 %v19
  %v106 = vunpack.c.l.b16 %v20
  %v107 = vunpack.c.h.b16 %v20
  %v108 = vunpack.c.l.b16 %v21
  %v109 = vunpack.c.h.b16 %v21
  %v110 = vpack.c.b16 %v98, %v94
  %v111 = vpack.c.b16 %v99, %v95
  %v112 = vpack.c.b16 %v100, %v96
  %v113 = vpack.c.b16 %v101, %v97
  %v114 = vpack.c.b16 %v106, %v102
  %v115 = vpack.c.b16 %v107, %v103
  %v116 = vpack.c.b16 %v108, %v104
  %v117 = vpack.c.b16 %v109, %v105
  %v190 = vunpack.c.l.b16 %v22
  %v191 = vunpack.c.l.b16 %v23
  %v192 = vunpack.c.l.b16 %v24
  %v193 = vunpack.c.l.b16 %v25
  %v194 = vunpack.c.l.b16 %v26
  %v195 = vunpack.c.l.b16 %v27
  %v196 = vunpack.c.l.b16 %v28
  %v197 = vunpack.c.l.b16 %v29
  %v198 = vunpack.c.l.b16 %v30
  %v199 = vunpack.c.l.b16 %v31
  %v200 = vunpack.c.l.b16 %v32
  %v201 = vunpack.c.l.b16 %v33
  %v202 = vunpack.c.l.b16 %v34
  %v203 = vunpack.c.l.b16 %v35
  %v204 = vunpack.c.l.b16 %v36
  %v205 = vunpack.c.l.b16 %v37
  %v206 = vunpack.c.l.b16 %v38
  %v207 = vunpack.c.l.b16 %v39
  %v208 = vunpack.c.l.b16 %v40
  %v209 = vunpack.c.l.b16 %v41
  %v210 = vunpack.c.l.b16 %v42
  %v211 = vunpack.c.l.b16 %v43
  %v212 = vunpack.c.l.b16 %v44
  %v213 = vunpack.c.l.b16 %v45
  %v214 = vunpack.c.l.b16 %v46
  %v215 = vunpack.c.l.b16 %v47
  %v216 = vunpack.c.l.b16 %v48
  %v217 = vunpack.c.l.b16 %v49
  %v218 = vunpack.c.l.b16 %v50
  %v219 = vunpack.c.l.b16 %v51
  %v220 = vunpack.c.l.b16 %v52
  %v221 = vunpack.c.l.b16 %v53
  %v222 = vunpack.c.l.b16 %v54
  %v223 = vunpack.c.l.b16 %v55
  %v224 = vunpack.c.l.b16 %v56
  %v225 = vunpack.c.l.b16 %v57
  %v226 = vunpack.c.l.b16 %v58
  %v227 = vunpack.c.l.b16 %v59
  %v228 = vunpack.c.l.b16 %v60
  %v229 = vunpack.c.l.b16 %v61
  %v230 = vunpack.c.l.b16 %v62
  %v231 = vunpack.c.l.b16 %v63
  %v232 = vunpack.c.l.b16 %v64
  %v233 = vunpack.c.l.b16 %v65
  %v234 = vunpack.c.l.b16 %v66
  %v235 = vunpack.c.l.b16 %v67
  %v236 = vunpack.c.l.b16 %v68
  %v237 = vunpack.c.l.b16 %v69
  %v238 = vunpack.c.l.b16 %v70
  %v239 = vunpack.c.l.b16 %v71
  %v240 = vunpack.c.l.b16 %v72
  %v241 = vunpack.c.l.b16 %v73
  %v242 = vunpack.c.l.b16 %v74
  %v243 = vunpack.c.l.b16 %v75
  %v244 = vunpack.c.l.b16 %v76
  %v245 = vunpack.c.l.b16 %v77
  %v246 = vunpack.c.l.b16 %v78
  %v247 = vunpack.c.l.b16 %v79
  %v248 = vunpack.c.l.b16 %v80
  %v249 = vunpack.c.l.b16 %v81
  %v250 = vunpack.c.l.b16 %v82
  %v251 = vunpack.c.l.b16 %v83
  %v252 = vunpack.c.l.b16 %v84
  %v253 = vunpack.c.l.b16 %v85
  %v254 = vpack.c.b16 %v191, %v190
  %v255 = vpack.c.b16 %v193, %v192
  %v256 = vpack.c.b16 %v195, %v194
  %v257 = vpack.c.b16 %v197, %v196
  %v258 = vpack.c.b16 %v199, %v198
  %v259 = vpack.c.b16 %v201, %v200
  %v260 = vpack.c.b16 %v203, %v202
  %v261 = vpack.c.b16 %v205, %v204
  %v262 = vpack.c.b16 %v207, %v206
  %v263 = vpack.c.b16 %v209, %v208
  %v264 = vpack.c.b16 %v211, %v210
  %v265 = vpack.c.b16 %v213, %v212
  %v266 = vpack.c.b16 %v215, %v214
  %v267 = vpack.c.b16 %v217, %v216
  %v268 = vpack.c.b16 %v219, %v218
  %v269 = vpack.c.b16 %v221, %v220
  %v270 = vpack.c.b16 %v223, %v222
  %v271 = vpack.c.b16 %v225, %v224
  %v272 = vpack.c.b16 %v227, %v226
  %v273 = vpack.c.b16 %v229, %v228
  %v274 = vpack.c.b16 %v231, %v230
  %v275 = vpack.c.b16 %v233, %v232
  %v276 = vpack.c.b16 %v235, %v234
  %v277 = vpack.c.b16 %v237, %v236
  %v278 = vpack.c.b16 %v239, %v238
  %v279 = vpack.c.b16 %v241, %v240
  %v280 = vpack.c.b16 %v243, %v242
  %v281 = vpack.c.b16 %v245, %v244
  %v282 = vpack.c.b16 %v247, %v246
  %v283 = vpack.c.b16 %v249, %v248
  %v284 = vpack.c.b16 %v251, %v250
  %v285 = vpack.c.b16 %v253, %v252
  %318 = vmatpush.bf16.msra.mxu0 %v261
  %319 = vmatpush.bf16.msra.mxu0 %v260
  %320 = vmatpush.bf16.msra.mxu0 %v259
  %321 = vmatpush.bf16.msra.mxu0 %v258
  %322 = vmatpush.bf16.msra.mxu0 %v257
  %323 = vmatpush.bf16.msra.mxu0 %v256
  %324 = vmatpush.bf16.msra.mxu0 %v255
  %325 = vmatpush.bf16.msra.mxu0 %v254
  %326 = vmatmul.bf16.gmra.mxu0 %v110
  %v327 = vpop.f32.mrf.mxu0
  %v328 = vadd.f32 0.0, %v327
  %v329 = vpop.f32.mrf.mxu0
  %v330 = vadd.f32 0.0, %v329
  %331 = vmatmul.bf16.gmra.mxu0 %v114
  %v332 = vpop.f32.mrf.mxu0
  %v333 = vadd.f32 0.0, %v332
  %v334 = vpop.f32.mrf.mxu0
  %v335 = vadd.f32 0.0, %v334
  %336 = vdwg.mxu0
  %337 = vmatpush.bf16.msra.mxu0 %v269
  %338 = vmatpush.bf16.msra.mxu0 %v268
  %339 = vmatpush.bf16.msra.mxu0 %v267
  %340 = vmatpush.bf16.msra.mxu0 %v266
  %341 = vmatpush.bf16.msra.mxu0 %v265
  %342 = vmatpush.bf16.msra.mxu0 %v264
  %343 = vmatpush.bf16.msra.mxu0 %v263
  %344 = vmatpush.bf16.msra.mxu0 %v262
  %345 = vmatmul.bf16.gmra.mxu0 %v111
  %v346 = vpop.f32.mrf.mxu0
  %v347 = vadd.f32 %v328, %v346
  %v348 = vpop.f32.mrf.mxu0
  %v349 = vadd.f32 %v330, %v348
  %350 = vmatmul.bf16.gmra.mxu0 %v115
  %v351 = vpop.f32.mrf.mxu0
  %v352 = vadd.f32 %v333, %v351
  %v353 = vpop.f32.mrf.mxu0
  %v354 = vadd.f32 %v335, %v353
  %355 = vdwg.mxu0
  %356 = vmatpush.bf16.msra.mxu0 %v277
  %357 = vmatpush.bf16.msra.mxu0 %v276
  %358 = vmatpush.bf16.msra.mxu0 %v275
  %359 = vmatpush.bf16.msra.mxu0 %v274
  %360 = vmatpush.bf16.msra.mxu0 %v273
  %361 = vmatpush.bf16.msra.mxu0 %v272
  %362 = vmatpush.bf16.msra.mxu0 %v271
  %363 = vmatpush.bf16.msra.mxu0 %v270
  %364 = vmatmul.bf16.gmra.mxu0 %v112
  %v365 = vpop.f32.mrf.mxu0
  %v366 = vadd.f32 %v347, %v365
  %v367 = vpop.f32.mrf.mxu0
  %v368 = vadd.f32 %v349, %v367
  %369 = vmatmul.bf16.gmra.mxu0 %v116
  %v370 = vpop.f32.mrf.mxu0
  %v371 = vadd.f32 %v352, %v370
  %v372 = vpop.f32.mrf.mxu0
  %v373 = vadd.f32 %v354, %v372
  %374 = vdwg.mxu0
  %375 = vmatpush.bf16.msra.mxu0 %v285
  %376 = vmatpush.bf16.msra.mxu0 %v284
  %377 = vmatpush.bf16.msra.mxu0 %v283
  %378 = vmatpush.bf16.msra.mxu0 %v282
  %379 = vmatpush.bf16.msra.mxu0 %v281
  %380 = vmatpush.bf16.msra.mxu0 %v280
  %381 = vmatpush.bf16.msra.mxu0 %v279
  %382 = vmatpush.bf16.msra.mxu0 %v278
  %383 = vmatmul.bf16.gmra.mxu0 %v113
  %v384 = vpop.f32.mrf.mxu0
  %v385 = vadd.f32 %v366, %v384
  %v386 = vpop.f32.mrf.mxu0
  %v387 = vadd.f32 %v368, %v386
  %388 = vmatmul.bf16.gmra.mxu0 %v117
  %v389 = vpop.f32.mrf.mxu0
  %v390 = vadd.f32 %v371, %v389
  %v391 = vpop.f32.mrf.mxu0
  %v392 = vadd.f32 %v373, %v391
  %393 = vdwg.mxu0
  %394 = vst [vmem:[%s2] sm:$0xff] %v385
  %395 = vst [vmem:[%s2 + $0x8] sm:$0xff] %v387
  %396 = vst [vmem:[%s2 + $0x10] sm:$0xff] %v390
  %397 = vst [vmem:[%s2 + $0x18] sm:$0xff] %v392
  %v398 = vadd.f32 %v385, %v387
  %v399 = vadd.f32 %v398, %v390
  %v400 = vadd.f32 %v399, %v392
  %v401 = vrot.slane %v400, 4
  %v402 = vadd.f32 %v400, %v401
  %v403 = vrot.slane %v402, 2
  %v404 = vadd.f32 %v402, %v403
  %v405 = vrot.slane %v404, 1
  %v406 = vadd.f32 %v404, %v405
  %407 = vst [vmem:[%s3] sm:$0x1] %v406
  %v408 = vmul.f32 %v385, %v385
  %v409 = vmul.f32 %v387, %v387
  %v410 = vmul.f32 %v390, %v390
  %v411 = vmul.f32 %v392, %v392
  %v412 = vadd.f32 %v408, %v409
  %v413 = vadd.f32 %v412, %v410
  %v414 = vadd.f32 %v413, %v411
  %v415 = vrot.slane %v414, 4
  %v416 = vadd.f32 %v414, %v415
  %v417 = vrot.slane %v416, 2
  %v418 = vadd.f32 %v416, %v417
  %v419 = vrot.slane %v418, 1
  %v420 = vadd.f32 %v418, %v419
  %421 = vst [vmem:[%s4] sm:$0x1] %v420
  // Predicated region
  $region10: #{generator_forward.33} parent=0 // pred_check
    _
  $region11: #{generator_forward.33} parent=0 // pred_check_branch
    %423 = sbr.rel (0) target = $region13
  $region12: #{generator_forward.33} parent=0 // pred_region
    _
  $region13: #{generator_forward.33} parent=0 // pred_fallthru
    _
  // Predicated region
  $region14: #{generator_forward.33} parent=0 // pred_check
    _
  $region15: #{generator_forward.33} parent=0 // pred_check_branch
    %425 = sbr.rel (0) target = $region17
  $region16: #{generator_forward.33} parent=0 // pred_region
    _
  $region17: #{generator_forward.33} parent=0 // pred_fallthru
    _
  // Predicated region
  $region18: #{generator_forward.33} parent=0 // pred_check
    _
  $region19: #{generator_forward.33} parent=0 // pred_check_branch
    %427 = sbr.rel (0) target = $region21
  $region20: #{generator_forward.33} parent=0 // pred_region
    _
  $region21: #{generator_forward.33} parent=0 // pred_fallthru
    _
  // Predicated region
  $region22: #{generator_forward.33} parent=0 // pred_check
    _
  $region23: #{generator_forward.33} parent=0 // pred_check_branch
    %429 = sbr.rel (0) target = $region25
  $region24: #{generator_forward.33} parent=0 // pred_region
    _
  $region25: #{generator_forward.33} parent=0 // pred_fallthru
    _
  // Predicated region
  $region26: #{generator_forward.33} parent=0 // pred_check
    _
  $region27: #{generator_forward.33} parent=0 // pred_check_branch
    %431 = sbr.rel (0) target = $region29
  $region28: #{generator_forward.33} parent=0 // pred_region
    _
  $region29: #{generator_forward.33} parent=0 // pred_fallthru
    _
  // Predicated region
  $region30: #{generator_forward.33} parent=0 // pred_check
    _
  $region31: #{generator_forward.33} parent=0 // pred_check_branch
    %433 = sbr.rel (0) target = $region33
  $region32: #{generator_forward.33} parent=0 // pred_region
    _
  $region33: #{generator_forward.33} parent=0 // pred_fallthru
    _

// kernel: generator_forward.41
$region0: #{generator_forward.41}
  #allocation0 [shape = 'u32[]', space=smem, size = 0x4, offset = 0x4, fixed_abs, tag = 'smem constant byte address 0x4 - core index']
  #allocation1 [shape = 'u32[72,128]{1,0:T(1,128)}', space=vmem, size = 0x9000, scoped, tag = 'internal scratch']
  %s0 = inlined_call_operand.vmem [shape: bf16[128,256], index: 0, kind: input, shape index: {}]
  %s1 = inlined_call_operand.vmem [shape: bf16[256,128], index: 1, kind: input, shape index: {}]
  %s2 = inlined_call_operand.vmem [shape: f32[128,128], index: 2, kind: output, shape index: {0}]
  %s3 = inlined_call_operand.vmem [shape: f32[1,1,128], index: 3, kind: output, shape index: {1}]
  %s4 = inlined_call_operand.vmem [shape: f32[1,1,128], index: 4, kind: output, shape index: {2}]
  %5 = xla_tuple %s2, %s3, %s4
  %s6 = sld [smem:[#allocation0]]
  $region34: #{generator_forward.41} parent=0
    _
  %s8 = ssub.s32 1, %s6
  %s9 = scalar_select 0, %s8, %s6
  // Predicated region
  $region2: #{generator_forward.41} parent=0 // pred_check
    _
  $region3: #{generator_forward.41} parent=0 // pred_check_branch
    %11 = sbr.rel (0) target = $region5
  $region4: #{generator_forward.41} parent=0 // pred_region
    _
  $region5: #{generator_forward.41} parent=0 // pred_fallthru
    _
  // Predicated region
  $region6: #{generator_forward.41} parent=0 // pred_check
    _
  $region7: #{generator_forward.41} parent=0 // pred_check_branch
    %13 = sbr.rel (0) target = $region9
  $region8: #{generator_forward.41} parent=0 // pred_region
    _
  $region9: #{generator_forward.41} parent=0 // pred_fallthru
    _
  %v14 = vld [vmem:[%s0] sm:$0xff]
  %v15 = vld [vmem:[%s0 + $0x8] sm:$0xff]
  %v16 = vld [vmem:[%s0 + $0x10] sm:$0xff]
  %v17 = vld [vmem:[%s0 + $0x18] sm:$0xff]
  %v18 = vld [vmem:[%s0 + $0x20] sm:$0xff]
  %v19 = vld [vmem:[%s0 + $0x28] sm:$0xff]
  %v20 = vld [vmem:[%s0 + $0x30] sm:$0xff]
  %v21 = vld [vmem:[%s0 + $0x38] sm:$0xff]
  %v22 = vld [vmem:[%s0 + $0x40] sm:$0xff]
  %v23 = vld [vmem:[%s0 + $0x48] sm:$0xff]
  %v24 = vld [vmem:[%s0 + $0x50] sm:$0xff]
  %v25 = vld [vmem:[%s0 + $0x58] sm:$0xff]
  %v26 = vld [vmem:[%s0 + $0x60] sm:$0xff]
  %v27 = vld [vmem:[%s0 + $0x68] sm:$0xff]
  %v28 = vld [vmem:[%s0 + $0x70] sm:$0xff]
  %v29 = vld [vmem:[%s0 + $0x78] sm:$0xff]
  %v30 = vld [vmem:[%s1] sm:$0xf]
  %v31 = vld [vmem:[%s1 + $0x4] sm:$0xf]
  %v32 = vld [vmem:[%s1 + $0x8] sm:$0xf]
  %v33 = vld [vmem:[%s1 + $0xc] sm:$0xf]
  %v34 = vld [vmem:[%s1 + $0x10] sm:$0xf]
  %v35 = vld [vmem:[%s1 + $0x14] sm:$0xf]
  %v36 = vld [vmem:[%s1 + $0x18] sm:$0xf]
  %v37 = vld [vmem:[%s1 + $0x1c] sm:$0xf]
  %v38 = vld [vmem:[%s1 + $0x20] sm:$0xf]
  %v39 = vld [vmem:[%s1 + $0x24] sm:$0xf]
  %v40 = vld [vmem:[%s1 + $0x28] sm:$0xf]
  %v41 = vld [vmem:[%s1 + $0x2c] sm:$0xf]
  %v42 = vld [vmem:[%s1 + $0x30] sm:$0xf]
  %v43 = vld [vmem:[%s1 + $0x34] sm:$0xf]
  %v44 = vld [vmem:[%s1 + $0x38] sm:$0xf]
  %v45 = vld [vmem:[%s1 + $0x3c] sm:$0xf]
  %v46 = vld [vmem:[%s1 + $0x40] sm:$0xf]
  %v47 = vld [vmem:[%s1 + $0x44] sm:$0xf]
  %v48 = vld [vmem:[%s1 + $0x48] sm:$0xf]
  %v49 = vld [vmem:[%s1 + $0x4c] sm:$0xf]
  %v50 = vld [vmem:[%s1 + $0x50] sm:$0xf]
  %v51 = vld [vmem:[%s1 + $0x54] sm:$0xf]
  %v52 = vld [vmem:[%s1 + $0x58] sm:$0xf]
  %v53 = vld [vmem:[%s1 + $0x5c] sm:$0xf]
  %v54 = vld [vmem:[%s1 + $0x60] sm:$0xf]
  %v55 = vld [vmem:[%s1 + $0x64] sm:$0xf]
  %v56 = vld [vmem:[%s1 + $0x68] sm:$0xf]
  %v57 = vld [vmem:[%s1 + $0x6c] sm:$0xf]
  %v58 = vld [vmem:[%s1 + $0x70] sm:$0xf]
  %v59 = vld [vmem:[%s1 + $0x74] sm:$0xf]
  %v60 = vld [vmem:[%s1 + $0x78] sm:$0xf]
  %v61 = vld [vmem:[%s1 + $0x7c] sm:$0xf]
  %v78 = vunpack.c.l.b16 %v14
  %v79 = vunpack.c.h.b16 %v14
  %v80 = vunpack.c.l.b16 %v15
  %v81 = vunpack.c.h.b16 %v15
  %v82 = vunpack.c.l.b16 %v16
  %v83 = vunpack.c.h.b16 %v16
  %v84 = vunpack.c.l.b16 %v17
  %v85 = vunpack.c.h.b16 %v17
  %v86 = vunpack.c.l.b16 %v18
  %v87 = vunpack.c.h.b16 %v18
  %v88 = vunpack.c.l.b16 %v19
  %v89 = vunpack.c.h.b16 %v19
  %v90 = vunpack.c.l.b16 %v20
  %v91 = vunpack.c.h.b16 %v20
  %v92 = vunpack.c.l.b16 %v21
  %v93 = vunpack.c.h.b16 %v21
  %v94 = vunpack.c.l.b16 %v22
  %v95 = vunpack.c.h.b16 %v22
  %v96 = vunpack.c.l.b16 %v23
  %v97 = vunpack.c.h.b16 %v23
  %v98 = vunpack.c.l.b16 %v24
  %v99 = vunpack.c.h.b16 %v24
  %v100 = vunpack.c.l.b16 %v25
  %v101 = vunpack.c.h.b16 %v25
  %v102 = vunpack.c.l.b16 %v26
  %v103 = vunpack.c.h.b16 %v26
  %v104 = vunpack.c.l.b16 %v27
  %v105 = vunpack.c.h.b16 %v27
  %v106 = vunpack.c.l.b16 %v28
  %v107 = vunpack.c.h.b16 %v28
  %v108 = vunpack.c.l.b16 %v29
  %v109 = vunpack.c.h.b16 %v29
  %v110 = vpack.c.b16 %v80, %v78
  %v111 = vpack.c.b16 %v81, %v79
  %v112 = vpack.c.b16 %v84, %v82
  %v113 = vpack.c.b16 %v85, %v83
  %v114 = vpack.c.b16 %v88, %v86
  %v115 = vpack.c.b16 %v89, %v87
  %v116 = vpack.c.b16 %v92, %v90
  %v117 = vpack.c.b16 %v93, %v91
  %v118 = vpack.c.b16 %v96, %v94
  %v119 = vpack.c.b16 %v97, %v95
  %v120 = vpack.c.b16 %v100, %v98
  %v121 = vpack.c.b16 %v101, %v99
  %v122 = vpack.c.b16 %v104, %v102
  %v123 = vpack.c.b16 %v105, %v103
  %v124 = vpack.c.b16 %v108, %v106
  %v125 = vpack.c.b16 %v109, %v107
  %v174 = vunpack.c.l.b16 %v30
  %v175 = vunpack.c.l.b16 %v31
  %v176 = vunpack.c.l.b16 %v32
  %v177 = vunpack.c.l.b16 %v33
  %v178 = vunpack.c.l.b16 %v34
  %v179 = vunpack.c.l.b16 %v35
  %v180 = vunpack.c.l.b16 %v36
  %v181 = vunpack.c.l.b16 %v37
  %v182 = vunpack.c.l.b16 %v38
  %v183 = vunpack.c.l.b16 %v39
  %v184 = vunpack.c.l.b16 %v40
  %v185 = vunpack.c.l.b16 %v41
  %v186 = vunpack.c.l.b16 %v42
  %v187 = vunpack.c.l.b16 %v43
  %v188 = vunpack.c.l.b16 %v44
  %v189 = vunpack.c.l.b16 %v45
  %v190 = vunpack.c.l.b16 %v46
  %v191 = vunpack.c.l.b16 %v47
  %v192 = vunpack.c.l.b16 %v48
  %v193 = vunpack.c.l.b16 %v49
  %v194 = vunpack.c.l.b16 %v50
  %v195 = vunpack.c.l.b16 %v51
  %v196 = vunpack.c.l.b16 %v52
  %v197 = vunpack.c.l.b16 %v53
  %v198 = vunpack.c.l.b16 %v54
  %v199 = vunpack.c.l.b16 %v55
  %v200 = vunpack.c.l.b16 %v56
  %v201 = vunpack.c.l.b16 %v57
  %v202 = vunpack.c.l.b16 %v58
  %v203 = vunpack.c.l.b16 %v59
  %v204 = vunpack.c.l.b16 %v60
  %v205 = vunpack.c.l.b16 %v61
  %v206 = vpack.c.b16 %v175, %v174
  %v207 = vpack.c.b16 %v177, %v176
  %v208 = vpack.c.b16 %v179, %v178
  %v209 = vpack.c.b16 %v181, %v180
  %v210 = vpack.c.b16 %v183, %v182
  %v211 = vpack.c.b16 %v185, %v184
  %v212 = vpack.c.b16 %v187, %v186
  %v213 = vpack.c.b16 %v189, %v188
  %v214 = vpack.c.b16 %v191, %v190
  %v215 = vpack.c.b16 %v193, %v192
  %v216 = vpack.c.b16 %v195, %v194
  %v217 = vpack.c.b16 %v197, %v196
  %v218 = vpack.c.b16 %v199, %v198
  %v219 = vpack.c.b16 %v201, %v200
  %v220 = vpack.c.b16 %v203, %v202
  %v221 = vpack.c.b16 %v205, %v204
  %238 = vmatpush.bf16.msra.mxu0 %v213
  %239 = vmatpush.bf16.msra.mxu0 %v212
  %240 = vmatpush.bf16.msra.mxu0 %v211
  %241 = vmatpush.bf16.msra.mxu0 %v210
  %242 = vmatpush.bf16.msra.mxu0 %v209
  %243 = vmatpush.bf16.msra.mxu0 %v208
  %244 = vmatpush.bf16.msra.mxu0 %v207
  %245 = vmatpush.bf16.msra.mxu0 %v206
  %246 = vmatmul.bf16.gmra.mxu0 %v110
  %v247 = vpop.f32.mrf.mxu0
  %v248 = vadd.f32 0.0, %v247
  %v249 = vpop.f32.mrf.mxu0
  %v250 = vadd.f32 0.0, %v249
  %251 = vmatmul.bf16.gmra.mxu0 %v112
  %v252 = vpop.f32.mrf.mxu0
  %v253 = vadd.f32 0.0, %v252
  %v254 = vpop.f32.mrf.mxu0
  %v255 = vadd.f32 0.0, %v254
  %256 = vmatmul.bf16.gmra.mxu0 %v114
  %v257 = vpop.f32.mrf.mxu0
  %v258 = vadd.f32 0.0, %v257
  %v259 = vpop.f32.mrf.mxu0
  %v260 = vadd.f32 0.0, %v259
  %261 = vmatmul.bf16.gmra.mxu0 %v116
  %v262 = vpop.f32.mrf.mxu0
  %v263 = vadd.f32 0.0, %v262
  %v264 = vpop.f32.mrf.mxu0
  %v265 = vadd.f32 0.0, %v264
  %266 = vmatmul.bf16.gmra.mxu0 %v118
  %v267 = vpop.f32.mrf.mxu0
  %v268 = vadd.f32 0.0, %v267
  %v269 = vpop.f32.mrf.mxu0
  %v270 = vadd.f32 0.0, %v269
  %271 = vmatmul.bf16.gmra.mxu0 %v120
  %v272 = vpop.f32.mrf.mxu0
  %v273 = vadd.f32 0.0, %v272
  %v274 = vpop.f32.mrf.mxu0
  %v275 = vadd.f32 0.0, %v274
  %276 = vmatmul.bf16.gmra.mxu0 %v122
  %v277 = vpop.f32.mrf.mxu0
  %v278 = vadd.f32 0.0, %v277
  %v279 = vpop.f32.mrf.mxu0
  %v280 = vadd.f32 0.0, %v279
  %281 = vmatmul.bf16.gmra.mxu0 %v124
  %v282 = vpop.f32.mrf.mxu0
  %v283 = vadd.f32 0.0, %v282
  %v284 = vpop.f32.mrf.mxu0
  %v285 = vadd.f32 0.0, %v284
  %286 = vdwg.mxu0
  %287 = vmatpush.bf16.msra.mxu0 %v221
  %288 = vmatpush.bf16.msra.mxu0 %v220
  %289 = vmatpush.bf16.msra.mxu0 %v219
  %290 = vmatpush.bf16.msra.mxu0 %v218
  %291 = vmatpush.bf16.msra.mxu0 %v217
  %292 = vmatpush.bf16.msra.mxu0 %v216
  %293 = vmatpush.bf16.msra.mxu0 %v215
  %294 = vmatpush.bf16.msra.mxu0 %v214
  %295 = vmatmul.bf16.gmra.mxu0 %v111
  %v296 = vpop.f32.mrf.mxu0
  %v297 = vadd.f32 %v248, %v296
  %v298 = vpop.f32.mrf.mxu0
  %v299 = vadd.f32 %v250, %v298
  %300 = vmatmul.bf16.gmra.mxu0 %v113
  %v301 = vpop.f32.mrf.mxu0
  %v302 = vadd.f32 %v253, %v301
  %v303 = vpop.f32.mrf.mxu0
  %v304 = vadd.f32 %v255, %v303
  %305 = vmatmul.bf16.gmra.mxu0 %v115
  %v306 = vpop.f32.mrf.mxu0
  %v307 = vadd.f32 %v258, %v306
  %v308 = vpop.f32.mrf.mxu0
  %v309 = vadd.f32 %v260, %v308
  %310 = vmatmul.bf16.gmra.mxu0 %v117
  %v311 = vpop.f32.mrf.mxu0
  %v312 = vadd.f32 %v263, %v311
  %v313 = vpop.f32.mrf.mxu0
  %v314 = vadd.f32 %v265, %v313
  %315 = vmatmul.bf16.gmra.mxu0 %v119
  %v316 = vpop.f32.mrf.mxu0
  %v317 = vadd.f32 %v268, %v316
  %v318 = vpop.f32.mrf.mxu0
  %v319 = vadd.f32 %v270, %v318
  %320 = vmatmul.bf16.gmra.mxu0 %v121
  %v321 = vpop.f32.mrf.mxu0
  %v322 = vadd.f32 %v273, %v321
  %v323 = vpop.f32.mrf.mxu0
  %v324 = vadd.f32 %v275, %v323
  %325 = vmatmul.bf16.gmra.mxu0 %v123
  %v326 = vpop.f32.mrf.mxu0
  %v327 = vadd.f32 %v278, %v326
  %v328 = vpop.f32.mrf.mxu0
  %v329 = vadd.f32 %v280, %v328
  %330 = vmatmul.bf16.gmra.mxu0 %v125
  %v331 = vpop.f32.mrf.mxu0
  %v332 = vadd.f32 %v283, %v331
  %v333 = vpop.f32.mrf.mxu0
  %v334 = vadd.f32 %v285, %v333
  %335 = vdwg.mxu0
  %336 = vst [vmem:[%s2] sm:$0xff] %v297
  %337 = vst [vmem:[%s2 + $0x8] sm:$0xff] %v299
  %338 = vst [vmem:[%s2 + $0x10] sm:$0xff] %v302
  %339 = vst [vmem:[%s2 + $0x18] sm:$0xff] %v304
  %340 = vst [vmem:[%s2 + $0x20] sm:$0xff] %v307
  %341 = vst [vmem:[%s2 + $0x28] sm:$0xff] %v309
  %342 = vst [vmem:[%s2 + $0x30] sm:$0xff] %v312
  %343 = vst [vmem:[%s2 + $0x38] sm:$0xff] %v314
  %344 = vst [vmem:[%s2 + $0x40] sm:$0xff] %v317
  %345 = vst [vmem:[%s2 + $0x48] sm:$0xff] %v319
  %346 = vst [vmem:[%s2 + $0x50] sm:$0xff] %v322
  %347 = vst [vmem:[%s2 + $0x58] sm:$0xff] %v324
  %348 = vst [vmem:[%s2 + $0x60] sm:$0xff] %v327
  %349 = vst [vmem:[%s2 + $0x68] sm:$0xff] %v329
  %350 = vst [vmem:[%s2 + $0x70] sm:$0xff] %v332
  %351 = vst [vmem:[%s2 + $0x78] sm:$0xff] %v334
  %v352 = vadd.f32 %v297, %v299
  %v353 = vadd.f32 %v352, %v302
  %v354 = vadd.f32 %v353, %v304
  %v355 = vadd.f32 %v354, %v307
  %v356 = vadd.f32 %v355, %v309
  %v357 = vadd.f32 %v356, %v312
  %v358 = vadd.f32 %v357, %v314
  %v359 = vadd.f32 %v358, %v317
  %v360 = vadd.f32 %v359, %v319
  %v361 = vadd.f32 %v360, %v322
  %v362 = vadd.f32 %v361, %v324
  %v363 = vadd.f32 %v362, %v327
  %v364 = vadd.f32 %v363, %v329
  %v365 = vadd.f32 %v364, %v332
  %v366 = vadd.f32 %v365, %v334
  %v367 = vrot.slane %v366, 4
  %v368 = vadd.f32 %v366, %v367
  %v369 = vrot.slane %v368, 2
  %v370 = vadd.f32 %v368, %v369
  %v371 = vrot.slane %v370, 1
  %v372 = vadd.f32 %v370, %v371
  %373 = vst [vmem:[%s3] sm:$0x1] %v372
  %v374 = vmul.f32 %v297, %v297
  %v375 = vmul.f32 %v299, %v299
  %v376 = vmul.f32 %v302, %v302
  %v377 = vmul.f32 %v304, %v304
  %v378 = vmul.f32 %v307, %v307
  %v379 = vmul.f32 %v309, %v309
  %v380 = vmul.f32 %v312, %v312
  %v381 = vmul.f32 %v314, %v314
  %v382 = vmul.f32 %v317, %v317
  %v383 = vmul.f32 %v319, %v319
  %v384 = vmul.f32 %v322, %v322
  %v385 = vmul.f32 %v324, %v324
  %v386 = vmul.f32 %v327, %v327
  %v387 = vmul.f32 %v329, %v329
  %v388 = vmul.f32 %v332, %v332
  %v389 = vmul.f32 %v334, %v334
  %v390 = vadd.f32 %v374, %v375
  %v391 = vadd.f32 %v390, %v376
  %v392 = vadd.f32 %v391, %v377
  %v393 = vadd.f32 %v392, %v378
  %v394 = vadd.f32 %v393, %v379
  %v395 = vadd.f32 %v394, %v380
  %v396 = vadd.f32 %v395, %v381
  %v397 = vadd.f32 %v396, %v382
  %v398 = vadd.f32 %v397, %v383
  %v399 = vadd.f32 %v398, %v384
  %v400 = vadd.f32 %v399, %v385
  %v401 = vadd.f32 %v400, %v386
  %v402 = vadd.f32 %v401, %v387
  %v403 = vadd.f32 %v402, %v388
  %v404 = vadd.f32 %v403, %v389
  %v405 = vrot.slane %v404, 4
  %v406 = vadd.f32 %v404, %v405
  %v407 = vrot.slane %v406, 2
  %v408 = vadd.f32 %v406, %v407
  %v409 = vrot.slane %v408, 1
  %v410 = vadd.f32 %v408, %v409
  %411 = vst [vmem:[%s4] sm:$0x1] %v410
  // Predicated region
  $region10: #{generator_forward.41} parent=0 // pred_check
    _
  $region11: #{generator_forward.41} parent=0 // pred_check_branch
    %413 = sbr.rel (0) target = $region13
  $region12: #{generator_forward.41} parent=0 // pred_region
    _
  $region13: #{generator_forward.41} parent=0 // pred_fallthru
    _
  // Predicated region
  $region14: #{generator_forward.41} parent=0 // pred_check
    _
  $region15: #{generator_forward.41} parent=0 // pred_check_branch
    %415 = sbr.rel (0) target = $region17
  $region16: #{generator_forward.41} parent=0 // pred_region
    _
  $region17: #{generator_forward.41} parent=0 // pred_fallthru
    _
  // Predicated region
  $region18: #{generator_forward.41} parent=0 // pred_check
    _
  $region19: #{generator_forward.41} parent=0 // pred_check_branch
    %417 = sbr.rel (0) target = $region21
  $region20: #{generator_forward.41} parent=0 // pred_region
    _
  $region21: #{generator_forward.41} parent=0 // pred_fallthru
    _
  // Predicated region
  $region22: #{generator_forward.41} parent=0 // pred_check
    _
  $region23: #{generator_forward.41} parent=0 // pred_check_branch
    %419 = sbr.rel (0) target = $region25
  $region24: #{generator_forward.41} parent=0 // pred_region
    _
  $region25: #{generator_forward.41} parent=0 // pred_fallthru
    _
  // Predicated region
  $region26: #{generator_forward.41} parent=0 // pred_check
    _
  $region27: #{generator_forward.41} parent=0 // pred_check_branch
    %421 = sbr.rel (0) target = $region29
  $region28: #{generator_forward.41} parent=0 // pred_region
    _
  $region29: #{generator_forward.41} parent=0 // pred_fallthru
    _
  // Predicated region
  $region30: #{generator_forward.41} parent=0 // pred_check
    _
  $region31: #{generator_forward.41} parent=0 // pred_check_branch
    %423 = sbr.rel (0) target = $region33
  $region32: #{generator_forward.41} parent=0 // pred_region
    _
  $region33: #{generator_forward.41} parent=0 // pred_fallthru
    _

// kernel: generator_forward.47
$region0: #{generator_forward.47}
  #allocation0 [shape = 'u32[]', space=smem, size = 0x4, offset = 0x4, fixed_abs, tag = 'smem constant byte address 0x4 - core index']
  #allocation1 [shape = 'u32[72,128]{1,0:T(1,128)}', space=vmem, size = 0x9000, scoped, tag = 'internal scratch']
  %s0 = inlined_call_operand.vmem [shape: f32[128,128], index: 0, kind: input, shape index: {}]
  %s1 = inlined_call_operand.vmem [shape: f32[1,128], index: 1, kind: input, shape index: {}]
  %s2 = inlined_call_operand.vmem [shape: f32[1,128], index: 2, kind: input, shape index: {}]
  %s3 = inlined_call_operand.vmem [shape: f32[128,128], index: 3, kind: output, shape index: {}]
  %s4 = sld [smem:[#allocation0]]
  $region22: #{generator_forward.47} parent=0
    _
  %s6 = ssub.s32 1, %s4
  %s7 = scalar_select 0, %s6, %s4
  // Predicated region
  $region2: #{generator_forward.47} parent=0 // pred_check
    _
  $region3: #{generator_forward.47} parent=0 // pred_check_branch
    %9 = sbr.rel (0) target = $region5
  $region4: #{generator_forward.47} parent=0 // pred_region
    _
  $region5: #{generator_forward.47} parent=0 // pred_fallthru
    _
  // Predicated region
  $region6: #{generator_forward.47} parent=0 // pred_check
    _
  $region7: #{generator_forward.47} parent=0 // pred_check_branch
    %11 = sbr.rel (0) target = $region9
  $region8: #{generator_forward.47} parent=0 // pred_region
    _
  $region9: #{generator_forward.47} parent=0 // pred_fallthru
    _
  // Predicated region
  $region10: #{generator_forward.47} parent=0 // pred_check
    _
  $region11: #{generator_forward.47} parent=0 // pred_check_branch
    %13 = sbr.rel (0) target = $region13
  $region12: #{generator_forward.47} parent=0 // pred_region
    _
  $region13: #{generator_forward.47} parent=0 // pred_fallthru
    _
  %v14 = vld [vmem:[%s0] sm:$0xff]
  %v15 = vld [vmem:[%s0 + $0x8] sm:$0xff]
  %v16 = vld [vmem:[%s0 + $0x10] sm:$0xff]
  %v17 = vld [vmem:[%s0 + $0x18] sm:$0xff]
  %v18 = vld [vmem:[%s0 + $0x20] sm:$0xff]
  %v19 = vld [vmem:[%s0 + $0x28] sm:$0xff]
  %v20 = vld [vmem:[%s0 + $0x30] sm:$0xff]
  %v21 = vld [vmem:[%s0 + $0x38] sm:$0xff]
  %v22 = vld [vmem:[%s0 + $0x40] sm:$0xff]
  %v23 = vld [vmem:[%s0 + $0x48] sm:$0xff]
  %v24 = vld [vmem:[%s0 + $0x50] sm:$0xff]
  %v25 = vld [vmem:[%s0 + $0x58] sm:$0xff]
  %v26 = vld [vmem:[%s0 + $0x60] sm:$0xff]
  %v27 = vld [vmem:[%s0 + $0x68] sm:$0xff]
  %v28 = vld [vmem:[%s0 + $0x70] sm:$0xff]
  %v29 = vld [vmem:[%s0 + $0x78] sm:$0xff]
  %v30 = vld [vmem:[%s1] sm:$0x1]
  %v32 = vperm.slane %v30, 0
  %v34 = vmul.f32 %v14, %v32
  %v35 = vmul.f32 %v15, %v32
  %v36 = vmul.f32 %v16, %v32
  %v37 = vmul.f32 %v17, %v32
  %v38 = vmul.f32 %v18, %v32
  %v39 = vmul.f32 %v19, %v32
  %v40 = vmul.f32 %v20, %v32
  %v41 = vmul.f32 %v21, %v32
  %v42 = vmul.f32 %v22, %v32
  %v43 = vmul.f32 %v23, %v32
  %v44 = vmul.f32 %v24, %v32
  %v45 = vmul.f32 %v25, %v32
  %v46 = vmul.f32 %v26, %v32
  %v47 = vmul.f32 %v27, %v32
  %v48 = vmul.f32 %v28, %v32
  %v49 = vmul.f32 %v29, %v32
  %v50 = vld [vmem:[%s2] sm:$0x1]
  %v52 = vperm.slane %v50, 0
  %v54 = vadd.f32 %v34, %v52
  %v55 = vadd.f32 %v35, %v52
  %v56 = vadd.f32 %v36, %v52
  %v57 = vadd.f32 %v37, %v52
  %v58 = vadd.f32 %v38, %v52
  %v59 = vadd.f32 %v39, %v52
  %v60 = vadd.f32 %v40, %v52
  %v61 = vadd.f32 %v41, %v52
  %v62 = vadd.f32 %v42, %v52
  %v63 = vadd.f32 %v43, %v52
  %v64 = vadd.f32 %v44, %v52
  %v65 = vadd.f32 %v45, %v52
  %v66 = vadd.f32 %v46, %v52
  %v67 = vadd.f32 %v47, %v52
  %v68 = vadd.f32 %v48, %v52
  %v69 = vadd.f32 %v49, %v52
  %v70 = vmax.f32 %v54, 0.0
  %v71 = vmax.f32 %v55, 0.0
  %v72 = vmax.f32 %v56, 0.0
  %v73 = vmax.f32 %v57, 0.0
  %v74 = vmax.f32 %v58, 0.0
  %v75 = vmax.f32 %v59, 0.0
  %v76 = vmax.f32 %v60, 0.0
  %v77 = vmax.f32 %v61, 0.0
  %v78 = vmax.f32 %v62, 0.0
  %v79 = vmax.f32 %v63, 0.0
  %v80 = vmax.f32 %v64, 0.0
  %v81 = vmax.f32 %v65, 0.0
  %v82 = vmax.f32 %v66, 0.0
  %v83 = vmax.f32 %v67, 0.0
  %v84 = vmax.f32 %v68, 0.0
  %v85 = vmax.f32 %v69, 0.0
  %86 = vst [vmem:[%s3] sm:$0xff] %v70
  %87 = vst [vmem:[%s3 + $0x8] sm:$0xff] %v71
  %88 = vst [vmem:[%s3 + $0x10] sm:$0xff] %v72
  %89 = vst [vmem:[%s3 + $0x18] sm:$0xff] %v73
  %90 = vst [vmem:[%s3 + $0x20] sm:$0xff] %v74
  %91 = vst [vmem:[%s3 + $0x28] sm:$0xff] %v75
  %92 = vst [vmem:[%s3 + $0x30] sm:$0xff] %v76
  %93 = vst [vmem:[%s3 + $0x38] sm:$0xff] %v77
  %94 = vst [vmem:[%s3 + $0x40] sm:$0xff] %v78
  %95 = vst [vmem:[%s3 + $0x48] sm:$0xff] %v79
  %96 = vst [vmem:[%s3 + $0x50] sm:$0xff] %v80
  %97 = vst [vmem:[%s3 + $0x58] sm:$0xff] %v81
  %98 = vst [vmem:[%s3 + $0x60] sm:$0xff] %v82
  %99 = vst [vmem:[%s3 + $0x68] sm:$0xff] %v83
  %100 = vst [vmem:[%s3 + $0x70] sm:$0xff] %v84
  %101 = vst [vmem:[%s3 + $0x78] sm:$0xff] %v85
  // Predicated region
  $region14: #{generator_forward.47} parent=0 // pred_check
    _
  $region15: #{generator_forward.47} parent=0 // pred_check_branch
    %103 = sbr.rel (0) target = $region17
  $region16: #{generator_forward.47} parent=0 // pred_region
    _
  $region17: #{generator_forward.47} parent=0 // pred_fallthru
    _
  // Predicated region
  $region18: #{generator_forward.47} parent=0 // pred_check
    _
  $region19: #{generator_forward.47} parent=0 // pred_check_branch
    %105 = sbr.rel (0) target = $region21
  $region20: #{generator_forward.47} parent=0 // pred_region
    _
  $region21: #{generator_forward.47} parent=0 // pred_fallthru
    _

// kernel: generator_forward.55
$region0: #{generator_forward.55}
  #allocation0 [shape = 'u32[]', space=smem, size = 0x4, offset = 0x4, fixed_abs, tag = 'smem constant byte address 0x4 - core index']
  #allocation1 [shape = 'u32[72,128]{1,0:T(1,128)}', space=vmem, size = 0x9000, scoped, tag = 'internal scratch']
  %s0 = inlined_call_operand.vmem [shape: f32[512,128], index: 0, kind: input, shape index: {}]
  %s1 = inlined_call_operand.vmem [shape: f32[1,128], index: 1, kind: input, shape index: {}]
  %s2 = inlined_call_operand.vmem [shape: f32[1,128], index: 2, kind: input, shape index: {}]
  %s3 = inlined_call_operand.vmem [shape: f32[512,128], index: 3, kind: output, shape index: {}]
  %s4 = sld [smem:[#allocation0]]
  $region22: #{generator_forward.55} parent=0
    _
  %s6 = ssub.s32 1, %s4
  %s7 = scalar_select 0, %s6, %s4
  // Predicated region
  $region2: #{generator_forward.55} parent=0 // pred_check
    _
  $region3: #{generator_forward.55} parent=0 // pred_check_branch
    %9 = sbr.rel (0) target = $region5
  $region4: #{generator_forward.55} parent=0 // pred_region
    _
  $region5: #{generator_forward.55} parent=0 // pred_fallthru
    _
  // Predicated region
  $region6: #{generator_forward.55} parent=0 // pred_check
    _
  $region7: #{generator_forward.55} parent=0 // pred_check_branch
    %11 = sbr.rel (0) target = $region9
  $region8: #{generator_forward.55} parent=0 // pred_region
    _
  $region9: #{generator_forward.55} parent=0 // pred_fallthru
    _
  // Predicated region
  $region10: #{generator_forward.55} parent=0 // pred_check
    _
  $region11: #{generator_forward.55} parent=0 // pred_check_branch
    %13 = sbr.rel (0) target = $region13
  $region12: #{generator_forward.55} parent=0 // pred_region
    _
  $region13: #{generator_forward.55} parent=0 // pred_fallthru
    _
  %v14 = vld [vmem:[%s0] sm:$0xff]
  %v15 = vld [vmem:[%s0 + $0x8] sm:$0xff]
  %v16 = vld [vmem:[%s0 + $0x10] sm:$0xff]
  %v17 = vld [vmem:[%s0 + $0x18] sm:$0xff]
  %v18 = vld [vmem:[%s0 + $0x20] sm:$0xff]
  %v19 = vld [vmem:[%s0 + $0x28] sm:$0xff]
  %v20 = vld [vmem:[%s0 + $0x30] sm:$0xff]
  %v21 = vld [vmem:[%s0 + $0x38] sm:$0xff]
  %v22 = vld [vmem:[%s0 + $0x40] sm:$0xff]
  %v23 = vld [vmem:[%s0 + $0x48] sm:$0xff]
  %v24 = vld [vmem:[%s0 + $0x50] sm:$0xff]
  %v25 = vld [vmem:[%s0 + $0x58] sm:$0xff]
  %v26 = vld [vmem:[%s0 + $0x60] sm:$0xff]
  %v27 = vld [vmem:[%s0 + $0x68] sm:$0xff]
  %v28 = vld [vmem:[%s0 + $0x70] sm:$0xff]
  %v29 = vld [vmem:[%s0 + $0x78] sm:$0xff]
  %v30 = vld [vmem:[%s0 + $0x80] sm:$0xff]
  %v31 = vld [vmem:[%s0 + $0x88] sm:$0xff]
  %v32 = vld [vmem:[%s0 + $0x90] sm:$0xff]
  %v33 = vld [vmem:[%s0 + $0x98] sm:$0xff]
  %v34 = vld [vmem:[%s0 + $0xa0] sm:$0xff]
  %v35 = vld [vmem:[%s0 + $0xa8] sm:$0xff]
  %v36 = vld [vmem:[%s0 + $0xb0] sm:$0xff]
  %v37 = vld [vmem:[%s0 + $0xb8] sm:$0xff]
  %v38 = vld [vmem:[%s0 + $0xc0] sm:$0xff]
  %v39 = vld [vmem:[%s0 + $0xc8] sm:$0xff]
  %v40 = vld [vmem:[%s0 + $0xd0] sm:$0xff]
  %v41 = vld [vmem:[%s0 + $0xd8] sm:$0xff]
  %v42 = vld [vmem:[%s0 + $0xe0] sm:$0xff]
  %v43 = vld [vmem:[%s0 + $0xe8] sm:$0xff]
  %v44 = vld [vmem:[%s0 + $0xf0] sm:$0xff]
  %v45 = vld [vmem:[%s0 + $0xf8] sm:$0xff]
  %v46 = vld [vmem:[%s0 + $0x100] sm:$0xff]
  %v47 = vld [vmem:[%s0 + $0x108] sm:$0xff]
  %v48 = vld [vmem:[%s0 + $0x110] sm:$0xff]
  %v49 = vld [vmem:[%s0 + $0x118] sm:$0xff]
  %v50 = vld [vmem:[%s0 + $0x120] sm:$0xff]
  %v51 = vld [vmem:[%s0 + $0x128] sm:$0xff]
  %v52 = vld [vmem:[%s0 + $0x130] sm:$0xff]
  %v53 = vld [vmem:[%s0 + $0x138] sm:$0xff]
  %v54 = vld [vmem:[%s0 + $0x140] sm:$0xff]
  %v55 = vld [vmem:[%s0 + $0x148] sm:$0xff]
  %v56 = vld [vmem:[%s0 + $0x150] sm:$0xff]
  %v57 = vld [vmem:[%s0 + $0x158] sm:$0xff]
  %v58 = vld [vmem:[%s0 + $0x160] sm:$0xff]
  %v59 = vld [vmem:[%s0 + $0x168] sm:$0xff]
  %v60 = vld [vmem:[%s0 + $0x170] sm:$0xff]
  %v61 = vld [vmem:[%s0 + $0x178] sm:$0xff]
  %v62 = vld [vmem:[%s0 + $0x180] sm:$0xff]
  %v63 = vld [vmem:[%s0 + $0x188] sm:$0xff]
  %v64 = vld [vmem:[%s0 + $0x190] sm:$0xff]
  %v65 = vld [vmem:[%s0 + $0x198] sm:$0xff]
  %v66 = vld [vmem:[%s0 + $0x1a0] sm:$0xff]
  %v67 = vld [vmem:[%s0 + $0x1a8] sm:$0xff]
  %v68 = vld [vmem:[%s0 + $0x1b0] sm:$0xff]
  %v69 = vld [vmem:[%s0 + $0x1b8] sm:$0xff]
  %v70 = vld [vmem:[%s0 + $0x1c0] sm:$0xff]
  %v71 = vld [vmem:[%s0 + $0x1c8] sm:$0xff]
  %v72 = vld [vmem:[%s0 + $0x1d0] sm:$0xff]
  %v73 = vld [vmem:[%s0 + $0x1d8] sm:$0xff]
  %v74 = vld [vmem:[%s0 + $0x1e0] sm:$0xff]
  %v75 = vld [vmem:[%s0 + $0x1e8] sm:$0xff]
  %v76 = vld [vmem:[%s0 + $0x1f0] sm:$0xff]
  %v77 = vld [vmem:[%s0 + $0x1f8] sm:$0xff]
  %v78 = vld [vmem:[%s1] sm:$0x1]
  %v80 = vperm.slane %v78, 0
  %v82 = vmul.f32 %v14, %v80
  %v83 = vmul.f32 %v15, %v80
  %v84 = vmul.f32 %v16, %v80
  %v85 = vmul.f32 %v17, %v80
  %v86 = vmul.f32 %v18, %v80
  %v87 = vmul.f32 %v19, %v80
  %v88 = vmul.f32 %v20, %v80
  %v89 = vmul.f32 %v21, %v80
  %v90 = vmul.f32 %v22, %v80
  %v91 = vmul.f32 %v23, %v80
  %v92 = vmul.f32 %v24, %v80
  %v93 = vmul.f32 %v25, %v80
  %v94 = vmul.f32 %v26, %v80
  %v95 = vmul.f32 %v27, %v80
  %v96 = vmul.f32 %v28, %v80
  %v97 = vmul.f32 %v29, %v80
  %v98 = vmul.f32 %v30, %v80
  %v99 = vmul.f32 %v31, %v80
  %v100 = vmul.f32 %v32, %v80
  %v101 = vmul.f32 %v33, %v80
  %v102 = vmul.f32 %v34, %v80
  %v103 = vmul.f32 %v35, %v80
  %v104 = vmul.f32 %v36, %v80
  %v105 = vmul.f32 %v37, %v80
  %v106 = vmul.f32 %v38, %v80
  %v107 = vmul.f32 %v39, %v80
  %v108 = vmul.f32 %v40, %v80
  %v109 = vmul.f32 %v41, %v80
  %v110 = vmul.f32 %v42, %v80
  %v111 = vmul.f32 %v43, %v80
  %v112 = vmul.f32 %v44, %v80
  %v113 = vmul.f32 %v45, %v80
  %v114 = vmul.f32 %v46, %v80
  %v115 = vmul.f32 %v47, %v80
  %v116 = vmul.f32 %v48, %v80
  %v117 = vmul.f32 %v49, %v80
  %v118 = vmul.f32 %v50, %v80
  %v119 = vmul.f32 %v51, %v80
  %v120 = vmul.f32 %v52, %v80
  %v121 = vmul.f32 %v53, %v80
  %v122 = vmul.f32 %v54, %v80
  %v123 = vmul.f32 %v55, %v80
  %v124 = vmul.f32 %v56, %v80
  %v125 = vmul.f32 %v57, %v80
  %v126 = vmul.f32 %v58, %v80
  %v127 = vmul.f32 %v59, %v80
  %v128 = vmul.f32 %v60, %v80
  %v129 = vmul.f32 %v61, %v80
  %v130 = vmul.f32 %v62, %v80
  %v131 = vmul.f32 %v63, %v80
  %v132 = vmul.f32 %v64, %v80
  %v133 = vmul.f32 %v65, %v80
  %v134 = vmul.f32 %v66, %v80
  %v135 = vmul.f32 %v67, %v80
  %v136 = vmul.f32 %v68, %v80
  %v137 = vmul.f32 %v69, %v80
  %v138 = vmul.f32 %v70, %v80
  %v139 = vmul.f32 %v71, %v80
  %v140 = vmul.f32 %v72, %v80
  %v141 = vmul.f32 %v73, %v80
  %v142 = vmul.f32 %v74, %v80
  %v143 = vmul.f32 %v75, %v80
  %v144 = vmul.f32 %v76, %v80
  %v145 = vmul.f32 %v77, %v80
  %v146 = vld [vmem:[%s2] sm:$0x1]
  %v148 = vperm.slane %v146, 0
  %v150 = vadd.f32 %v82, %v148
  %v151 = vadd.f32 %v83, %v148
  %v152 = vadd.f32 %v84, %v148
  %v153 = vadd.f32 %v85, %v148
  %v154 = vadd.f32 %v86, %v148
  %v155 = vadd.f32 %v87, %v148
  %v156 = vadd.f32 %v88, %v148
  %v157 = vadd.f32 %v89, %v148
  %v158 = vadd.f32 %v90, %v148
  %v159 = vadd.f32 %v91, %v148
  %v160 = vadd.f32 %v92, %v148
  %v161 = vadd.f32 %v93, %v148
  %v162 = vadd.f32 %v94, %v148
  %v163 = vadd.f32 %v95, %v148
  %v164 = vadd.f32 %v96, %v148
  %v165 = vadd.f32 %v97, %v148
  %v166 = vadd.f32 %v98, %v148
  %v167 = vadd.f32 %v99, %v148
  %v168 = vadd.f32 %v100, %v148
  %v169 = vadd.f32 %v101, %v148
  %v170 = vadd.f32 %v102, %v148
  %v171 = vadd.f32 %v103, %v148
  %v172 = vadd.f32 %v104, %v148
  %v173 = vadd.f32 %v105, %v148
  %v174 = vadd.f32 %v106, %v148
  %v175 = vadd.f32 %v107, %v148
  %v176 = vadd.f32 %v108, %v148
  %v177 = vadd.f32 %v109, %v148
  %v178 = vadd.f32 %v110, %v148
  %v179 = vadd.f32 %v111, %v148
  %v180 = vadd.f32 %v112, %v148
  %v181 = vadd.f32 %v113, %v148
  %v182 = vadd.f32 %v114, %v148
  %v183 = vadd.f32 %v115, %v148
  %v184 = vadd.f32 %v116, %v148
  %v185 = vadd.f32 %v117, %v148
  %v186 = vadd.f32 %v118, %v148
  %v187 = vadd.f32 %v119, %v148
  %v188 = vadd.f32 %v120, %v148
  %v189 = vadd.f32 %v121, %v148
  %v190 = vadd.f32 %v122, %v148
  %v191 = vadd.f32 %v123, %v148
  %v192 = vadd.f32 %v124, %v148
  %v193 = vadd.f32 %v125, %v148
  %v194 = vadd.f32 %v126, %v148
  %v195 = vadd.f32 %v127, %v148
  %v196 = vadd.f32 %v128, %v148
  %v197 = vadd.f32 %v129, %v148
  %v198 = vadd.f32 %v130, %v148
  %v199 = vadd.f32 %v131, %v148
  %v200 = vadd.f32 %v132, %v148
  %v201 = vadd.f32 %v133, %v148
  %v202 = vadd.f32 %v134, %v148
  %v203 = vadd.f32 %v135, %v148
  %v204 = vadd.f32 %v136, %v148
  %v205 = vadd.f32 %v137, %v148
  %v206 = vadd.f32 %v138, %v148
  %v207 = vadd.f32 %v139, %v148
  %v208 = vadd.f32 %v140, %v148
  %v209 = vadd.f32 %v141, %v148
  %v210 = vadd.f32 %v142, %v148
  %v211 = vadd.f32 %v143, %v148
  %v212 = vadd.f32 %v144, %v148
  %v213 = vadd.f32 %v145, %v148
  %v214 = vmax.f32 %v150, 0.0
  %v215 = vmax.f32 %v151, 0.0
  %v216 = vmax.f32 %v152, 0.0
  %v217 = vmax.f32 %v153, 0.0
  %v218 = vmax.f32 %v154, 0.0
  %v219 = vmax.f32 %v155, 0.0
  %v220 = vmax.f32 %v156, 0.0
  %v221 = vmax.f32 %v157, 0.0
  %v222 = vmax.f32 %v158, 0.0
  %v223 = vmax.f32 %v159, 0.0
  %v224 = vmax.f32 %v160, 0.0
  %v225 = vmax.f32 %v161, 0.0
  %v226 = vmax.f32 %v162, 0.0
  %v227 = vmax.f32 %v163, 0.0
  %v228 = vmax.f32 %v164, 0.0
  %v229 = vmax.f32 %v165, 0.0
  %v230 = vmax.f32 %v166, 0.0
  %v231 = vmax.f32 %v167, 0.0
  %v232 = vmax.f32 %v168, 0.0
  %v233 = vmax.f32 %v169, 0.0
  %v234 = vmax.f32 %v170, 0.0
  %v235 = vmax.f32 %v171, 0.0
  %v236 = vmax.f32 %v172, 0.0
  %v237 = vmax.f32 %v173, 0.0
  %v238 = vmax.f32 %v174, 0.0
  %v239 = vmax.f32 %v175, 0.0
  %v240 = vmax.f32 %v176, 0.0
  %v241 = vmax.f32 %v177, 0.0
  %v242 = vmax.f32 %v178, 0.0
  %v243 = vmax.f32 %v179, 0.0
  %v244 = vmax.f32 %v180, 0.0
  %v245 = vmax.f32 %v181, 0.0
  %v246 = vmax.f32 %v182, 0.0
  %v247 = vmax.f32 %v183, 0.0
  %v248 = vmax.f32 %v184, 0.0
  %v249 = vmax.f32 %v185, 0.0
  %v250 = vmax.f32 %v186, 0.0
  %v251 = vmax.f32 %v187, 0.0
  %v252 = vmax.f32 %v188, 0.0
  %v253 = vmax.f32 %v189, 0.0
  %v254 = vmax.f32 %v190, 0.0
  %v255 = vmax.f32 %v191, 0.0
  %v256 = vmax.f32 %v192, 0.0
  %v257 = vmax.f32 %v193, 0.0
  %v258 = vmax.f32 %v194, 0.0
  %v259 = vmax.f32 %v195, 0.0
  %v260 = vmax.f32 %v196, 0.0
  %v261 = vmax.f32 %v197, 0.0
  %v262 = vmax.f32 %v198, 0.0
  %v263 = vmax.f32 %v199, 0.0
  %v264 = vmax.f32 %v200, 0.0
  %v265 = vmax.f32 %v201, 0.0
  %v266 = vmax.f32 %v202, 0.0
  %v267 = vmax.f32 %v203, 0.0
  %v268 = vmax.f32 %v204, 0.0
  %v269 = vmax.f32 %v205, 0.0
  %v270 = vmax.f32 %v206, 0.0
  %v271 = vmax.f32 %v207, 0.0
  %v272 = vmax.f32 %v208, 0.0
  %v273 = vmax.f32 %v209, 0.0
  %v274 = vmax.f32 %v210, 0.0
  %v275 = vmax.f32 %v211, 0.0
  %v276 = vmax.f32 %v212, 0.0
  %v277 = vmax.f32 %v213, 0.0
  %278 = vst [vmem:[%s3] sm:$0xff] %v214
  %279 = vst [vmem:[%s3 + $0x8] sm:$0xff] %v215
  %280 = vst [vmem:[%s3 + $0x10] sm:$0xff] %v216
  %281 = vst [vmem:[%s3 + $0x18] sm:$0xff] %v217
  %282 = vst [vmem:[%s3 + $0x20] sm:$0xff] %v218
  %283 = vst [vmem:[%s3 + $0x28] sm:$0xff] %v219
  %284 = vst [vmem:[%s3 + $0x30] sm:$0xff] %v220
  %285 = vst [vmem:[%s3 + $0x38] sm:$0xff] %v221
  %286 = vst [vmem:[%s3 + $0x40] sm:$0xff] %v222
  %287 = vst [vmem:[%s3 + $0x48] sm:$0xff] %v223
  %288 = vst [vmem:[%s3 + $0x50] sm:$0xff] %v224
  %289 = vst [vmem:[%s3 + $0x58] sm:$0xff] %v225
  %290 = vst [vmem:[%s3 + $0x60] sm:$0xff] %v226
  %291 = vst [vmem:[%s3 + $0x68] sm:$0xff] %v227
  %292 = vst [vmem:[%s3 + $0x70] sm:$0xff] %v228
  %293 = vst [vmem:[%s3 + $0x78] sm:$0xff] %v229
  %294 = vst [vmem:[%s3 + $0x80] sm:$0xff] %v230
  %295 = vst [vmem:[%s3 + $0x88] sm:$0xff] %v231
  %296 = vst [vmem:[%s3 + $0x90] sm:$0xff] %v232
  %297 = vst [vmem:[%s3 + $0x98] sm:$0xff] %v233
  %298 = vst [vmem:[%s3 + $0xa0] sm:$0xff] %v234
  %299 = vst [vmem:[%s3 + $0xa8] sm:$0xff] %v235
  %300 = vst [vmem:[%s3 + $0xb0] sm:$0xff] %v236
  %301 = vst [vmem:[%s3 + $0xb8] sm:$0xff] %v237
  %302 = vst [vmem:[%s3 + $0xc0] sm:$0xff] %v238
  %303 = vst [vmem:[%s3 + $0xc8] sm:$0xff] %v239
  %304 = vst [vmem:[%s3 + $0xd0] sm:$0xff] %v240
  %305 = vst [vmem:[%s3 + $0xd8] sm:$0xff] %v241
  %306 = vst [vmem:[%s3 + $0xe0] sm:$0xff] %v242
  %307 = vst [vmem:[%s3 + $0xe8] sm:$0xff] %v243
  %308 = vst [vmem:[%s3 + $0xf0] sm:$0xff] %v244
  %309 = vst [vmem:[%s3 + $0xf8] sm:$0xff] %v245
  %310 = vst [vmem:[%s3 + $0x100] sm:$0xff] %v246
  %311 = vst [vmem:[%s3 + $0x108] sm:$0xff] %v247
  %312 = vst [vmem:[%s3 + $0x110] sm:$0xff] %v248
  %313 = vst [vmem:[%s3 + $0x118] sm:$0xff] %v249
  %314 = vst [vmem:[%s3 + $0x120] sm:$0xff] %v250
  %315 = vst [vmem:[%s3 + $0x128] sm:$0xff] %v251
  %316 = vst [vmem:[%s3 + $0x130] sm:$0xff] %v252
  %317 = vst [vmem:[%s3 + $0x138] sm:$0xff] %v253
  %318 = vst [vmem:[%s3 + $0x140] sm:$0xff] %v254
  %319 = vst [vmem:[%s3 + $0x148] sm:$0xff] %v255
  %320 = vst [vmem:[%s3 + $0x150] sm:$0xff] %v256
  %321 = vst [vmem:[%s3 + $0x158] sm:$0xff] %v257
  %322 = vst [vmem:[%s3 + $0x160] sm:$0xff] %v258
  %323 = vst [vmem:[%s3 + $0x168] sm:$0xff] %v259
  %324 = vst [vmem:[%s3 + $0x170] sm:$0xff] %v260
  %325 = vst [vmem:[%s3 + $0x178] sm:$0xff] %v261
  %326 = vst [vmem:[%s3 + $0x180] sm:$0xff] %v262
  %327 = vst [vmem:[%s3 + $0x188] sm:$0xff] %v263
  %328 = vst [vmem:[%s3 + $0x190] sm:$0xff] %v264
  %329 = vst [vmem:[%s3 + $0x198] sm:$0xff] %v265
  %330 = vst [vmem:[%s3 + $0x1a0] sm:$0xff] %v266
  %331 = vst [vmem:[%s3 + $0x1a8] sm:$0xff] %v267
  %332 = vst [vmem:[%s3 + $0x1b0] sm:$0xff] %v268
  %333 = vst [vmem:[%s3 + $0x1b8] sm:$0xff] %v269
  %334 = vst [vmem:[%s3 + $0x1c0] sm:$0xff] %v270
  %335 = vst [vmem:[%s3 + $0x1c8] sm:$0xff] %v271
  %336 = vst [vmem:[%s3 + $0x1d0] sm:$0xff] %v272
  %337 = vst [vmem:[%s3 + $0x1d8] sm:$0xff] %v273
  %338 = vst [vmem:[%s3 + $0x1e0] sm:$0xff] %v274
  %339 = vst [vmem:[%s3 + $0x1e8] sm:$0xff] %v275
  %340 = vst [vmem:[%s3 + $0x1f0] sm:$0xff] %v276
  %341 = vst [vmem:[%s3 + $0x1f8] sm:$0xff] %v277
  // Predicated region
  $region14: #{generator_forward.55} parent=0 // pred_check
    _
  $region15: #{generator_forward.55} parent=0 // pred_check_branch
    %343 = sbr.rel (0) target = $region17
  $region16: #{generator_forward.55} parent=0 // pred_region
    _
  $region17: #{generator_forward.55} parent=0 // pred_fallthru
    _
  // Predicated region
  $region18: #{generator_forward.55} parent=0 // pred_check
    _
  $region19: #{generator_forward.55} parent=0 // pred_check_branch
    %345 = sbr.rel (0) target = $region21
  $region20: #{generator_forward.55} parent=0 // pred_region
    _
  $region21: #{generator_forward.55} parent=0 // pred_fallthru
    _

// kernel: generator_forward.49
$region0: #{generator_forward.49}
  #allocation0 [shape = 'u32[]', space=smem, size = 0x4, offset = 0x4, fixed_abs, tag = 'smem constant byte address 0x4 - core index']
  #allocation1 [shape = 'u32[72,128]{1,0:T(1,128)}', space=vmem, size = 0x9000, scoped, tag = 'internal scratch']
  %s0 = inlined_call_operand.vmem [shape: bf16[512,128], index: 0, kind: input, shape index: {}]
  %s1 = inlined_call_operand.vmem [shape: bf16[128,128], index: 1, kind: input, shape index: {}]
  %s2 = inlined_call_operand.vmem [shape: f32[512,128], index: 2, kind: output, shape index: {0}]
  %s3 = inlined_call_operand.vmem [shape: f32[1,1,128], index: 3, kind: output, shape index: {1}]
  %s4 = inlined_call_operand.vmem [shape: f32[1,1,128], index: 4, kind: output, shape index: {2}]
  %5 = xla_tuple %s2, %s3, %s4
  %s6 = sld [smem:[#allocation0]]
  $region34: #{generator_forward.49} parent=0
    _
  %s8 = ssub.s32 1, %s6
  %s9 = scalar_select 0, %s8, %s6
  // Predicated region
  $region2: #{generator_forward.49} parent=0 // pred_check
    _
  $region3: #{generator_forward.49} parent=0 // pred_check_branch
    %11 = sbr.rel (0) target = $region5
  $region4: #{generator_forward.49} parent=0 // pred_region
    _
  $region5: #{generator_forward.49} parent=0 // pred_fallthru
    _
  // Predicated region
  $region6: #{generator_forward.49} parent=0 // pred_check
    _
  $region7: #{generator_forward.49} parent=0 // pred_check_branch
    %13 = sbr.rel (0) target = $region9
  $region8: #{generator_forward.49} parent=0 // pred_region
    _
  $region9: #{generator_forward.49} parent=0 // pred_fallthru
    _
  %v14 = vld [vmem:[%s0] sm:$0xf]
  %v15 = vld [vmem:[%s0 + $0x4] sm:$0xf]
  %v16 = vld [vmem:[%s0 + $0x8] sm:$0xf]
  %v17 = vld [vmem:[%s0 + $0xc] sm:$0xf]
  %v18 = vld [vmem:[%s0 + $0x10] sm:$0xf]
  %v19 = vld [vmem:[%s0 + $0x14] sm:$0xf]
  %v20 = vld [vmem:[%s0 + $0x18] sm:$0xf]
  %v21 = vld [vmem:[%s0 + $0x1c] sm:$0xf]
  %v22 = vld [vmem:[%s0 + $0x20] sm:$0xf]
  %v23 = vld [vmem:[%s0 + $0x24] sm:$0xf]
  %v24 = vld [vmem:[%s0 + $0x28] sm:$0xf]
  %v25 = vld [vmem:[%s0 + $0x2c] sm:$0xf]
  %v26 = vld [vmem:[%s0 + $0x30] sm:$0xf]
  %v27 = vld [vmem:[%s0 + $0x34] sm:$0xf]
  %v28 = vld [vmem:[%s0 + $0x38] sm:$0xf]
  %v29 = vld [vmem:[%s0 + $0x3c] sm:$0xf]
  %v30 = vld [vmem:[%s0 + $0x40] sm:$0xf]
  %v31 = vld [vmem:[%s0 + $0x44] sm:$0xf]
  %v32 = vld [vmem:[%s0 + $0x48] sm:$0xf]
  %v33 = vld [vmem:[%s0 + $0x4c] sm:$0xf]
  %v34 = vld [vmem:[%s0 + $0x50] sm:$0xf]
  %v35 = vld [vmem:[%s0 + $0x54] sm:$0xf]
  %v36 = vld [vmem:[%s0 + $0x58] sm:$0xf]
  %v37 = vld [vmem:[%s0 + $0x5c] sm:$0xf]
  %v38 = vld [vmem:[%s0 + $0x60] sm:$0xf]
  %v39 = vld [vmem:[%s0 + $0x64] sm:$0xf]
  %v40 = vld [vmem:[%s0 + $0x68] sm:$0xf]
  %v41 = vld [vmem:[%s0 + $0x6c] sm:$0xf]
  %v42 = vld [vmem:[%s0 + $0x70] sm:$0xf]
  %v43 = vld [vmem:[%s0 + $0x74] sm:$0xf]
  %v44 = vld [vmem:[%s0 + $0x78] sm:$0xf]
  %v45 = vld [vmem:[%s0 + $0x7c] sm:$0xf]
  %v46 = vld [vmem:[%s0 + $0x80] sm:$0xf]
  %v47 = vld [vmem:[%s0 + $0x84] sm:$0xf]
  %v48 = vld [vmem:[%s0 + $0x88] sm:$0xf]
  %v49 = vld [vmem:[%s0 + $0x8c] sm:$0xf]
  %v50 = vld [vmem:[%s0 + $0x90] sm:$0xf]
  %v51 = vld [vmem:[%s0 + $0x94] sm:$0xf]
  %v52 = vld [vmem:[%s0 + $0x98] sm:$0xf]
  %v53 = vld [vmem:[%s0 + $0x9c] sm:$0xf]
  %v54 = vld [vmem:[%s0 + $0xa0] sm:$0xf]
  %v55 = vld [vmem:[%s0 + $0xa4] sm:$0xf]
  %v56 = vld [vmem:[%s0 + $0xa8] sm:$0xf]
  %v57 = vld [vmem:[%s0 + $0xac] sm:$0xf]
  %v58 = vld [vmem:[%s0 + $0xb0] sm:$0xf]
  %v59 = vld [vmem:[%s0 + $0xb4] sm:$0xf]
  %v60 = vld [vmem:[%s0 + $0xb8] sm:$0xf]
  %v61 = vld [vmem:[%s0 + $0xbc] sm:$0xf]
  %v62 = vld [vmem:[%s0 + $0xc0] sm:$0xf]
  %v63 = vld [vmem:[%s0 + $0xc4] sm:$0xf]
  %v64 = vld [vmem:[%s0 + $0xc8] sm:$0xf]
  %v65 = vld [vmem:[%s0 + $0xcc] sm:$0xf]
  %v66 = vld [vmem:[%s0 + $0xd0] sm:$0xf]
  %v67 = vld [vmem:[%s0 + $0xd4] sm:$0xf]
  %v68 = vld [vmem:[%s0 + $0xd8] sm:$0xf]
  %v69 = vld [vmem:[%s0 + $0xdc] sm:$0xf]
  %v70 = vld [vmem:[%s0 + $0xe0] sm:$0xf]
  %v71 = vld [vmem:[%s0 + $0xe4] sm:$0xf]
  %v72 = vld [vmem:[%s0 + $0xe8] sm:$0xf]
  %v73 = vld [vmem:[%s0 + $0xec] sm:$0xf]
  %v74 = vld [vmem:[%s0 + $0xf0] sm:$0xf]
  %v75 = vld [vmem:[%s0 + $0xf4] sm:$0xf]
  %v76 = vld [vmem:[%s0 + $0xf8] sm:$0xf]
  %v77 = vld [vmem:[%s0 + $0xfc] sm:$0xf]
  %v78 = vld [vmem:[%s1] sm:$0xf]
  %v79 = vld [vmem:[%s1 + $0x4] sm:$0xf]
  %v80 = vld [vmem:[%s1 + $0x8] sm:$0xf]
  %v81 = vld [vmem:[%s1 + $0xc] sm:$0xf]
  %v82 = vld [vmem:[%s1 + $0x10] sm:$0xf]
  %v83 = vld [vmem:[%s1 + $0x14] sm:$0xf]
  %v84 = vld [vmem:[%s1 + $0x18] sm:$0xf]
  %v85 = vld [vmem:[%s1 + $0x1c] sm:$0xf]
  %v86 = vld [vmem:[%s1 + $0x20] sm:$0xf]
  %v87 = vld [vmem:[%s1 + $0x24] sm:$0xf]
  %v88 = vld [vmem:[%s1 + $0x28] sm:$0xf]
  %v89 = vld [vmem:[%s1 + $0x2c] sm:$0xf]
  %v90 = vld [vmem:[%s1 + $0x30] sm:$0xf]
  %v91 = vld [vmem:[%s1 + $0x34] sm:$0xf]
  %v92 = vld [vmem:[%s1 + $0x38] sm:$0xf]
  %v93 = vld [vmem:[%s1 + $0x3c] sm:$0xf]
  %v158 = vunpack.c.l.b16 %v14
  %v159 = vunpack.c.l.b16 %v15
  %v160 = vunpack.c.l.b16 %v16
  %v161 = vunpack.c.l.b16 %v17
  %v162 = vunpack.c.l.b16 %v18
  %v163 = vunpack.c.l.b16 %v19
  %v164 = vunpack.c.l.b16 %v20
  %v165 = vunpack.c.l.b16 %v21
  %v166 = vunpack.c.l.b16 %v22
  %v167 = vunpack.c.l.b16 %v23
  %v168 = vunpack.c.l.b16 %v24
  %v169 = vunpack.c.l.b16 %v25
  %v170 = vunpack.c.l.b16 %v26
  %v171 = vunpack.c.l.b16 %v27
  %v172 = vunpack.c.l.b16 %v28
  %v173 = vunpack.c.l.b16 %v29
  %v174 = vunpack.c.l.b16 %v30
  %v175 = vunpack.c.l.b16 %v31
  %v176 = vunpack.c.l.b16 %v32
  %v177 = vunpack.c.l.b16 %v33
  %v178 = vunpack.c.l.b16 %v34
  %v179 = vunpack.c.l.b16 %v35
  %v180 = vunpack.c.l.b16 %v36
  %v181 = vunpack.c.l.b16 %v37
  %v182 = vunpack.c.l.b16 %v38
  %v183 = vunpack.c.l.b16 %v39
  %v184 = vunpack.c.l.b16 %v40
  %v185 = vunpack.c.l.b16 %v41
  %v186 = vunpack.c.l.b16 %v42
  %v187 = vunpack.c.l.b16 %v43
  %v188 = vunpack.c.l.b16 %v44
  %v189 = vunpack.c.l.b16 %v45
  %v190 = vunpack.c.l.b16 %v46
  %v191 = vunpack.c.l.b16 %v47
  %v192 = vunpack.c.l.b16 %v48
  %v193 = vunpack.c.l.b16 %v49
  %v194 = vunpack.c.l.b16 %v50
  %v195 = vunpack.c.l.b16 %v51
  %v196 = vunpack.c.l.b16 %v52
  %v197 = vunpack.c.l.b16 %v53
  %v198 = vunpack.c.l.b16 %v54
  %v199 = vunpack.c.l.b16 %v55
  %v200 = vunpack.c.l.b16 %v56
  %v201 = vunpack.c.l.b16 %v57
  %v202 = vunpack.c.l.b16 %v58
  %v203 = vunpack.c.l.b16 %v59
  %v204 = vunpack.c.l.b16 %v60
  %v205 = vunpack.c.l.b16 %v61
  %v206 = vunpack.c.l.b16 %v62
  %v207 = vunpack.c.l.b16 %v63
  %v208 = vunpack.c.l.b16 %v64
  %v209 = vunpack.c.l.b16 %v65
  %v210 = vunpack.c.l.b16 %v66
  %v211 = vunpack.c.l.b16 %v67
  %v212 = vunpack.c.l.b16 %v68
  %v213 = vunpack.c.l.b16 %v69
  %v214 = vunpack.c.l.b16 %v70
  %v215 = vunpack.c.l.b16 %v71
  %v216 = vunpack.c.l.b16 %v72
  %v217 = vunpack.c.l.b16 %v73
  %v218 = vunpack.c.l.b16 %v74
  %v219 = vunpack.c.l.b16 %v75
  %v220 = vunpack.c.l.b16 %v76
  %v221 = vunpack.c.l.b16 %v77
  %v222 = vpack.c.b16 %v159, %v158
  %v223 = vpack.c.b16 %v161, %v160
  %v224 = vpack.c.b16 %v163, %v162
  %v225 = vpack.c.b16 %v165, %v164
  %v226 = vpack.c.b16 %v167, %v166
  %v227 = vpack.c.b16 %v169, %v168
  %v228 = vpack.c.b16 %v171, %v170
  %v229 = vpack.c.b16 %v173, %v172
  %v230 = vpack.c.b16 %v175, %v174
  %v231 = vpack.c.b16 %v177, %v176
  %v232 = vpack.c.b16 %v179, %v178
  %v233 = vpack.c.b16 %v181, %v180
  %v234 = vpack.c.b16 %v183, %v182
  %v235 = vpack.c.b16 %v185, %v184
  %v236 = vpack.c.b16 %v187, %v186
  %v237 = vpack.c.b16 %v189, %v188
  %v238 = vpack.c.b16 %v191, %v190
  %v239 = vpack.c.b16 %v193, %v192
  %v240 = vpack.c.b16 %v195, %v194
  %v241 = vpack.c.b16 %v197, %v196
  %v242 = vpack.c.b16 %v199, %v198
  %v243 = vpack.c.b16 %v201, %v200
  %v244 = vpack.c.b16 %v203, %v202
  %v245 = vpack.c.b16 %v205, %v204
  %v246 = vpack.c.b16 %v207, %v206
  %v247 = vpack.c.b16 %v209, %v208
  %v248 = vpack.c.b16 %v211, %v210
  %v249 = vpack.c.b16 %v213, %v212
  %v250 = vpack.c.b16 %v215, %v214
  %v251 = vpack.c.b16 %v217, %v216
  %v252 = vpack.c.b16 %v219, %v218
  %v253 = vpack.c.b16 %v221, %v220
  %v302 = vunpack.c.l.b16 %v78
  %v303 = vunpack.c.l.b16 %v79
  %v304 = vunpack.c.l.b16 %v80
  %v305 = vunpack.c.l.b16 %v81
  %v306 = vunpack.c.l.b16 %v82
  %v307 = vunpack.c.l.b16 %v83
  %v308 = vunpack.c.l.b16 %v84
  %v309 = vunpack.c.l.b16 %v85
  %v310 = vunpack.c.l.b16 %v86
  %v311 = vunpack.c.l.b16 %v87
  %v312 = vunpack.c.l.b16 %v88
  %v313 = vunpack.c.l.b16 %v89
  %v314 = vunpack.c.l.b16 %v90
  %v315 = vunpack.c.l.b16 %v91
  %v316 = vunpack.c.l.b16 %v92
  %v317 = vunpack.c.l.b16 %v93
  %v318 = vpack.c.b16 %v303, %v302
  %v319 = vpack.c.b16 %v305, %v304
  %v320 = vpack.c.b16 %v307, %v306
  %v321 = vpack.c.b16 %v309, %v308
  %v322 = vpack.c.b16 %v311, %v310
  %v323 = vpack.c.b16 %v313, %v312
  %v324 = vpack.c.b16 %v315, %v314
  %v325 = vpack.c.b16 %v317, %v316
  %334 = vmatpush.bf16.msra.mxu0 %v325
  %335 = vmatpush.bf16.msra.mxu0 %v324
  %336 = vmatpush.bf16.msra.mxu0 %v323
  %337 = vmatpush.bf16.msra.mxu0 %v322
  %338 = vmatpush.bf16.msra.mxu0 %v321
  %339 = vmatpush.bf16.msra.mxu0 %v320
  %340 = vmatpush.bf16.msra.mxu0 %v319
  %341 = vmatpush.bf16.msra.mxu0 %v318
  %342 = vmatmul.bf16.gmra.mxu0 %v222
  %v343 = vpop.f32.mrf.mxu0
  %v344 = vadd.f32 0.0, %v343
  %v345 = vpop.f32.mrf.mxu0
  %v346 = vadd.f32 0.0, %v345
  %347 = vmatmul.bf16.gmra.mxu0 %v223
  %v348 = vpop.f32.mrf.mxu0
  %v349 = vadd.f32 0.0, %v348
  %v350 = vpop.f32.mrf.mxu0
  %v351 = vadd.f32 0.0, %v350
  %352 = vmatmul.bf16.gmra.mxu0 %v224
  %v353 = vpop.f32.mrf.mxu0
  %v354 = vadd.f32 0.0, %v353
  %v355 = vpop.f32.mrf.mxu0
  %v356 = vadd.f32 0.0, %v355
  %357 = vmatmul.bf16.gmra.mxu0 %v225
  %v358 = vpop.f32.mrf.mxu0
  %v359 = vadd.f32 0.0, %v358
  %v360 = vpop.f32.mrf.mxu0
  %v361 = vadd.f32 0.0, %v360
  %362 = vmatmul.bf16.gmra.mxu0 %v226
  %v363 = vpop.f32.mrf.mxu0
  %v364 = vadd.f32 0.0, %v363
  %v365 = vpop.f32.mrf.mxu0
  %v366 = vadd.f32 0.0, %v365
  %367 = vmatmul.bf16.gmra.mxu0 %v227
  %v368 = vpop.f32.mrf.mxu0
  %v369 = vadd.f32 0.0, %v368
  %v370 = vpop.f32.mrf.mxu0
  %v371 = vadd.f32 0.0, %v370
  %372 = vmatmul.bf16.gmra.mxu0 %v228
  %v373 = vpop.f32.mrf.mxu0
  %v374 = vadd.f32 0.0, %v373
  %v375 = vpop.f32.mrf.mxu0
  %v376 = vadd.f32 0.0, %v375
  %377 = vmatmul.bf16.gmra.mxu0 %v229
  %v378 = vpop.f32.mrf.mxu0
  %v379 = vadd.f32 0.0, %v378
  %v380 = vpop.f32.mrf.mxu0
  %v381 = vadd.f32 0.0, %v380
  %382 = vmatmul.bf16.gmra.mxu0 %v230
  %v383 = vpop.f32.mrf.mxu0
  %v384 = vadd.f32 0.0, %v383
  %v385 = vpop.f32.mrf.mxu0
  %v386 = vadd.f32 0.0, %v385
  %387 = vmatmul.bf16.gmra.mxu0 %v231
  %v388 = vpop.f32.mrf.mxu0
  %v389 = vadd.f32 0.0, %v388
  %v390 = vpop.f32.mrf.mxu0
  %v391 = vadd.f32 0.0, %v390
  %392 = vmatmul.bf16.gmra.mxu0 %v232
  %v393 = vpop.f32.mrf.mxu0
  %v394 = vadd.f32 0.0, %v393
  %v395 = vpop.f32.mrf.mxu0
  %v396 = vadd.f32 0.0, %v395
  %397 = vmatmul.bf16.gmra.mxu0 %v233
  %v398 = vpop.f32.mrf.mxu0
  %v399 = vadd.f32 0.0, %v398
  %v400 = vpop.f32.mrf.mxu0
  %v401 = vadd.f32 0.0, %v400
  %402 = vmatmul.bf16.gmra.mxu0 %v234
  %v403 = vpop.f32.mrf.mxu0
  %v404 = vadd.f32 0.0, %v403
  %v405 = vpop.f32.mrf.mxu0
  %v406 = vadd.f32 0.0, %v405
  %407 = vmatmul.bf16.gmra.mxu0 %v235
  %v408 = vpop.f32.mrf.mxu0
  %v409 = vadd.f32 0.0, %v408
  %v410 = vpop.f32.mrf.mxu0
  %v411 = vadd.f32 0.0, %v410
  %412 = vmatmul.bf16.gmra.mxu0 %v236
  %v413 = vpop.f32.mrf.mxu0
  %v414 = vadd.f32 0.0, %v413
  %v415 = vpop.f32.mrf.mxu0
  %v416 = vadd.f32 0.0, %v415
  %417 = vmatmul.bf16.gmra.mxu0 %v237
  %v418 = vpop.f32.mrf.mxu0
  %v419 = vadd.f32 0.0, %v418
  %v420 = vpop.f32.mrf.mxu0
  %v421 = vadd.f32 0.0, %v420
  %422 = vmatmul.bf16.gmra.mxu0 %v238
  %v423 = vpop.f32.mrf.mxu0
  %v424 = vadd.f32 0.0, %v423
  %v425 = vpop.f32.mrf.mxu0
  %v426 = vadd.f32 0.0, %v425
  %427 = vmatmul.bf16.gmra.mxu0 %v239
  %v428 = vpop.f32.mrf.mxu0
  %v429 = vadd.f32 0.0, %v428
  %v430 = vpop.f32.mrf.mxu0
  %v431 = vadd.f32 0.0, %v430
  %432 = vmatmul.bf16.gmra.mxu0 %v240
  %v433 = vpop.f32.mrf.mxu0
  %v434 = vadd.f32 0.0, %v433
  %v435 = vpop.f32.mrf.mxu0
  %v436 = vadd.f32 0.0, %v435
  %437 = vmatmul.bf16.gmra.mxu0 %v241
  %v438 = vpop.f32.mrf.mxu0
  %v439 = vadd.f32 0.0, %v438
  %v440 = vpop.f32.mrf.mxu0
  %v441 = vadd.f32 0.0, %v440
  %442 = vmatmul.bf16.gmra.mxu0 %v242
  %v443 = vpop.f32.mrf.mxu0
  %v444 = vadd.f32 0.0, %v443
  %v445 = vpop.f32.mrf.mxu0
  %v446 = vadd.f32 0.0, %v445
  %447 = vmatmul.bf16.gmra.mxu0 %v243
  %v448 = vpop.f32.mrf.mxu0
  %v449 = vadd.f32 0.0, %v448
  %v450 = vpop.f32.mrf.mxu0
  %v451 = vadd.f32 0.0, %v450
  %452 = vmatmul.bf16.gmra.mxu0 %v244
  %v453 = vpop.f32.mrf.mxu0
  %v454 = vadd.f32 0.0, %v453
  %v455 = vpop.f32.mrf.mxu0
  %v456 = vadd.f32 0.0, %v455
  %457 = vmatmul.bf16.gmra.mxu0 %v245
  %v458 = vpop.f32.mrf.mxu0
  %v459 = vadd.f32 0.0, %v458
  %v460 = vpop.f32.mrf.mxu0
  %v461 = vadd.f32 0.0, %v460
  %462 = vmatmul.bf16.gmra.mxu0 %v246
  %v463 = vpop.f32.mrf.mxu0
  %v464 = vadd.f32 0.0, %v463
  %v465 = vpop.f32.mrf.mxu0
  %v466 = vadd.f32 0.0, %v465
  %467 = vmatmul.bf16.gmra.mxu0 %v247
  %v468 = vpop.f32.mrf.mxu0
  %v469 = vadd.f32 0.0, %v468
  %v470 = vpop.f32.mrf.mxu0
  %v471 = vadd.f32 0.0, %v470
  %472 = vmatmul.bf16.gmra.mxu0 %v248
  %v473 = vpop.f32.mrf.mxu0
  %v474 = vadd.f32 0.0, %v473
  %v475 = vpop.f32.mrf.mxu0
  %v476 = vadd.f32 0.0, %v475
  %477 = vmatmul.bf16.gmra.mxu0 %v249
  %v478 = vpop.f32.mrf.mxu0
  %v479 = vadd.f32 0.0, %v478
  %v480 = vpop.f32.mrf.mxu0
  %v481 = vadd.f32 0.0, %v480
  %482 = vmatmul.bf16.gmra.mxu0 %v250
  %v483 = vpop.f32.mrf.mxu0
  %v484 = vadd.f32 0.0, %v483
  %v485 = vpop.f32.mrf.mxu0
  %v486 = vadd.f32 0.0, %v485
  %487 = vmatmul.bf16.gmra.mxu0 %v251
  %v488 = vpop.f32.mrf.mxu0
  %v489 = vadd.f32 0.0, %v488
  %v490 = vpop.f32.mrf.mxu0
  %v491 = vadd.f32 0.0, %v490
  %492 = vmatmul.bf16.gmra.mxu0 %v252
  %v493 = vpop.f32.mrf.mxu0
  %v494 = vadd.f32 0.0, %v493
  %v495 = vpop.f32.mrf.mxu0
  %v496 = vadd.f32 0.0, %v495
  %497 = vmatmul.bf16.gmra.mxu0 %v253
  %v498 = vpop.f32.mrf.mxu0
  %v499 = vadd.f32 0.0, %v498
  %v500 = vpop.f32.mrf.mxu0
  %v501 = vadd.f32 0.0, %v500
  %502 = vdwg.mxu0
  %503 = vst [vmem:[%s2] sm:$0xff] %v344
  %504 = vst [vmem:[%s2 + $0x8] sm:$0xff] %v346
  %505 = vst [vmem:[%s2 + $0x10] sm:$0xff] %v349
  %506 = vst [vmem:[%s2 + $0x18] sm:$0xff] %v351
  %507 = vst [vmem:[%s2 + $0x20] sm:$0xff] %v354
  %508 = vst [vmem:[%s2 + $0x28] sm:$0xff] %v356
  %509 = vst [vmem:[%s2 + $0x30] sm:$0xff] %v359
  %510 = vst [vmem:[%s2 + $0x38] sm:$0xff] %v361
  %511 = vst [vmem:[%s2 + $0x40] sm:$0xff] %v364
  %512 = vst [vmem:[%s2 + $0x48] sm:$0xff] %v366
  %513 = vst [vmem:[%s2 + $0x50] sm:$0xff] %v369
  %514 = vst [vmem:[%s2 + $0x58] sm:$0xff] %v371
  %515 = vst [vmem:[%s2 + $0x60] sm:$0xff] %v374
  %516 = vst [vmem:[%s2 + $0x68] sm:$0xff] %v376
  %517 = vst [vmem:[%s2 + $0x70] sm:$0xff] %v379
  %518 = vst [vmem:[%s2 + $0x78] sm:$0xff] %v381
  %519 = vst [vmem:[%s2 + $0x80] sm:$0xff] %v384
  %520 = vst [vmem:[%s2 + $0x88] sm:$0xff] %v386
  %521 = vst [vmem:[%s2 + $0x90] sm:$0xff] %v389
  %522 = vst [vmem:[%s2 + $0x98] sm:$0xff] %v391
  %523 = vst [vmem:[%s2 + $0xa0] sm:$0xff] %v394
  %524 = vst [vmem:[%s2 + $0xa8] sm:$0xff] %v396
  %525 = vst [vmem:[%s2 + $0xb0] sm:$0xff] %v399
  %526 = vst [vmem:[%s2 + $0xb8] sm:$0xff] %v401
  %527 = vst [vmem:[%s2 + $0xc0] sm:$0xff] %v404
  %528 = vst [vmem:[%s2 + $0xc8] sm:$0xff] %v406
  %529 = vst [vmem:[%s2 + $0xd0] sm:$0xff] %v409
  %530 = vst [vmem:[%s2 + $0xd8] sm:$0xff] %v411
  %531 = vst [vmem:[%s2 + $0xe0] sm:$0xff] %v414
  %532 = vst [vmem:[%s2 + $0xe8] sm:$0xff] %v416
  %533 = vst [vmem:[%s2 + $0xf0] sm:$0xff] %v419
  %534 = vst [vmem:[%s2 + $0xf8] sm:$0xff] %v421
  %535 = vst [vmem:[%s2 + $0x100] sm:$0xff] %v424
  %536 = vst [vmem:[%s2 + $0x108] sm:$0xff] %v426
  %537 = vst [vmem:[%s2 + $0x110] sm:$0xff] %v429
  %538 = vst [vmem:[%s2 + $0x118] sm:$0xff] %v431
  %539 = vst [vmem:[%s2 + $0x120] sm:$0xff] %v434
  %540 = vst [vmem:[%s2 + $0x128] sm:$0xff] %v436
  %541 = vst [vmem:[%s2 + $0x130] sm:$0xff] %v439
  %542 = vst [vmem:[%s2 + $0x138] sm:$0xff] %v441
  %543 = vst [vmem:[%s2 + $0x140] sm:$0xff] %v444
  %544 = vst [vmem:[%s2 + $0x148] sm:$0xff] %v446
  %545 = vst [vmem:[%s2 + $0x150] sm:$0xff] %v449
  %546 = vst [vmem:[%s2 + $0x158] sm:$0xff] %v451
  %547 = vst [vmem:[%s2 + $0x160] sm:$0xff] %v454
  %548 = vst [vmem:[%s2 + $0x168] sm:$0xff] %v456
  %549 = vst [vmem:[%s2 + $0x170] sm:$0xff] %v459
  %550 = vst [vmem:[%s2 + $0x178] sm:$0xff] %v461
  %551 = vst [vmem:[%s2 + $0x180] sm:$0xff] %v464
  %552 = vst [vmem:[%s2 + $0x188] sm:$0xff] %v466
  %553 = vst [vmem:[%s2 + $0x190] sm:$0xff] %v469
  %554 = vst [vmem:[%s2 + $0x198] sm:$0xff] %v471
  %555 = vst [vmem:[%s2 + $0x1a0] sm:$0xff] %v474
  %556 = vst [vmem:[%s2 + $0x1a8] sm:$0xff] %v476
  %557 = vst [vmem:[%s2 + $0x1b0] sm:$0xff] %v479
  %558 = vst [vmem:[%s2 + $0x1b8] sm:$0xff] %v481
  %559 = vst [vmem:[%s2 + $0x1c0] sm:$0xff] %v484
  %560 = vst [vmem:[%s2 + $0x1c8] sm:$0xff] %v486
  %561 = vst [vmem:[%s2 + $0x1d0] sm:$0xff] %v489
  %562 = vst [vmem:[%s2 + $0x1d8] sm:$0xff] %v491
  %563 = vst [vmem:[%s2 + $0x1e0] sm:$0xff] %v494
  %564 = vst [vmem:[%s2 + $0x1e8] sm:$0xff] %v496
  %565 = vst [vmem:[%s2 + $0x1f0] sm:$0xff] %v499
  %566 = vst [vmem:[%s2 + $0x1f8] sm:$0xff] %v501
  %v567 = vadd.f32 %v344, %v346
  %v568 = vadd.f32 %v567, %v349
  %v569 = vadd.f32 %v568, %v351
  %v570 = vadd.f32 %v569, %v354
  %v571 = vadd.f32 %v570, %v356
  %v572 = vadd.f32 %v571, %v359
  %v573 = vadd.f32 %v572, %v361
  %v574 = vadd.f32 %v573, %v364
  %v575 = vadd.f32 %v574, %v366
  %v576 = vadd.f32 %v575, %v369
  %v577 = vadd.f32 %v576, %v371
  %v578 = vadd.f32 %v577, %v374
  %v579 = vadd.f32 %v578, %v376
  %v580 = vadd.f32 %v579, %v379
  %v581 = vadd.f32 %v580, %v381
  %v582 = vadd.f32 %v581, %v384
  %v583 = vadd.f32 %v582, %v386
  %v584 = vadd.f32 %v583, %v389
  %v585 = vadd.f32 %v584, %v391
  %v586 = vadd.f32 %v585, %v394
  %v587 = vadd.f32 %v586, %v396
  %v588 = vadd.f32 %v587, %v399
  %v589 = vadd.f32 %v588, %v401
  %v590 = vadd.f32 %v589, %v404
  %v591 = vadd.f32 %v590, %v406
  %v592 = vadd.f32 %v591, %v409
  %v593 = vadd.f32 %v592, %v411
  %v594 = vadd.f32 %v593, %v414
  %v595 = vadd.f32 %v594, %v416
  %v596 = vadd.f32 %v595, %v419
  %v597 = vadd.f32 %v596, %v421
  %v598 = vadd.f32 %v597, %v424
  %v599 = vadd.f32 %v598, %v426
  %v600 = vadd.f32 %v599, %v429
  %v601 = vadd.f32 %v600, %v431
  %v602 = vadd.f32 %v601, %v434
  %v603 = vadd.f32 %v602, %v436
  %v604 = vadd.f32 %v603, %v439
  %v605 = vadd.f32 %v604, %v441
  %v606 = vadd.f32 %v605, %v444
  %v607 = vadd.f32 %v606, %v446
  %v608 = vadd.f32 %v607, %v449
  %v609 = vadd.f32 %v608, %v451
  %v610 = vadd.f32 %v609, %v454
  %v611 = vadd.f32 %v610, %v456
  %v612 = vadd.f32 %v611, %v459
  %v613 = vadd.f32 %v612, %v461
  %v614 = vadd.f32 %v613, %v464
  %v615 = vadd.f32 %v614, %v466
  %v616 = vadd.f32 %v615, %v469
  %v617 = vadd.f32 %v616, %v471
  %v618 = vadd.f32 %v617, %v474
  %v619 = vadd.f32 %v618, %v476
  %v620 = vadd.f32 %v619, %v479
  %v621 = vadd.f32 %v620, %v481
  %v622 = vadd.f32 %v621, %v484
  %v623 = vadd.f32 %v622, %v486
  %v624 = vadd.f32 %v623, %v489
  %v625 = vadd.f32 %v624, %v491
  %v626 = vadd.f32 %v625, %v494
  %v627 = vadd.f32 %v626, %v496
  %v628 = vadd.f32 %v627, %v499
  %v629 = vadd.f32 %v628, %v501
  %v630 = vrot.slane %v629, 4
  %v631 = vadd.f32 %v629, %v630
  %v632 = vrot.slane %v631, 2
  %v633 = vadd.f32 %v631, %v632
  %v634 = vrot.slane %v633, 1
  %v635 = vadd.f32 %v633, %v634
  %636 = vst [vmem:[%s3] sm:$0x1] %v635
  %v637 = vmul.f32 %v344, %v344
  %v638 = vmul.f32 %v346, %v346
  %v639 = vmul.f32 %v349, %v349
  %v640 = vmul.f32 %v351, %v351
  %v641 = vmul.f32 %v354, %v354
  %v642 = vmul.f32 %v356, %v356
  %v643 = vmul.f32 %v359, %v359
  %v644 = vmul.f32 %v361, %v361
  %v645 = vmul.f32 %v364, %v364
  %v646 = vmul.f32 %v366, %v366
  %v647 = vmul.f32 %v369, %v369
  %v648 = vmul.f32 %v371, %v371
  %v649 = vmul.f32 %v374, %v374
  %v650 = vmul.f32 %v376, %v376
  %v651 = vmul.f32 %v379, %v379
  %v652 = vmul.f32 %v381, %v381
  %v653 = vmul.f32 %v384, %v384
  %v654 = vmul.f32 %v386, %v386
  %v655 = vmul.f32 %v389, %v389
  %v656 = vmul.f32 %v391, %v391
  %v657 = vmul.f32 %v394, %v394
  %v658 = vmul.f32 %v396, %v396
  %v659 = vmul.f32 %v399, %v399
  %v660 = vmul.f32 %v401, %v401
  %v661 = vmul.f32 %v404, %v404
  %v662 = vmul.f32 %v406, %v406
  %v663 = vmul.f32 %v409, %v409
  %v664 = vmul.f32 %v411, %v411
  %v665 = vmul.f32 %v414, %v414
  %v666 = vmul.f32 %v416, %v416
  %v667 = vmul.f32 %v419, %v419
  %v668 = vmul.f32 %v421, %v421
  %v669 = vmul.f32 %v424, %v424
  %v670 = vmul.f32 %v426, %v426
  %v671 = vmul.f32 %v429, %v429
  %v672 = vmul.f32 %v431, %v431
  %v673 = vmul.f32 %v434, %v434
  %v674 = vmul.f32 %v436, %v436
  %v675 = vmul.f32 %v439, %v439
  %v676 = vmul.f32 %v441, %v441
  %v677 = vmul.f32 %v444, %v444
  %v678 = vmul.f32 %v446, %v446
  %v679 = vmul.f32 %v449, %v449
  %v680 = vmul.f32 %v451, %v451
  %v681 = vmul.f32 %v454, %v454
  %v682 = vmul.f32 %v456, %v456
  %v683 = vmul.f32 %v459, %v459
  %v684 = vmul.f32 %v461, %v461
  %v685 = vmul.f32 %v464, %v464
  %v686 = vmul.f32 %v466, %v466
  %v687 = vmul.f32 %v469, %v469
  %v688 = vmul.f32 %v471, %v471
  %v689 = vmul.f32 %v474, %v474
  %v690 = vmul.f32 %v476, %v476
  %v691 = vmul.f32 %v479, %v479
  %v692 = vmul.f32 %v481, %v481
  %v693 = vmul.f32 %v484, %v484
  %v694 = vmul.f32 %v486, %v486
  %v695 = vmul.f32 %v489, %v489
  %v696 = vmul.f32 %v491, %v491
  %v697 = vmul.f32 %v494, %v494
  %v698 = vmul.f32 %v496, %v496
  %v699 = vmul.f32 %v499, %v499
  %v700 = vmul.f32 %v501, %v501
  %v701 = vadd.f32 %v637, %v638
  %v702 = vadd.f32 %v701, %v639
  %v703 = vadd.f32 %v702, %v640
  %v704 = vadd.f32 %v703, %v641
  %v705 = vadd.f32 %v704, %v642
  %v706 = vadd.f32 %v705, %v643
  %v707 = vadd.f32 %v706, %v644
  %v708 = vadd.f32 %v707, %v645
  %v709 = vadd.f32 %v708, %v646
  %v710 = vadd.f32 %v709, %v647
  %v711 = vadd.f32 %v710, %v648
  %v712 = vadd.f32 %v711, %v649
  %v713 = vadd.f32 %v712, %v650
  %v714 = vadd.f32 %v713, %v651
  %v715 = vadd.f32 %v714, %v652
  %v716 = vadd.f32 %v715, %v653
  %v717 = vadd.f32 %v716, %v654
  %v718 = vadd.f32 %v717, %v655
  %v719 = vadd.f32 %v718, %v656
  %v720 = vadd.f32 %v719, %v657
  %v721 = vadd.f32 %v720, %v658
  %v722 = vadd.f32 %v721, %v659
  %v723 = vadd.f32 %v722, %v660
  %v724 = vadd.f32 %v723, %v661
  %v725 = vadd.f32 %v724, %v662
  %v726 = vadd.f32 %v725, %v663
  %v727 = vadd.f32 %v726, %v664
  %v728 = vadd.f32 %v727, %v665
  %v729 = vadd.f32 %v728, %v666
  %v730 = vadd.f32 %v729, %v667
  %v731 = vadd.f32 %v730, %v668
  %v732 = vadd.f32 %v731, %v669
  %v733 = vadd.f32 %v732, %v670
  %v734 = vadd.f32 %v733, %v671
  %v735 = vadd.f32 %v734, %v672
  %v736 = vadd.f32 %v735, %v673
  %v737 = vadd.f32 %v736, %v674
  %v738 = vadd.f32 %v737, %v675
  %v739 = vadd.f32 %v738, %v676
  %v740 = vadd.f32 %v739, %v677
  %v741 = vadd.f32 %v740, %v678
  %v742 = vadd.f32 %v741, %v679
  %v743 = vadd.f32 %v742, %v680
  %v744 = vadd.f32 %v743, %v681
  %v745 = vadd.f32 %v744, %v682
  %v746 = vadd.f32 %v745, %v683
  %v747 = vadd.f32 %v746, %v684
  %v748 = vadd.f32 %v747, %v685
  %v749 = vadd.f32 %v748, %v686
  %v750 = vadd.f32 %v749, %v687
  %v751 = vadd.f32 %v750, %v688
  %v752 = vadd.f32 %v751, %v689
  %v753 = vadd.f32 %v752, %v690
  %v754 = vadd.f32 %v753, %v691
  %v755 = vadd.f32 %v754, %v692
  %v756 = vadd.f32 %v755, %v693
  %v757 = vadd.f32 %v756, %v694
  %v758 = vadd.f32 %v757, %v695
  %v759 = vadd.f32 %v758, %v696
  %v760 = vadd.f32 %v759, %v697
  %v761 = vadd.f32 %v760, %v698
  %v762 = vadd.f32 %v761, %v699
  %v763 = vadd.f32 %v762, %v700
  %v764 = vrot.slane %v763, 4
  %v765 = vadd.f32 %v763, %v764
  %v766 = vrot.slane %v765, 2
  %v767 = vadd.f32 %v765, %v766
  %v768 = vrot.slane %v767, 1
  %v769 = vadd.f32 %v767, %v768
  %770 = vst [vmem:[%s4] sm:$0x1] %v769
  // Predicated region
  $region10: #{generator_forward.49} parent=0 // pred_check
    _
  $region11: #{generator_forward.49} parent=0 // pred_check_branch
    %772 = sbr.rel (0) target = $region13
  $region12: #{generator_forward.49} parent=0 // pred_region
    _
  $region13: #{generator_forward.49} parent=0 // pred_fallthru
    _
  // Predicated region
  $region14: #{generator_forward.49} parent=0 // pred_check
    _
  $region15: #{generator_forward.49} parent=0 // pred_check_branch
    %774 = sbr.rel (0) target = $region17
  $region16: #{generator_forward.49} parent=0 // pred_region
    _
  $region17: #{generator_forward.49} parent=0 // pred_fallthru
    _
  // Predicated region
  $region18: #{generator_forward.49} parent=0 // pred_check
    _
  $region19: #{generator_forward.49} parent=0 // pred_check_branch
    %776 = sbr.rel (0) target = $region21
  $region20: #{generator_forward.49} parent=0 // pred_region
    _
  $region21: #{generator_forward.49} parent=0 // pred_fallthru
    _
  // Predicated region
  $region22: #{generator_forward.49} parent=0 // pred_check
    _
  $region23: #{generator_forward.49} parent=0 // pred_check_branch
    %778 = sbr.rel (0) target = $region25
  $region24: #{generator_forward.49} parent=0 // pred_region
    _
  $region25: #{generator_forward.49} parent=0 // pred_fallthru
    _
  // Predicated region
  $region26: #{generator_forward.49} parent=0 // pred_check
    _
  $region27: #{generator_forward.49} parent=0 // pred_check_branch
    %780 = sbr.rel (0) target = $region29
  $region28: #{generator_forward.49} parent=0 // pred_region
    _
  $region29: #{generator_forward.49} parent=0 // pred_fallthru
    _
  // Predicated region
  $region30: #{generator_forward.49} parent=0 // pred_check
    _
  $region31: #{generator_forward.49} parent=0 // pred_check_branch
    %782 = sbr.rel (0) target = $region33
  $region32: #{generator_forward.49} parent=0 // pred_region
    _
  $region33: #{generator_forward.49} parent=0 // pred_fallthru
    _

// kernel: generator_forward.56
$region0: #{generator_forward.56}
  #allocation0 [shape = 'u32[]', space=smem, size = 0x4, offset = 0x4, fixed_abs, tag = 'smem constant byte address 0x4 - core index']
  #allocation1 [shape = 'u32[72,128]{1,0:T(1,128)}', space=vmem, size = 0x9000, scoped, tag = 'internal scratch']
  %s0 = inlined_call_operand.vmem [shape: bf16[2048,128], index: 0, kind: input, shape index: {}]
  %s1 = inlined_call_operand.vmem [shape: bf16[128,128], index: 1, kind: input, shape index: {}]
  %s2 = inlined_call_operand.vmem [shape: f32[2048,128], index: 2, kind: output, shape index: {}]
  %s3 = sld [smem:[#allocation0]]
  $region41: #{generator_forward.56} parent=0
    _
  %s5 = ssub.s32 1, %s3
  %s6 = scalar_select 0, %s5, %s3
  loop: start=0, step=1, limit=6
  $region2: #{generator_forward.56} parent=0 // loop_pre_header
    _
  $region3: #{generator_forward.56} parent=0 // loop_header
    %s8 = sphi 0, %s12
    %p9 = scmp.ge.s32.totalorder %s8, 6
    %s18 = sphi 0, %s20
    %s21 = sphi 0, %s18
    %s22 = sphi 0, %s21
    %s38 = sphi 0, %s22
    %s42 = sphi 0, %s42
    %s44 = sphi 0, %s42
    %s45 = sphi 0, %s44
    %s59 = sphi 0, %s45
    %s65 = sphi 0, %s67
    %s68 = sphi 0, %s65
    %s69 = sphi 0, %s68
    %s85 = sphi 0, %s69
  $region4: #{generator_forward.56} parent=0 // loop_header_branch
    %11 = sbr.rel (%p9) target = $region8
  $region5: #{generator_forward.56} parent=0 // loop_body
    %s13 = ssub.s32 %s8, 1
    %s14 = ssub.s32 %s8, 2
    %s15 = sadd.s32 %s8, 1
    %s16 = ssub.s32 %s8, %s15
    %p17 = scmp.eq.s32.totalorder %s16, 0
    %s19 = sadd.s32 %s18, 1
    %s20 = scalar_select %p17, %s18, %s19
    %p23 = pneg %p17
    %p24 = scmp.eq.s32.totalorder %s8, 3
    %p25 = por %p23, %p24
    %p26 = scmp.ne.s32.totalorder %s18, %s21
    %p27 = scmp.eq.s32.totalorder %s8, 0
    %p28 = por %p26, %p27
    %p29 = scmp.ne.s32.totalorder %s18, %s21
    %p30 = scmp.eq.s32.totalorder %s13, 3
    %p31 = por %p29, %p30
    %p32 = scmp.ne.s32.totalorder %s21, %s22
    %p33 = scmp.eq.s32.totalorder %s13, 0
    %p34 = por %p32, %p33
    %p35 = scmp.ne.s32.totalorder %s21, %s22
    %p36 = scmp.eq.s32.totalorder %s14, 3
    %p37 = por %p35, %p36
    %p39 = scmp.ne.s32.totalorder %s22, %s38
    %p40 = scmp.eq.s32.totalorder %s14, 0
    %p41 = por %p39, %p40
    %s43 = sadd.s32 %s42, 1
    %p46 = scmp.eq.s32.totalorder %s8, 3
    %p47 = scmp.ne.s32.totalorder %s42, %s44
    %p48 = scmp.eq.s32.totalorder %s8, 0
    %p49 = por %p47, %p48
    %p50 = scmp.ne.s32.totalorder %s42, %s44
    %p51 = scmp.eq.s32.totalorder %s13, 3
    %p52 = por %p50, %p51
    %p53 = scmp.ne.s32.totalorder %s44, %s45
    %p54 = scmp.eq.s32.totalorder %s13, 0
    %p55 = por %p53, %p54
    %p56 = scmp.ne.s32.totalorder %s44, %s45
    %p57 = scmp.eq.s32.totalorder %s14, 3
    %p58 = por %p56, %p57
    %p60 = scmp.ne.s32.totalorder %s45, %s59
    %p61 = scmp.eq.s32.totalorder %s14, 0
    %p62 = por %p60, %p61
    %s63 = ssub.s32 %s8, %s15
    %p64 = scmp.eq.s32.totalorder %s63, 0
    %s66 = sadd.s32 %s65, 1
    %s67 = scalar_select %p64, %s65, %s66
    %p70 = pneg %p64
    %p71 = scmp.eq.s32.totalorder %s8, 3
    %p72 = por %p70, %p71
    %p73 = scmp.ne.s32.totalorder %s65, %s68
    %p74 = scmp.eq.s32.totalorder %s8, 0
    %p75 = por %p73, %p74
    %p76 = scmp.ne.s32.totalorder %s65, %s68
    %p77 = scmp.eq.s32.totalorder %s13, 3
    %p78 = por %p76, %p77
    %p79 = scmp.ne.s32.totalorder %s68, %s69
    %p80 = scmp.eq.s32.totalorder %s13, 0
    %p81 = por %p79, %p80
    %p82 = scmp.ne.s32.totalorder %s68, %s69
    %p83 = scmp.eq.s32.totalorder %s14, 3
    %p84 = por %p82, %p83
    %p86 = scmp.ne.s32.totalorder %s69, %s85
    %p87 = scmp.eq.s32.totalorder %s14, 0
    %p88 = por %p86, %p87
    %p89 = scmp.le.s32.totalorder 1, %s8
    %p90 = scmp.lt.s32.totalorder %s8, 5
    %p91 = pnand %p89, %p90
    %p92 = pneg %p91
    // Predicated region
    $region9: #{generator_forward.56} parent=5 // pred_check
      _
    $region10: #{generator_forward.56} parent=5 // pred_check_branch
      %94 = sbr.rel (%p91) target = $region12
    $region11: #{generator_forward.56} parent=5 // pred_region
      %s95 = ssub.s32 %s8, 1
      // Predicated region
      $region13: #{generator_forward.56} parent=11 // pred_check
        %p96 = pneg %p55
      $region14: #{generator_forward.56} parent=11 // pred_check_branch
        %98 = sbr.rel (%p96) target = $region16
      $region15: #{generator_forward.56} parent=11 // pred_region
        _
      $region16: #{generator_forward.56} parent=11 // pred_fallthru
        _
    $region12: #{generator_forward.56} parent=5 // pred_fallthru
      _
    %p99 = scmp.lt.s32.totalorder %s8, 4
    // Predicated region
    $region17: #{generator_forward.56} parent=5 // pred_check
      %p100 = pneg %p99
    $region18: #{generator_forward.56} parent=5 // pred_check_branch
      %102 = sbr.rel (%p100) target = $region20
    $region19: #{generator_forward.56} parent=5 // pred_region
      // Predicated region
      $region21: #{generator_forward.56} parent=19 // pred_check
        %p103 = pneg %p28
      $region22: #{generator_forward.56} parent=19 // pred_check_branch
        %105 = sbr.rel (%p103) target = $region24
      $region23: #{generator_forward.56} parent=19 // pred_region
        %s106 = smul.u32 64, %s8
        %p107 = scmp.lt.s32.totalorder %s106, 255
        %s108 = scalar_select %p107, %s106, 255
        %s109 = smul.addr %s108, 4
        %s110 = scalar_lea.vmem %s0, %s109
        %s111 = smul.u32 64, %s8
      $region24: #{generator_forward.56} parent=19 // pred_fallthru
        _
    $region20: #{generator_forward.56} parent=5 // pred_fallthru
      _
    %p112 = scmp.le.s32.totalorder 1, %s8
    %p113 = scmp.lt.s32.totalorder %s8, 5
    %p114 = pnand %p112, %p113
    %p115 = pneg %p114
    // Predicated region
    $region25: #{generator_forward.56} parent=5 // pred_check
      _
    $region26: #{generator_forward.56} parent=5 // pred_check_branch
      %117 = sbr.rel (%p114) target = $region28
    $region27: #{generator_forward.56} parent=5 // pred_region
      %s118 = ssub.s32 %s8, 1
      %s119 = smul.u32 64, %s13
      %p120 = scmp.lt.s32.totalorder %s119, 255
      %s121 = scalar_select %p120, %s119, 255
      %s122 = smul.addr %s121, 4
      %s123 = scalar_lea.vmem %s0, %s122
      %p124 = pneg %p34
      %p125 = pneg %p31
      %p126 = pneg %p55
      %p127 = pneg %p52
      %p128 = pneg %p81
      %p129 = pneg %p78
      %s130 = smul.u32 64, %s13
      %p131 = scmp.lt.s32.totalorder %s130, 255
      %s132 = scalar_select %p131, %s130, 255
      %s133 = smul.addr %s132, 8
      %s134 = scalar_lea.vmem %s2, %s133
      %s135 = smul.u32 64, %s13
      %p136 = scmp.lt.s32.totalorder %s135, 255
      %s137 = scalar_select %p136, %s135, 255
      %s138 = smul.addr %s137, 4
      %s139 = scalar_lea.vmem %s0, %s138
      %s140 = smul.u32 64, %s13
      %s141 = smul.u32 64, %s13
      %p142 = scmp.lt.s32.totalorder %s141, 255
      %s143 = scalar_select %p142, %s141, 255
      %s144 = smul.addr %s143, 8
      %s145 = scalar_lea.vmem %s2, %s144
      %s146 = smul.u32 64, %s13
      %v147 = vld [vmem:[%s139] sm:$0xf]
      %v148 = vld [vmem:[%s139 + $0x4] sm:$0xf]
      %v149 = vld [vmem:[%s139 + $0x8] sm:$0xf]
      %v150 = vld [vmem:[%s139 + $0xc] sm:$0xf]
      %v151 = vld [vmem:[%s139 + $0x10] sm:$0xf]
      %v152 = vld [vmem:[%s139 + $0x14] sm:$0xf]
      %v153 = vld [vmem:[%s139 + $0x18] sm:$0xf]
      %v154 = vld [vmem:[%s139 + $0x1c] sm:$0xf]
      %v155 = vld [vmem:[%s139 + $0x20] sm:$0xf]
      %v156 = vld [vmem:[%s139 + $0x24] sm:$0xf]
      %v157 = vld [vmem:[%s139 + $0x28] sm:$0xf]
      %v158 = vld [vmem:[%s139 + $0x2c] sm:$0xf]
      %v159 = vld [vmem:[%s139 + $0x30] sm:$0xf]
      %v160 = vld [vmem:[%s139 + $0x34] sm:$0xf]
      %v161 = vld [vmem:[%s139 + $0x38] sm:$0xf]
      %v162 = vld [vmem:[%s139 + $0x3c] sm:$0xf]
      %v163 = vld [vmem:[%s139 + $0x40] sm:$0xf]
      %v164 = vld [vmem:[%s139 + $0x44] sm:$0xf]
      %v165 = vld [vmem:[%s139 + $0x48] sm:$0xf]
      %v166 = vld [vmem:[%s139 + $0x4c] sm:$0xf]
      %v167 = vld [vmem:[%s139 + $0x50] sm:$0xf]
      %v168 = vld [vmem:[%s139 + $0x54] sm:$0xf]
      %v169 = vld [vmem:[%s139 + $0x58] sm:$0xf]
      %v170 = vld [vmem:[%s139 + $0x5c] sm:$0xf]
      %v171 = vld [vmem:[%s139 + $0x60] sm:$0xf]
      %v172 = vld [vmem:[%s139 + $0x64] sm:$0xf]
      %v173 = vld [vmem:[%s139 + $0x68] sm:$0xf]
      %v174 = vld [vmem:[%s139 + $0x6c] sm:$0xf]
      %v175 = vld [vmem:[%s139 + $0x70] sm:$0xf]
      %v176 = vld [vmem:[%s139 + $0x74] sm:$0xf]
      %v177 = vld [vmem:[%s139 + $0x78] sm:$0xf]
      %v178 = vld [vmem:[%s139 + $0x7c] sm:$0xf]
      %v179 = vld [vmem:[%s139 + $0x80] sm:$0xf]
      %v180 = vld [vmem:[%s139 + $0x84] sm:$0xf]
      %v181 = vld [vmem:[%s139 + $0x88] sm:$0xf]
      %v182 = vld [vmem:[%s139 + $0x8c] sm:$0xf]
      %v183 = vld [vmem:[%s139 + $0x90] sm:$0xf]
      %v184 = vld [vmem:[%s139 + $0x94] sm:$0xf]
      %v185 = vld [vmem:[%s139 + $0x98] sm:$0xf]
      %v186 = vld [vmem:[%s139 + $0x9c] sm:$0xf]
      %v187 = vld [vmem:[%s139 + $0xa0] sm:$0xf]
      %v188 = vld [vmem:[%s139 + $0xa4] sm:$0xf]
      %v189 = vld [vmem:[%s139 + $0xa8] sm:$0xf]
      %v190 = vld [vmem:[%s139 + $0xac] sm:$0xf]
      %v191 = vld [vmem:[%s139 + $0xb0] sm:$0xf]
      %v192 = vld [vmem:[%s139 + $0xb4] sm:$0xf]
      %v193 = vld [vmem:[%s139 + $0xb8] sm:$0xf]
      %v194 = vld [vmem:[%s139 + $0xbc] sm:$0xf]
      %v195 = vld [vmem:[%s139 + $0xc0] sm:$0xf]
      %v196 = vld [vmem:[%s139 + $0xc4] sm:$0xf]
      %v197 = vld [vmem:[%s139 + $0xc8] sm:$0xf]
      %v198 = vld [vmem:[%s139 + $0xcc] sm:$0xf]
      %v199 = vld [vmem:[%s139 + $0xd0] sm:$0xf]
      %v200 = vld [vmem:[%s139 + $0xd4] sm:$0xf]
      %v201 = vld [vmem:[%s139 + $0xd8] sm:$0xf]
      %v202 = vld [vmem:[%s139 + $0xdc] sm:$0xf]
      %v203 = vld [vmem:[%s139 + $0xe0] sm:$0xf]
      %v204 = vld [vmem:[%s139 + $0xe4] sm:$0xf]
      %v205 = vld [vmem:[%s139 + $0xe8] sm:$0xf]
      %v206 = vld [vmem:[%s139 + $0xec] sm:$0xf]
      %v207 = vld [vmem:[%s139 + $0xf0] sm:$0xf]
      %v208 = vld [vmem:[%s139 + $0xf4] sm:$0xf]
      %v209 = vld [vmem:[%s139 + $0xf8] sm:$0xf]
      %v210 = vld [vmem:[%s139 + $0xfc] sm:$0xf]
      %v211 = vld [vmem:[%s1] sm:$0xf]
      %v212 = vld [vmem:[%s1 + $0x4] sm:$0xf]
      %v213 = vld [vmem:[%s1 + $0x8] sm:$0xf]
      %v214 = vld [vmem:[%s1 + $0xc] sm:$0xf]
      %v215 = vld [vmem:[%s1 + $0x10] sm:$0xf]
      %v216 = vld [vmem:[%s1 + $0x14] sm:$0xf]
      %v217 = vld [vmem:[%s1 + $0x18] sm:$0xf]
      %v218 = vld [vmem:[%s1 + $0x1c] sm:$0xf]
      %v219 = vld [vmem:[%s1 + $0x20] sm:$0xf]
      %v220 = vld [vmem:[%s1 + $0x24] sm:$0xf]
      %v221 = vld [vmem:[%s1 + $0x28] sm:$0xf]
      %v222 = vld [vmem:[%s1 + $0x2c] sm:$0xf]
      %v223 = vld [vmem:[%s1 + $0x30] sm:$0xf]
      %v224 = vld [vmem:[%s1 + $0x34] sm:$0xf]
      %v225 = vld [vmem:[%s1 + $0x38] sm:$0xf]
      %v226 = vld [vmem:[%s1 + $0x3c] sm:$0xf]
      %v291 = vunpack.c.l.b16 %v147
      %v292 = vunpack.c.l.b16 %v148
      %v293 = vunpack.c.l.b16 %v149
      %v294 = vunpack.c.l.b16 %v150
      %v295 = vunpack.c.l.b16 %v151
      %v296 = vunpack.c.l.b16 %v152
      %v297 = vunpack.c.l.b16 %v153
      %v298 = vunpack.c.l.b16 %v154
      %v299 = vunpack.c.l.b16 %v155
      %v300 = vunpack.c.l.b16 %v156
      %v301 = vunpack.c.l.b16 %v157
      %v302 = vunpack.c.l.b16 %v158
      %v303 = vunpack.c.l.b16 %v159
      %v304 = vunpack.c.l.b16 %v160
      %v305 = vunpack.c.l.b16 %v161
      %v306 = vunpack.c.l.b16 %v162
      %v307 = vunpack.c.l.b16 %v163
      %v308 = vunpack.c.l.b16 %v164
      %v309 = vunpack.c.l.b16 %v165
      %v310 = vunpack.c.l.b16 %v166
      %v311 = vunpack.c.l.b16 %v167
      %v312 = vunpack.c.l.b16 %v168
      %v313 = vunpack.c.l.b16 %v169
      %v314 = vunpack.c.l.b16 %v170
      %v315 = vunpack.c.l.b16 %v171
      %v316 = vunpack.c.l.b16 %v172
      %v317 = vunpack.c.l.b16 %v173
      %v318 = vunpack.c.l.b16 %v174
      %v319 = vunpack.c.l.b16 %v175
      %v320 = vunpack.c.l.b16 %v176
      %v321 = vunpack.c.l.b16 %v177
      %v322 = vunpack.c.l.b16 %v178
      %v323 = vunpack.c.l.b16 %v179
      %v324 = vunpack.c.l.b16 %v180
      %v325 = vunpack.c.l.b16 %v181
      %v326 = vunpack.c.l.b16 %v182
      %v327 = vunpack.c.l.b16 %v183
      %v328 = vunpack.c.l.b16 %v184
      %v329 = vunpack.c.l.b16 %v185
      %v330 = vunpack.c.l.b16 %v186
      %v331 = vunpack.c.l.b16 %v187
      %v332 = vunpack.c.l.b16 %v188
      %v333 = vunpack.c.l.b16 %v189
      %v334 = vunpack.c.l.b16 %v190
      %v335 = vunpack.c.l.b16 %v191
      %v336 = vunpack.c.l.b16 %v192
      %v337 = vunpack.c.l.b16 %v193
      %v338 = vunpack.c.l.b16 %v194
      %v339 = vunpack.c.l.b16 %v195
      %v340 = vunpack.c.l.b16 %v196
      %v341 = vunpack.c.l.b16 %v197
      %v342 = vunpack.c.l.b16 %v198
      %v343 = vunpack.c.l.b16 %v199
      %v344 = vunpack.c.l.b16 %v200
      %v345 = vunpack.c.l.b16 %v201
      %v346 = vunpack.c.l.b16 %v202
      %v347 = vunpack.c.l.b16 %v203
      %v348 = vunpack.c.l.b16 %v204
      %v349 = vunpack.c.l.b16 %v205
      %v350 = vunpack.c.l.b16 %v206
      %v351 = vunpack.c.l.b16 %v207
      %v352 = vunpack.c.l.b16 %v208
      %v353 = vunpack.c.l.b16 %v209
      %v354 = vunpack.c.l.b16 %v210
      %v355 = vpack.c.b16 %v292, %v291
      %v356 = vpack.c.b16 %v294, %v293
      %v357 = vpack.c.b16 %v296, %v295
      %v358 = vpack.c.b16 %v298, %v297
      %v359 = vpack.c.b16 %v300, %v299
      %v360 = vpack.c.b16 %v302, %v301
      %v361 = vpack.c.b16 %v304, %v303
      %v362 = vpack.c.b16 %v306, %v305
      %v363 = vpack.c.b16 %v308, %v307
      %v364 = vpack.c.b16 %v310, %v309
      %v365 = vpack.c.b16 %v312, %v311
      %v366 = vpack.c.b16 %v314, %v313
      %v367 = vpack.c.b16 %v316, %v315
      %v368 = vpack.c.b16 %v318, %v317
      %v369 = vpack.c.b16 %v320, %v319
      %v370 = vpack.c.b16 %v322, %v321
      %v371 = vpack.c.b16 %v324, %v323
      %v372 = vpack.c.b16 %v326, %v325
      %v373 = vpack.c.b16 %v328, %v327
      %v374 = vpack.c.b16 %v330, %v329
      %v375 = vpack.c.b16 %v332, %v331
      %v376 = vpack.c.b16 %v334, %v333
      %v377 = vpack.c.b16 %v336, %v335
      %v378 = vpack.c.b16 %v338, %v337
      %v379 = vpack.c.b16 %v340, %v339
      %v380 = vpack.c.b16 %v342, %v341
      %v381 = vpack.c.b16 %v344, %v343
      %v382 = vpack.c.b16 %v346, %v345
      %v383 = vpack.c.b16 %v348, %v347
      %v384 = vpack.c.b16 %v350, %v349
      %v385 = vpack.c.b16 %v352, %v351
      %v386 = vpack.c.b16 %v354, %v353
      %v435 = vunpack.c.l.b16 %v211
      %v436 = vunpack.c.l.b16 %v212
      %v437 = vunpack.c.l.b16 %v213
      %v438 = vunpack.c.l.b16 %v214
      %v439 = vunpack.c.l.b16 %v215
      %v440 = vunpack.c.l.b16 %v216
      %v441 = vunpack.c.l.b16 %v217
      %v442 = vunpack.c.l.b16 %v218
      %v443 = vunpack.c.l.b16 %v219
      %v444 = vunpack.c.l.b16 %v220
      %v445 = vunpack.c.l.b16 %v221
      %v446 = vunpack.c.l.b16 %v222
      %v447 = vunpack.c.l.b16 %v223
      %v448 = vunpack.c.l.b16 %v224
      %v449 = vunpack.c.l.b16 %v225
      %v450 = vunpack.c.l.b16 %v226
      %v451 = vpack.c.b16 %v436, %v435
      %v452 = vpack.c.b16 %v438, %v437
      %v453 = vpack.c.b16 %v440, %v439
      %v454 = vpack.c.b16 %v442, %v441
      %v455 = vpack.c.b16 %v444, %v443
      %v456 = vpack.c.b16 %v446, %v445
      %v457 = vpack.c.b16 %v448, %v447
      %v458 = vpack.c.b16 %v450, %v449
      %467 = vmatpush.bf16.msra.mxu0 %v458
      %468 = vmatpush.bf16.msra.mxu0 %v457
      %469 = vmatpush.bf16.msra.mxu0 %v456
      %470 = vmatpush.bf16.msra.mxu0 %v455
      %471 = vmatpush.bf16.msra.mxu0 %v454
      %472 = vmatpush.bf16.msra.mxu0 %v453
      %473 = vmatpush.bf16.msra.mxu0 %v452
      %474 = vmatpush.bf16.msra.mxu0 %v451
      %475 = vmatmul.bf16.gmra.mxu0 %v355
      %v476 = vpop.f32.mrf.mxu0
      %v477 = vadd.f32 0.0, %v476
      %v478 = vpop.f32.mrf.mxu0
      %v479 = vadd.f32 0.0, %v478
      %480 = vmatmul.bf16.gmra.mxu0 %v356
      %v481 = vpop.f32.mrf.mxu0
      %v482 = vadd.f32 0.0, %v481
      %v483 = vpop.f32.mrf.mxu0
      %v484 = vadd.f32 0.0, %v483
      %485 = vmatmul.bf16.gmra.mxu0 %v357
      %v486 = vpop.f32.mrf.mxu0
      %v487 = vadd.f32 0.0, %v486
      %v488 = vpop.f32.mrf.mxu0
      %v489 = vadd.f32 0.0, %v488
      %490 = vmatmul.bf16.gmra.mxu0 %v358
      %v491 = vpop.f32.mrf.mxu0
      %v492 = vadd.f32 0.0, %v491
      %v493 = vpop.f32.mrf.mxu0
      %v494 = vadd.f32 0.0, %v493
      %495 = vmatmul.bf16.gmra.mxu0 %v359
      %v496 = vpop.f32.mrf.mxu0
      %v497 = vadd.f32 0.0, %v496
      %v498 = vpop.f32.mrf.mxu0
      %v499 = vadd.f32 0.0, %v498
      %500 = vmatmul.bf16.gmra.mxu0 %v360
      %v501 = vpop.f32.mrf.mxu0
      %v502 = vadd.f32 0.0, %v501
      %v503 = vpop.f32.mrf.mxu0
      %v504 = vadd.f32 0.0, %v503
      %505 = vmatmul.bf16.gmra.mxu0 %v361
      %v506 = vpop.f32.mrf.mxu0
      %v507 = vadd.f32 0.0, %v506
      %v508 = vpop.f32.mrf.mxu0
      %v509 = vadd.f32 0.0, %v508
      %510 = vmatmul.bf16.gmra.mxu0 %v362
      %v511 = vpop.f32.mrf.mxu0
      %v512 = vadd.f32 0.0, %v511
      %v513 = vpop.f32.mrf.mxu0
      %v514 = vadd.f32 0.0, %v513
      %515 = vmatmul.bf16.gmra.mxu0 %v363
      %v516 = vpop.f32.mrf.mxu0
      %v517 = vadd.f32 0.0, %v516
      %v518 = vpop.f32.mrf.mxu0
      %v519 = vadd.f32 0.0, %v518
      %520 = vmatmul.bf16.gmra.mxu0 %v364
      %v521 = vpop.f32.mrf.mxu0
      %v522 = vadd.f32 0.0, %v521
      %v523 = vpop.f32.mrf.mxu0
      %v524 = vadd.f32 0.0, %v523
      %525 = vmatmul.bf16.gmra.mxu0 %v365
      %v526 = vpop.f32.mrf.mxu0
      %v527 = vadd.f32 0.0, %v526
      %v528 = vpop.f32.mrf.mxu0
      %v529 = vadd.f32 0.0, %v528
      %530 = vmatmul.bf16.gmra.mxu0 %v366
      %v531 = vpop.f32.mrf.mxu0
      %v532 = vadd.f32 0.0, %v531
      %v533 = vpop.f32.mrf.mxu0
      %v534 = vadd.f32 0.0, %v533
      %535 = vmatmul.bf16.gmra.mxu0 %v367
      %v536 = vpop.f32.mrf.mxu0
      %v537 = vadd.f32 0.0, %v536
      %v538 = vpop.f32.mrf.mxu0
      %v539 = vadd.f32 0.0, %v538
      %540 = vmatmul.bf16.gmra.mxu0 %v368
      %v541 = vpop.f32.mrf.mxu0
      %v542 = vadd.f32 0.0, %v541
      %v543 = vpop.f32.mrf.mxu0
      %v544 = vadd.f32 0.0, %v543
      %545 = vmatmul.bf16.gmra.mxu0 %v369
      %v546 = vpop.f32.mrf.mxu0
      %v547 = vadd.f32 0.0, %v546
      %v548 = vpop.f32.mrf.mxu0
      %v549 = vadd.f32 0.0, %v548
      %550 = vmatmul.bf16.gmra.mxu0 %v370
      %v551 = vpop.f32.mrf.mxu0
      %v552 = vadd.f32 0.0, %v551
      %v553 = vpop.f32.mrf.mxu0
      %v554 = vadd.f32 0.0, %v553
      %555 = vmatmul.bf16.gmra.mxu0 %v371
      %v556 = vpop.f32.mrf.mxu0
      %v557 = vadd.f32 0.0, %v556
      %v558 = vpop.f32.mrf.mxu0
      %v559 = vadd.f32 0.0, %v558
      %560 = vmatmul.bf16.gmra.mxu0 %v372
      %v561 = vpop.f32.mrf.mxu0
      %v562 = vadd.f32 0.0, %v561
      %v563 = vpop.f32.mrf.mxu0
      %v564 = vadd.f32 0.0, %v563
      %565 = vmatmul.bf16.gmra.mxu0 %v373
      %v566 = vpop.f32.mrf.mxu0
      %v567 = vadd.f32 0.0, %v566
      %v568 = vpop.f32.mrf.mxu0
      %v569 = vadd.f32 0.0, %v568
      %570 = vmatmul.bf16.gmra.mxu0 %v374
      %v571 = vpop.f32.mrf.mxu0
      %v572 = vadd.f32 0.0, %v571
      %v573 = vpop.f32.mrf.mxu0
      %v574 = vadd.f32 0.0, %v573
      %575 = vmatmul.bf16.gmra.mxu0 %v375
      %v576 = vpop.f32.mrf.mxu0
      %v577 = vadd.f32 0.0, %v576
      %v578 = vpop.f32.mrf.mxu0
      %v579 = vadd.f32 0.0, %v578
      %580 = vmatmul.bf16.gmra.mxu0 %v376
      %v581 = vpop.f32.mrf.mxu0
      %v582 = vadd.f32 0.0, %v581
      %v583 = vpop.f32.mrf.mxu0
      %v584 = vadd.f32 0.0, %v583
      %585 = vmatmul.bf16.gmra.mxu0 %v377
      %v586 = vpop.f32.mrf.mxu0
      %v587 = vadd.f32 0.0, %v586
      %v588 = vpop.f32.mrf.mxu0
      %v589 = vadd.f32 0.0, %v588
      %590 = vmatmul.bf16.gmra.mxu0 %v378
      %v591 = vpop.f32.mrf.mxu0
      %v592 = vadd.f32 0.0, %v591
      %v593 = vpop.f32.mrf.mxu0
      %v594 = vadd.f32 0.0, %v593
      %595 = vmatmul.bf16.gmra.mxu0 %v379
      %v596 = vpop.f32.mrf.mxu0
      %v597 = vadd.f32 0.0, %v596
      %v598 = vpop.f32.mrf.mxu0
      %v599 = vadd.f32 0.0, %v598
      %600 = vmatmul.bf16.gmra.mxu0 %v380
      %v601 = vpop.f32.mrf.mxu0
      %v602 = vadd.f32 0.0, %v601
      %v603 = vpop.f32.mrf.mxu0
      %v604 = vadd.f32 0.0, %v603
      %605 = vmatmul.bf16.gmra.mxu0 %v381
      %v606 = vpop.f32.mrf.mxu0
      %v607 = vadd.f32 0.0, %v606
      %v608 = vpop.f32.mrf.mxu0
      %v609 = vadd.f32 0.0, %v608
      %610 = vmatmul.bf16.gmra.mxu0 %v382
      %v611 = vpop.f32.mrf.mxu0
      %v612 = vadd.f32 0.0, %v611
      %v613 = vpop.f32.mrf.mxu0
      %v614 = vadd.f32 0.0, %v613
      %615 = vmatmul.bf16.gmra.mxu0 %v383
      %v616 = vpop.f32.mrf.mxu0
      %v617 = vadd.f32 0.0, %v616
      %v618 = vpop.f32.mrf.mxu0
      %v619 = vadd.f32 0.0, %v618
      %620 = vmatmul.bf16.gmra.mxu0 %v384
      %v621 = vpop.f32.mrf.mxu0
      %v622 = vadd.f32 0.0, %v621
      %v623 = vpop.f32.mrf.mxu0
      %v624 = vadd.f32 0.0, %v623
      %625 = vmatmul.bf16.gmra.mxu0 %v385
      %v626 = vpop.f32.mrf.mxu0
      %v627 = vadd.f32 0.0, %v626
      %v628 = vpop.f32.mrf.mxu0
      %v629 = vadd.f32 0.0, %v628
      %630 = vmatmul.bf16.gmra.mxu0 %v386
      %v631 = vpop.f32.mrf.mxu0
      %v632 = vadd.f32 0.0, %v631
      %v633 = vpop.f32.mrf.mxu0
      %v634 = vadd.f32 0.0, %v633
      %635 = vdwg.mxu0
      %v636 = vtanh.pop %v477
      %v637 = vtanh.pop %v479
      %v638 = vtanh.pop %v482
      %v639 = vtanh.pop %v484
      %v640 = vtanh.pop %v487
      %v641 = vtanh.pop %v489
      %v642 = vtanh.pop %v492
      %v643 = vtanh.pop %v494
      %v644 = vtanh.pop %v497
      %v645 = vtanh.pop %v499
      %v646 = vtanh.pop %v502
      %v647 = vtanh.pop %v504
      %v648 = vtanh.pop %v507
      %v649 = vtanh.pop %v509
      %v650 = vtanh.pop %v512
      %v651 = vtanh.pop %v514
      %v652 = vtanh.pop %v517
      %v653 = vtanh.pop %v519
      %v654 = vtanh.pop %v522
      %v655 = vtanh.pop %v524
      %v656 = vtanh.pop %v527
      %v657 = vtanh.pop %v529
      %v658 = vtanh.pop %v532
      %v659 = vtanh.pop %v534
      %v660 = vtanh.pop %v537
      %v661 = vtanh.pop %v539
      %v662 = vtanh.pop %v542
      %v663 = vtanh.pop %v544
      %v664 = vtanh.pop %v547
      %v665 = vtanh.pop %v549
      %v666 = vtanh.pop %v552
      %v667 = vtanh.pop %v554
      %v668 = vtanh.pop %v557
      %v669 = vtanh.pop %v559
      %v670 = vtanh.pop %v562
      %v671 = vtanh.pop %v564
      %v672 = vtanh.pop %v567
      %v673 = vtanh.pop %v569
      %v674 = vtanh.pop %v572
      %v675 = vtanh.pop %v574
      %v676 = vtanh.pop %v577
      %v677 = vtanh.pop %v579
      %v678 = vtanh.pop %v582
      %v679 = vtanh.pop %v584
      %v680 = vtanh.pop %v587
      %v681 = vtanh.pop %v589
      %v682 = vtanh.pop %v592
      %v683 = vtanh.pop %v594
      %v684 = vtanh.pop %v597
      %v685 = vtanh.pop %v599
      %v686 = vtanh.pop %v602
      %v687 = vtanh.pop %v604
      %v688 = vtanh.pop %v607
      %v689 = vtanh.pop %v609
      %v690 = vtanh.pop %v612
      %v691 = vtanh.pop %v614
      %v692 = vtanh.pop %v617
      %v693 = vtanh.pop %v619
      %v694 = vtanh.pop %v622
      %v695 = vtanh.pop %v624
      %v696 = vtanh.pop %v627
      %v697 = vtanh.pop %v629
      %v698 = vtanh.pop %v632
      %v699 = vtanh.pop %v634
      %700 = vst [vmem:[%s145] sm:$0xff] %v636
      %701 = vst [vmem:[%s145 + $0x8] sm:$0xff] %v637
      %702 = vst [vmem:[%s145 + $0x10] sm:$0xff] %v638
      %703 = vst [vmem:[%s145 + $0x18] sm:$0xff] %v639
      %704 = vst [vmem:[%s145 + $0x20] sm:$0xff] %v640
      %705 = vst [vmem:[%s145 + $0x28] sm:$0xff] %v641
      %706 = vst [vmem:[%s145 + $0x30] sm:$0xff] %v642
      %707 = vst [vmem:[%s145 + $0x38] sm:$0xff] %v643
      %708 = vst [vmem:[%s145 + $0x40] sm:$0xff] %v644
      %709 = vst [vmem:[%s145 + $0x48] sm:$0xff] %v645
      %710 = vst [vmem:[%s145 + $0x50] sm:$0xff] %v646
      %711 = vst [vmem:[%s145 + $0x58] sm:$0xff] %v647
      %712 = vst [vmem:[%s145 + $0x60] sm:$0xff] %v648
      %713 = vst [vmem:[%s145 + $0x68] sm:$0xff] %v649
      %714 = vst [vmem:[%s145 + $0x70] sm:$0xff] %v650
      %715 = vst [vmem:[%s145 + $0x78] sm:$0xff] %v651
      %716 = vst [vmem:[%s145 + $0x80] sm:$0xff] %v652
      %717 = vst [vmem:[%s145 + $0x88] sm:$0xff] %v653
      %718 = vst [vmem:[%s145 + $0x90] sm:$0xff] %v654
      %719 = vst [vmem:[%s145 + $0x98] sm:$0xff] %v655
      %720 = vst [vmem:[%s145 + $0xa0] sm:$0xff] %v656
      %721 = vst [vmem:[%s145 + $0xa8] sm:$0xff] %v657
      %722 = vst [vmem:[%s145 + $0xb0] sm:$0xff] %v658
      %723 = vst [vmem:[%s145 + $0xb8] sm:$0xff] %v659
      %724 = vst [vmem:[%s145 + $0xc0] sm:$0xff] %v660
      %725 = vst [vmem:[%s145 + $0xc8] sm:$0xff] %v661
      %726 = vst [vmem:[%s145 + $0xd0] sm:$0xff] %v662
      %727 = vst [vmem:[%s145 + $0xd8] sm:$0xff] %v663
      %728 = vst [vmem:[%s145 + $0xe0] sm:$0xff] %v664
      %729 = vst [vmem:[%s145 + $0xe8] sm:$0xff] %v665
      %730 = vst [vmem:[%s145 + $0xf0] sm:$0xff] %v666
      %731 = vst [vmem:[%s145 + $0xf8] sm:$0xff] %v667
      %732 = vst [vmem:[%s145 + $0x100] sm:$0xff] %v668
      %733 = vst [vmem:[%s145 + $0x108] sm:$0xff] %v669
      %734 = vst [vmem:[%s145 + $0x110] sm:$0xff] %v670
      %735 = vst [vmem:[%s145 + $0x118] sm:$0xff] %v671
      %736 = vst [vmem:[%s145 + $0x120] sm:$0xff] %v672
      %737 = vst [vmem:[%s145 + $0x128] sm:$0xff] %v673
      %738 = vst [vmem:[%s145 + $0x130] sm:$0xff] %v674
      %739 = vst [vmem:[%s145 + $0x138] sm:$0xff] %v675
      %740 = vst [vmem:[%s145 + $0x140] sm:$0xff] %v676
      %741 = vst [vmem:[%s145 + $0x148] sm:$0xff] %v677
      %742 = vst [vmem:[%s145 + $0x150] sm:$0xff] %v678
      %743 = vst [vmem:[%s145 + $0x158] sm:$0xff] %v679
      %744 = vst [vmem:[%s145 + $0x160] sm:$0xff] %v680
      %745 = vst [vmem:[%s145 + $0x168] sm:$0xff] %v681
      %746 = vst [vmem:[%s145 + $0x170] sm:$0xff] %v682
      %747 = vst [vmem:[%s145 + $0x178] sm:$0xff] %v683
      %748 = vst [vmem:[%s145 + $0x180] sm:$0xff] %v684
      %749 = vst [vmem:[%s145 + $0x188] sm:$0xff] %v685
      %750 = vst [vmem:[%s145 + $0x190] sm:$0xff] %v686
      %751 = vst [vmem:[%s145 + $0x198] sm:$0xff] %v687
      %752 = vst [vmem:[%s145 + $0x1a0] sm:$0xff] %v688
      %753 = vst [vmem:[%s145 + $0x1a8] sm:$0xff] %v689
      %754 = vst [vmem:[%s145 + $0x1b0] sm:$0xff] %v690
      %755 = vst [vmem:[%s145 + $0x1b8] sm:$0xff] %v691
      %756 = vst [vmem:[%s145 + $0x1c0] sm:$0xff] %v692
      %757 = vst [vmem:[%s145 + $0x1c8] sm:$0xff] %v693
      %758 = vst [vmem:[%s145 + $0x1d0] sm:$0xff] %v694
      %759 = vst [vmem:[%s145 + $0x1d8] sm:$0xff] %v695
      %760 = vst [vmem:[%s145 + $0x1e0] sm:$0xff] %v696
      %761 = vst [vmem:[%s145 + $0x1e8] sm:$0xff] %v697
      %762 = vst [vmem:[%s145 + $0x1f0] sm:$0xff] %v698
      %763 = vst [vmem:[%s145 + $0x1f8] sm:$0xff] %v699
      %s764 = smul.u32 64, %s13
      %p765 = scmp.lt.s32.totalorder %s764, 255
      %s766 = scalar_select %p765, %s764, 255
      %s767 = smul.addr %s766, 8
      %s768 = scalar_lea.vmem %s2, %s767
      // Predicated region
      $region29: #{generator_forward.56} parent=27 // pred_check
        %p769 = pneg %p78
      $region30: #{generator_forward.56} parent=27 // pred_check_branch
        %771 = sbr.rel (%p769) target = $region32
      $region31: #{generator_forward.56} parent=27 // pred_region
        %s772 = smul.u32 64, %s13
      $region32: #{generator_forward.56} parent=27 // pred_fallthru
        _
    $region28: #{generator_forward.56} parent=5 // pred_fallthru
      _
    %p773 = scmp.le.s32.totalorder 2, %s8
    // Predicated region
    $region33: #{generator_forward.56} parent=5 // pred_check
      %p774 = pneg %p773
    $region34: #{generator_forward.56} parent=5 // pred_check_branch
      %776 = sbr.rel (%p774) target = $region36
    $region35: #{generator_forward.56} parent=5 // pred_region
      %s777 = ssub.s32 %s8, 2
      // Predicated region
      $region37: #{generator_forward.56} parent=35 // pred_check
        %p778 = pneg %p84
      $region38: #{generator_forward.56} parent=35 // pred_check_branch
        %780 = sbr.rel (%p778) target = $region40
      $region39: #{generator_forward.56} parent=35 // pred_region
        %s781 = smul.u32 64, %s14
        %p782 = scmp.lt.s32.totalorder %s781, 255
        %s783 = scalar_select %p782, %s781, 255
        %s784 = smul.addr %s783, 8
        %s785 = scalar_lea.vmem %s2, %s784
      $region40: #{generator_forward.56} parent=35 // pred_fallthru
        _
    $region36: #{generator_forward.56} parent=5 // pred_fallthru
      _
  $region6: #{generator_forward.56} parent=0 // loop_footer
    %s12 = sadd.s32 1, %s8
  $region7: #{generator_forward.56} parent=0 // loop_footer_branch
    %7 = sbr.rel target = $region3
  $region8: #{generator_forward.56} parent=0 // loop_exit
    _

</llo_original>
